<compile_context>
chip_gen: v6e
topology: v6e:2x2x1
jax: 0.10.0
libtpu: 0.0.40
codegen_flags: <defaults>
</compile_context>

<pallas_src>
import functools

import jax
import jax.numpy as jnp
from jax.experimental import pallas as pl
from jax.experimental.pallas import tpu as pltpu


_SQRT_HALF = 0.7071067811865476
_NEG_FILL = -1e30   # GELU outputs are >= ~-0.17, so this acts as -inf for the masked max.
_H = 128            # lane-dense hidden width (64-wide layers are zero-padded to 128)
_G_SUB = 8          # graphs padded to a full sublane group -> single full-tile output store

# Exact (erf) GELU matches torch.nn.GELU(approximate='none').  Setting this to
# True uses the tanh approximation, which moves the transcendental onto the EUP
# slot (review suggestion) at the cost of tiny numeric deviation.
_USE_TANH_GELU = False


def _gelu(x):
    if _USE_TANH_GELU:
        c = 0.7978845608028654  # sqrt(2/pi)
        return 0.5 * x * (1.0 + jnp.tanh(c * (x + 0.044715 * x * x * x)))
    return 0.5 * x * (1.0 + jax.lax.erf(x * _SQRT_HALF))


# ----------------------------------------------------------------------------
# The single fused kernel
# ----------------------------------------------------------------------------
def make_fused_gcn_kernel(tile_m, n_panels, g_pad):
    def kernel(a_hbm, x_ref, neg_ref,
               w1_ref, w2_ref, w3_ref, w4_ref, w5_ref,
               s1_ref, t1_ref, s2_ref, t2_ref, s3_ref, t3_ref,
               s4_ref, t4_ref, s5_ref, t5_ref,
               lw1_ref, lb1_ref, lw2_ref, lb2_ref,
               o_ref,
               a_vmem, h1_vmem, sem):

        # ---- conv1 (+bn1+gelu): stream A_hat row-panels HBM->VMEM, overlap ----
        def a_copy(p, slot):
            return pltpu.make_async_copy(
                a_hbm.at[pl.ds(p * tile_m, tile_m), :],
                a_vmem.at[pl.ds(p * tile_m, tile_m), :],
                sem.at[slot])

        a_copy(0, 0).start()

        @pl.loop(0, n_panels)
        def _(p):
            slot = p % 2
            a_copy(p, slot).wait()

            @pl.when(p + 1 < n_panels)
            def _():
                a_copy(p + 1, 1 - slot).start()

            # agg-first form: (A @ X) @ W1 (fin=8 << fout=128)
            a_panel = a_vmem[pl.ds(p * tile_m, tile_m), :]            # (tile_m, n_pad) bf16
            t = jnp.dot(a_panel, x_ref[...],
                        preferred_element_type=jnp.float32)           # (tile_m, 8)
            z = jnp.dot(t.astype(jnp.bfloat16), w1_ref[...],
                        preferred_element_type=jnp.float32)           # (tile_m, 128)
            h1 = _gelu(z * s1_ref[...] + t1_ref[...])
            h1_vmem[pl.ds(p * tile_m, tile_m), :] = h1.astype(jnp.bfloat16)

        # A_hat now fully resident in VMEM (DMA'd exactly once); reuse for 2..5.
        a_bf = a_vmem[...]

        def conv_bn_gelu(h_bf, w_ref, s_ref, t_ref):
            # A @ (H @ W); eval-mode BN + conv bias folded into scale/shift.
            t = jnp.dot(h_bf, w_ref[...], preferred_element_type=jnp.float32)
            z = jnp.dot(a_bf, t.astype(jnp.bfloat16),
                        preferred_element_type=jnp.float32)
            return _gelu(z * s_ref[...] + t_ref[...])

        h = conv_bn_gelu(h1_vmem[...], w2_ref, s2_ref, t2_ref)             # conv2+gelu
        # dropout(p=0.5): identity in eval mode
        h = conv_bn_gelu(h.astype(jnp.bfloat16), w3_ref, s3_ref, t3_ref)   # conv3+bn2+gelu
        h = conv_bn_gelu(h.astype(jnp.bfloat16), w4_ref, s4_ref, t4_ref)   # conv4+gelu
        h = conv_bn_gelu(h.astype(jnp.bfloat16), w5_ref, s5_ref, t5_ref)   # conv5+bn3+gelu

        # ---- global_max_pool: additive -inf mask, one add + XLU max per graph --
        neg = neg_ref[...]                                            # (n_pad, g_pad) f32
        rows = []
        for g in range(g_pad):                                        # static, tiny
            rows.append(jnp.max(h + neg[:, g:g + 1], axis=0, keepdims=True))
        pooled = jnp.concatenate(rows, axis=0)                        # (g_pad, 128) f32

        # ---- head (lane-dense, padded to 128 output lanes) ---------------------
        # dropout(p=0.5): identity in eval mode
        h1 = jnp.dot(pooled, lw1_ref[...],
                     preferred_element_type=jnp.float32) + lb1_ref[...]     # (g_pad, 128)
        out = jnp.dot(h1, lw2_ref[...],
                      preferred_element_type=jnp.float32) + lb2_ref[...]    # (g_pad, 128)
        o_ref[...] = out    # single full-tile unmasked store

    return kernel


def _full_spec(shape):
    zeros = (0,) * len(shape)
    return pl.BlockSpec(shape, lambda i: zeros)


# ----------------------------------------------------------------------------
# Plain-JAX glue: PyG-style symmetric adjacency normalization
# ----------------------------------------------------------------------------
def build_norm_adj(ei, num_nodes):
    src, dst = ei[0], ei[1]
    # sum duplicate edges (PyG scatter-add semantics)
    a = jnp.zeros((num_nodes, num_nodes), jnp.float32).at[dst, src].add(1.0)
    # add self-loop weight 1 only to nodes that don't already have one
    diag = jnp.diagonal(a)
    a = a + jnp.diag(jnp.where(diag > 0.0, 0.0, 1.0))
    deg = jnp.sum(a, axis=1)
    dinv = jnp.where(deg > 0, 1.0 / jnp.sqrt(deg), 0.0)
    return dinv[:, None] * a * dinv[None, :]


# ----------------------------------------------------------------------------
# Full GCN forward (one pallas_call)
# ----------------------------------------------------------------------------
def gcn_forward(params, x, ei, batch, num_graphs):
    n = x.shape[0]
    n_pad = max(128, ((n + 127) // 128) * 128)
    # v6e/v7x MXUs are 256-wide: prefer 256-row A panels when the padding allows.
    tile_m = 256 if (n_pad % 256 == 0) else 128
    n_panels = n_pad // tile_m
    g_pad = max(_G_SUB, ((num_graphs + _G_SUB - 1) // _G_SUB) * _G_SUB)

    a_hat = build_norm_adj(ei, n)
    a_pad = jnp.pad(a_hat, ((0, n_pad - n), (0, n_pad - n))).astype(jnp.bfloat16)

    # pad node features 2 -> 8 and rows to n_pad (zero rows/cols => exact math)
    fin = x.shape[1]
    x0 = jnp.pad(x.astype(jnp.float32),
                 ((0, n_pad - n), (0, 8 - fin))).astype(jnp.bfloat16)

    # additive pooling mask: 0 where node i belongs to graph g, -1e30 elsewhere
    member = batch[:, None] == jnp.arange(num_graphs)[None, :]
    member = jnp.pad(member, ((0, n_pad - n), (0, g_pad - num_graphs)))
    neg_mask = jnp.where(member, 0.0, _NEG_FILL).astype(jnp.float32)

    def pad_w(w, rows, cols):
        return jnp.pad(w.astype(jnp.float32),
                       ((0, rows - w.shape[0]), (0, cols - w.shape[1]))
                       ).astype(jnp.bfloat16)

    def pad_vec(v, cols, fill):
        return jnp.pad(v.astype(jnp.float32), (0, cols - v.shape[0]),
                       constant_values=fill).reshape(1, cols)

    # Fold eval-mode BN (running stats) + conv bias:
    #   scale*(conv + b) + shift = conv*scale + (b*scale + shift)
    def fold(bias, bn, width):
        if bn is None:
            scale = jnp.ones_like(bias)
            shift = bias.astype(jnp.float32)
        else:
            gamma, beta, mean, var = bn
            scale = gamma / jnp.sqrt(var + 1e-5)
            shift = beta - mean * scale + bias * scale
        return pad_vec(scale, width, 1.0), pad_vec(shift, width, 0.0)

    w1 = pad_w(params["conv1_w"], 8, _H)
    w2 = pad_w(params["conv2_w"], _H, _H)
    w3 = pad_w(params["conv3_w"], _H, _H)
    w4 = pad_w(params["conv4_w"], _H, _H)
    w5 = pad_w(params["conv5_w"], _H, _H)

    s1, t1 = fold(params["conv1_b"], params["bn1"], _H)
    s2, t2 = fold(params["conv2_b"], None, _H)
    s3, t3 = fold(params["conv3_b"], params["bn2"], _H)
    s4, t4 = fold(params["conv4_b"], None, _H)
    s5, t5 = fold(params["conv5_b"], params["bn3"], _H)

    # lane-dense head: pad lin1/lin to (128, 128) f32 with zeros; slice after.
    def pad_head(w, b):
        wp = jnp.pad(w.astype(jnp.float32),
                     ((0, _H - w.shape[0]), (0, _H - w.shape[1])))
        bp = jnp.pad(b.astype(jnp.float32), (0, _H - b.shape[0])).reshape(1, _H)
        return wp, bp

    lw1, lb1 = pad_head(params["lin1_w"], params["lin1_b"])
    lw2, lb2 = pad_head(params["lin_w"], params["lin_b"])
    n_out = params["lin_w"].shape[1]

    inputs = [a_pad, x0, neg_mask,
              w1, w2, w3, w4, w5,
              s1, t1, s2, t2, s3, t3, s4, t4, s5, t5,
              lw1, lb1, lw2, lb2]

    in_specs = ([pl.BlockSpec(memory_space=pl.ANY)]      # A_hat stays in HBM, manual DMA
                + [_full_spec(v.shape) for v in inputs[1:]])

    # Explicit VMEM budget (review: v7x 64 MiB physical / 32 MiB default scoped).
    vmem_limit = int(min(96 << 20,
                         max(32 << 20,
                             2 * n_pad * n_pad + 48 * n_pad * _H + (4 << 20))))

    out_pad = pl.pallas_call(
        make_fused_gcn_kernel(tile_m, n_panels, g_pad),
        out_shape=jax.ShapeDtypeStruct((g_pad, _H), jnp.float32),
        grid=(1,),
        in_specs=in_specs,
        out_specs=_full_spec((g_pad, _H)),
        scratch_shapes=[pltpu.VMEM((n_pad, n_pad), jnp.bfloat16),   # resident A_hat
                        pltpu.VMEM((n_pad, _H), jnp.bfloat16),      # layer-1 activations
                        pltpu.SemaphoreType.DMA((2,))],
        compiler_params=pltpu.CompilerParams(
            dimension_semantics=("arbitrary",),
            vmem_limit_bytes=vmem_limit),
    )(*inputs)

    return out_pad[:num_graphs, :n_out]


# ----------------------------------------------------------------------------
# Deterministic parameter construction (natural PyTorch shapes)
# ----------------------------------------------------------------------------
def init_params(key):
    ks = jax.random.split(key, 16)

    def w(k, shape, scale=0.1):
        return (scale * jax.random.normal(k, shape)).astype(jnp.float32)

    return {
        "conv1_w": w(ks[0], (2, 64)),
        "conv1_b": w(ks[1], (64,)),
        "conv2_w": w(ks[2], (64, 64)),
        "conv2_b": w(ks[3], (64,)),
        "conv3_w": w(ks[4], (64, 128)),
        "conv3_b": w(ks[5], (128,)),
        "conv4_w": w(ks[6], (128, 128)),
        "conv4_b": w(ks[7], (128,)),
        "conv5_w": w(ks[8], (128, 64)),
        "conv5_b": w(ks[9], (64,)),
        "lin1_w": w(ks[10], (64, 10)),
        "lin1_b": w(ks[11], (10,)),
        "lin_w": w(ks[12], (10, 2)),
        "lin_b": w(ks[13], (2,)),
        # BatchNorm (eval): gamma, beta, running_mean=0, running_var=1
        "bn1": (1.0 + w(ks[14], (64,), 0.05), w(ks[15], (64,), 0.05),
                jnp.zeros((64,), jnp.float32), jnp.ones((64,), jnp.float32)),
        "bn2": (jnp.ones((128,), jnp.float32), jnp.zeros((128,), jnp.float32),
                jnp.zeros((128,), jnp.float32), jnp.ones((128,), jnp.float32)),
        "bn3": (jnp.ones((64,), jnp.float32), jnp.zeros((64,), jnp.float32),
                jnp.zeros((64,), jnp.float32), jnp.ones((64,), jnp.float32)),
    }


if __name__ == "__main__":
    key = jax.random.PRNGKey(0)
    kx, kp = jax.random.split(key)

    num_nodes = 32
    num_graphs = 2
    nodes_per_graph = num_nodes // num_graphs

    # node features (N, 2)
    x = jax.random.normal(kx, (num_nodes, 2), dtype=jnp.float32)

    # deterministic bidirectional ring edges within each graph
    edges = []
    for g in range(num_graphs):
        base = g * nodes_per_graph
        for i in range(nodes_per_graph):
            a = base + i
            b = base + (i + 1) % nodes_per_graph
            edges.append((a, b))
            edges.append((b, a))
    ei = jnp.array(edges, dtype=jnp.int32).T          # (2, 64)

    batch = jnp.array([g for g in range(num_graphs) for _ in range(nodes_per_graph)],
                      dtype=jnp.int32)                 # (32,)

    params = init_params(kp)

    fwd = jax.jit(functools.partial(gcn_forward, num_graphs=num_graphs))
    out = fwd(params, x, ei, batch)
    out = jax.block_until_ready(out)

    assert out.shape == (num_graphs, 2) and out.dtype == jnp.float32
    assert bool(jnp.all(jnp.isfinite(out)))
    print("KERNEL_OK")
</pallas_src>

<mosaic_0001>
module attributes {stable_mosaic.version = 11 : i64} {
  func.func private @main(%arg0: i32) attributes {dimension_semantics = [#tpu.dimension_semantics<core_parallel>], iteration_bounds = array<i64: 2>, tpu.core_type = #tpu.core_type<sc_scalar_subcore>, window_params = []} {
    return
  }
}

module attributes {stable_mosaic.version = 11 : i64} {
  func.func private @main(%arg0: i32) attributes {dimension_semantics = [#tpu.dimension_semantics<core_parallel>], iteration_bounds = array<i64: 2>, tpu.core_type = #tpu.core_type<sc_scalar_subcore>, window_params = []} {
    return
  }
}

module attributes {stable_mosaic.version = 11 : i64} {
  func.func @kernel(%arg0: i32, %arg1: memref<128x128xbf16, #tpu.memory_space<any>>, %arg2: memref<128x8xbf16, #tpu.memory_space<vmem>>, %arg3: memref<128x8xf32, #tpu.memory_space<vmem>>, %arg4: memref<8x128xbf16, #tpu.memory_space<vmem>>, %arg5: memref<128x128xbf16, #tpu.memory_space<vmem>>, %arg6: memref<128x128xbf16, #tpu.memory_space<vmem>>, %arg7: memref<128x128xbf16, #tpu.memory_space<vmem>>, %arg8: memref<128x128xbf16, #tpu.memory_space<vmem>>, %arg9: memref<1x128xf32, #tpu.memory_space<vmem>>, %arg10: memref<1x128xf32, #tpu.memory_space<vmem>>, %arg11: memref<1x128xf32, #tpu.memory_space<vmem>>, %arg12: memref<1x128xf32, #tpu.memory_space<vmem>>, %arg13: memref<1x128xf32, #tpu.memory_space<vmem>>, %arg14: memref<1x128xf32, #tpu.memory_space<vmem>>, %arg15: memref<1x128xf32, #tpu.memory_space<vmem>>, %arg16: memref<1x128xf32, #tpu.memory_space<vmem>>, %arg17: memref<1x128xf32, #tpu.memory_space<vmem>>, %arg18: memref<1x128xf32, #tpu.memory_space<vmem>>, %arg19: memref<128x128xf32, #tpu.memory_space<vmem>>, %arg20: memref<1x128xf32, #tpu.memory_space<vmem>>, %arg21: memref<128x128xf32, #tpu.memory_space<vmem>>, %arg22: memref<1x128xf32, #tpu.memory_space<vmem>>, %arg23: memref<8x128xf32, #tpu.memory_space<vmem>>, %arg24: memref<128x128xbf16, #tpu.memory_space<vmem>>, %arg25: memref<128x128xbf16, #tpu.memory_space<vmem>>, %arg26: memref<2x!tpu.dma_semaphore, #tpu.memory_space<semaphore_mem>>) attributes {dimension_semantics = [#tpu.dimension_semantics<arbitrary>], iteration_bounds = array<i64: 1>, scalar_prefetch = 0 : i64, scratch_operands = 3 : i64, tpu.core_type = #tpu.core_type<tc>, window_params = [{}, {pipeline_mode = #tpu.pipeline_mode<synchronous>, transform_indices = @transform_1, window_bounds = array<i64: 128, 8>}, {pipeline_mode = #tpu.pipeline_mode<synchronous>, transform_indices = @transform_2, window_bounds = array<i64: 128, 8>}, {pipeline_mode = #tpu.pipeline_mode<synchronous>, transform_indices = @transform_3, window_bounds = array<i64: 8, 128>}, {pipeline_mode = #tpu.pipeline_mode<synchronous>, transform_indices = @transform_4, window_bounds = array<i64: 128, 128>}, {pipeline_mode = #tpu.pipeline_mode<synchronous>, transform_indices = @transform_5, window_bounds = array<i64: 128, 128>}, {pipeline_mode = #tpu.pipeline_mode<synchronous>, transform_indices = @transform_6, window_bounds = array<i64: 128, 128>}, {pipeline_mode = #tpu.pipeline_mode<synchronous>, transform_indices = @transform_7, window_bounds = array<i64: 128, 128>}, {pipeline_mode = #tpu.pipeline_mode<synchronous>, transform_indices = @transform_8, window_bounds = array<i64: 1, 128>}, {pipeline_mode = #tpu.pipeline_mode<synchronous>, transform_indices = @transform_9, window_bounds = array<i64: 1, 128>}, {pipeline_mode = #tpu.pipeline_mode<synchronous>, transform_indices = @transform_10, window_bounds = array<i64: 1, 128>}, {pipeline_mode = #tpu.pipeline_mode<synchronous>, transform_indices = @transform_11, window_bounds = array<i64: 1, 128>}, {pipeline_mode = #tpu.pipeline_mode<synchronous>, transform_indices = @transform_12, window_bounds = array<i64: 1, 128>}, {pipeline_mode = #tpu.pipeline_mode<synchronous>, transform_indices = @transform_13, window_bounds = array<i64: 1, 128>}, {pipeline_mode = #tpu.pipeline_mode<synchronous>, transform_indices = @transform_14, window_bounds = array<i64: 1, 128>}, {pipeline_mode = #tpu.pipeline_mode<synchronous>, transform_indices = @transform_15, window_bounds = array<i64: 1, 128>}, {pipeline_mode = #tpu.pipeline_mode<synchronous>, transform_indices = @transform_16, window_bounds = array<i64: 1, 128>}, {pipeline_mode = #tpu.pipeline_mode<synchronous>, transform_indices = @transform_17, window_bounds = array<i64: 1, 128>}, {pipeline_mode = #tpu.pipeline_mode<synchronous>, transform_indices = @transform_18, window_bounds = array<i64: 128, 128>}, {pipeline_mode = #tpu.pipeline_mode<synchronous>, transform_indices = @transform_19, window_bounds = array<i64: 1, 128>}, {pipeline_mode = #tpu.pipeline_mode<synchronous>, transform_indices = @transform_20, window_bounds = array<i64: 128, 128>}, {pipeline_mode = #tpu.pipeline_mode<synchronous>, transform_indices = @transform_21, window_bounds = array<i64: 1, 128>}, {pipeline_mode = #tpu.pipeline_mode<synchronous>, transform_indices = @transform_22, window_bounds = array<i64: 8, 128>}]} {
    %c0_i32 = arith.constant 0 : i32
    %c0_i32_0 = arith.constant 0 : i32
    %c0_i32_1 = arith.constant 0 : i32
    %0 = tpu.memref_slice %arg1[%c0_i32_0, %c0_i32_1] : memref<128x128xbf16, #tpu.memory_space<any>> -> memref<128x128xbf16, #tpu.memory_space<any>>
    %c0_i32_2 = arith.constant 0 : i32
    %c0_i32_3 = arith.constant 0 : i32
    %1 = tpu.memref_slice %arg24[%c0_i32_2, %c0_i32_3] : memref<128x128xbf16, #tpu.memory_space<vmem>> -> memref<128x128xbf16, #tpu.memory_space<vmem>>
    %2 = tpu.memref_slice %arg26[%c0_i32] : memref<2x!tpu.dma_semaphore, #tpu.memory_space<semaphore_mem>> -> memref<1x!tpu.dma_semaphore, #tpu.memory_space<semaphore_mem>>
    %3 = tpu.memref_squeeze %2 : memref<1x!tpu.dma_semaphore, #tpu.memory_space<semaphore_mem>> -> memref<!tpu.dma_semaphore, #tpu.memory_space<semaphore_mem>>
    tpu.enqueue_dma source(%0 : memref<128x128xbf16, #tpu.memory_space<any>>) target(%1 : memref<128x128xbf16, #tpu.memory_space<vmem>>) target_semaphore(%3 : memref<!tpu.dma_semaphore, #tpu.memory_space<semaphore_mem>>)
    %c0_i32_4 = arith.constant 0 : i32
    %c1_i32 = arith.constant 1 : i32
    %4 = arith.muli %c0_i32_4, %c1_i32 : i32
    %c0_i32_5 = arith.constant 0 : i32
    %5 = arith.addi %c0_i32_5, %4 : i32
    %c2_i32 = arith.constant 2 : i32
    %c0_i32_6 = arith.constant 0 : i32
    %6 = arith.cmpi eq, %c2_i32, %c0_i32_6 : i32
    %c1_i32_7 = arith.constant 1 : i32
    %7 = arith.select %6, %c1_i32_7, %c2_i32 : i32
    %8 = arith.remsi %5, %7 : i32
    %c0_i32_8 = arith.constant 0 : i32
    %9 = arith.cmpi ne, %8, %c0_i32_8 : i32
    %c0_i32_9 = arith.constant 0 : i32
    %10 = arith.cmpi slt, %8, %c0_i32_9 : i32
    %c0_i32_10 = arith.constant 0 : i32
    %11 = arith.cmpi slt, %7, %c0_i32_10 : i32
    %12 = arith.xori %10, %11 : i1
    %13 = arith.andi %12, %9 : i1
    %14 = arith.addi %8, %7 : i32
    %15 = arith.select %13, %14, %8 : i32
    %c128_i32 = arith.constant 128 : i32
    %16 = arith.muli %5, %c128_i32 : i32
    %c128_i32_11 = arith.constant 128 : i32
    %17 = arith.muli %5, %c128_i32_11 : i32
    %c0_i32_12 = arith.constant 0 : i32
    %18 = tpu.memref_slice %arg1[%16, %c0_i32_12] : memref<128x128xbf16, #tpu.memory_space<any>> -> memref<128x128xbf16, #tpu.memory_space<any>>
    %c0_i32_13 = arith.constant 0 : i32
    %19 = tpu.memref_slice %arg24[%17, %c0_i32_13] : memref<128x128xbf16, #tpu.memory_space<vmem>> -> memref<128x128xbf16, #tpu.memory_space<vmem>>
    %20 = tpu.memref_slice %arg26[%15] : memref<2x!tpu.dma_semaphore, #tpu.memory_space<semaphore_mem>> -> memref<1x!tpu.dma_semaphore, #tpu.memory_space<semaphore_mem>>
    %21 = tpu.memref_squeeze %20 : memref<1x!tpu.dma_semaphore, #tpu.memory_space<semaphore_mem>> -> memref<!tpu.dma_semaphore, #tpu.memory_space<semaphore_mem>>
    tpu.wait_dma2 semaphore(%21 : memref<!tpu.dma_semaphore, #tpu.memory_space<semaphore_mem>>) src(%18 : memref<128x128xbf16, #tpu.memory_space<any>>) dst(%19 : memref<128x128xbf16, #tpu.memory_space<vmem>>)
    %c1_i32_14 = arith.constant 1 : i32
    %22 = arith.addi %5, %c1_i32_14 : i32
    %c1_i32_15 = arith.constant 1 : i32
    %23 = arith.cmpi slt, %22, %c1_i32_15 : i32
    %24 = arith.extui %23 : i1 to i32
    %c0_i32_16 = arith.constant 0 : i32
    %25 = arith.cmpi ne, %24, %c0_i32_16 : i32
    scf.if %25 {
      %c1_i32_103 = arith.constant 1 : i32
      %182 = arith.addi %5, %c1_i32_103 : i32
      %c1_i32_104 = arith.constant 1 : i32
      %183 = arith.subi %c1_i32_104, %15 : i32
      %c128_i32_105 = arith.constant 128 : i32
      %184 = arith.muli %182, %c128_i32_105 : i32
      %c128_i32_106 = arith.constant 128 : i32
      %185 = arith.muli %182, %c128_i32_106 : i32
      %c0_i32_107 = arith.constant 0 : i32
      %186 = tpu.memref_slice %arg1[%184, %c0_i32_107] : memref<128x128xbf16, #tpu.memory_space<any>> -> memref<128x128xbf16, #tpu.memory_space<any>>
      %c0_i32_108 = arith.constant 0 : i32
      %187 = tpu.memref_slice %arg24[%185, %c0_i32_108] : memref<128x128xbf16, #tpu.memory_space<vmem>> -> memref<128x128xbf16, #tpu.memory_space<vmem>>
      %188 = tpu.memref_slice %arg26[%183] : memref<2x!tpu.dma_semaphore, #tpu.memory_space<semaphore_mem>> -> memref<1x!tpu.dma_semaphore, #tpu.memory_space<semaphore_mem>>
      %189 = tpu.memref_squeeze %188 : memref<1x!tpu.dma_semaphore, #tpu.memory_space<semaphore_mem>> -> memref<!tpu.dma_semaphore, #tpu.memory_space<semaphore_mem>>
      tpu.enqueue_dma source(%186 : memref<128x128xbf16, #tpu.memory_space<any>>) target(%187 : memref<128x128xbf16, #tpu.memory_space<vmem>>) target_semaphore(%189 : memref<!tpu.dma_semaphore, #tpu.memory_space<semaphore_mem>>)
    } else {
    }
    %c128_i32_17 = arith.constant 128 : i32
    %26 = arith.muli %5, %c128_i32_17 : i32
    %27 = arith.index_cast %26 : i32 to index
    %c0 = arith.constant 0 : index
    %28 = vector.load %arg24[%27, %c0] : memref<128x128xbf16, #tpu.memory_space<vmem>>, vector<128x128xbf16>
    %c0_18 = arith.constant 0 : index
    %c0_19 = arith.constant 0 : index
    %29 = vector.load %arg2[%c0_18, %c0_19] : memref<128x8xbf16, #tpu.memory_space<vmem>>, vector<128x8xbf16>
    %cst = arith.constant dense<0.000000e+00> : vector<128x8xf32>
    %30 = tpu.matmul %28, %29, %cst {dimension_numbers = #tpu.dot_dimension_numbers<[1], [0], [0], [1], [0, 0, 1, 1], [], []>} : vector<128x128xbf16>, vector<128x8xbf16>, vector<128x8xf32> -> vector<128x8xf32>
    %31 = arith.truncf %30 : vector<128x8xf32> to vector<128x8xbf16>
    %c0_20 = arith.constant 0 : index
    %c0_21 = arith.constant 0 : index
    %32 = vector.load %arg4[%c0_20, %c0_21] : memref<8x128xbf16, #tpu.memory_space<vmem>>, vector<8x128xbf16>
    %cst_22 = arith.constant dense<0.000000e+00> : vector<128x128xf32>
    %33 = tpu.matmul %31, %32, %cst_22 {dimension_numbers = #tpu.dot_dimension_numbers<[1], [0], [0], [1], [0, 0, 1, 1], [], []>} : vector<128x8xbf16>, vector<8x128xbf16>, vector<128x128xf32> -> vector<128x128xf32>
    %c0_23 = arith.constant 0 : index
    %c0_24 = arith.constant 0 : index
    %34 = vector.load %arg9[%c0_23, %c0_24] : memref<1x128xf32, #tpu.memory_space<vmem>>, vector<1x128xf32>
    %35 = vector.broadcast %34 : vector<1x128xf32> to vector<128x128xf32>
    %36 = arith.mulf %33, %35 : vector<128x128xf32>
    %c0_25 = arith.constant 0 : index
    %c0_26 = arith.constant 0 : index
    %37 = vector.load %arg10[%c0_25, %c0_26] : memref<1x128xf32, #tpu.memory_space<vmem>>, vector<1x128xf32>
    %38 = vector.broadcast %37 : vector<1x128xf32> to vector<128x128xf32>
    %39 = arith.addf %36, %38 : vector<128x128xf32>
    %cst_27 = arith.constant 5.000000e-01 : f32
    %40 = vector.broadcast %cst_27 : f32 to vector<128x128xf32>
    %41 = arith.mulf %40, %39 : vector<128x128xf32>
    %cst_28 = arith.constant 0.707106769 : f32
    %42 = vector.broadcast %cst_28 : f32 to vector<128x128xf32>
    %43 = arith.mulf %39, %42 : vector<128x128xf32>
    %44 = math.erf %43 : vector<128x128xf32>
    %cst_29 = arith.constant 1.000000e+00 : f32
    %45 = vector.broadcast %cst_29 : f32 to vector<128x128xf32>
    %46 = arith.addf %45, %44 : vector<128x128xf32>
    %47 = arith.mulf %41, %46 : vector<128x128xf32>
    %48 = arith.truncf %47 : vector<128x128xf32> to vector<128x128xbf16>
    %c128_i32_30 = arith.constant 128 : i32
    %49 = arith.muli %5, %c128_i32_30 : i32
    %50 = arith.index_cast %49 : i32 to index
    %c0_31 = arith.constant 0 : index
    %51 = vector.load %arg25[%50, %c0_31] : memref<128x128xbf16, #tpu.memory_space<vmem>>, vector<128x128xbf16>
    tpu.vector_store %arg25[%50, %c0_31], %48 {strides = array<i32>} : memref<128x128xbf16, #tpu.memory_space<vmem>>, vector<128x128xbf16>,
    %c1_i32_32 = arith.constant 1 : i32
    %c0_33 = arith.constant 0 : index
    %c0_34 = arith.constant 0 : index
    %52 = vector.load %arg24[%c0_33, %c0_34] : memref<128x128xbf16, #tpu.memory_space<vmem>>, vector<128x128xbf16>
    %c0_35 = arith.constant 0 : index
    %c0_36 = arith.constant 0 : index
    %53 = vector.load %arg25[%c0_35, %c0_36] : memref<128x128xbf16, #tpu.memory_space<vmem>>, vector<128x128xbf16>
    %c0_37 = arith.constant 0 : index
    %c0_38 = arith.constant 0 : index
    %54 = vector.load %arg5[%c0_37, %c0_38] : memref<128x128xbf16, #tpu.memory_space<vmem>>, vector<128x128xbf16>
    %cst_39 = arith.constant dense<0.000000e+00> : vector<128x128xf32>
    %55 = tpu.matmul %53, %54, %cst_39 {dimension_numbers = #tpu.dot_dimension_numbers<[1], [0], [0], [1], [0, 0, 1, 1], [], []>} : vector<128x128xbf16>, vector<128x128xbf16>, vector<128x128xf32> -> vector<128x128xf32>
    %56 = arith.truncf %55 : vector<128x128xf32> to vector<128x128xbf16>
    %cst_40 = arith.constant dense<0.000000e+00> : vector<128x128xf32>
    %57 = tpu.matmul %52, %56, %cst_40 {dimension_numbers = #tpu.dot_dimension_numbers<[1], [0], [0], [1], [0, 0, 1, 1], [], []>} : vector<128x128xbf16>, vector<128x128xbf16>, vector<128x128xf32> -> vector<128x128xf32>
    %c0_41 = arith.constant 0 : index
    %c0_42 = arith.constant 0 : index
    %58 = vector.load %arg11[%c0_41, %c0_42] : memref<1x128xf32, #tpu.memory_space<vmem>>, vector<1x128xf32>
    %59 = vector.broadcast %58 : vector<1x128xf32> to vector<128x128xf32>
    %60 = arith.mulf %57, %59 : vector<128x128xf32>
    %c0_43 = arith.constant 0 : index
    %c0_44 = arith.constant 0 : index
    %61 = vector.load %arg12[%c0_43, %c0_44] : memref<1x128xf32, #tpu.memory_space<vmem>>, vector<1x128xf32>
    %62 = vector.broadcast %61 : vector<1x128xf32> to vector<128x128xf32>
    %63 = arith.addf %60, %62 : vector<128x128xf32>
    %cst_45 = arith.constant 5.000000e-01 : f32
    %64 = vector.broadcast %cst_45 : f32 to vector<128x128xf32>
    %65 = arith.mulf %64, %63 : vector<128x128xf32>
    %cst_46 = arith.constant 0.707106769 : f32
    %66 = vector.broadcast %cst_46 : f32 to vector<128x128xf32>
    %67 = arith.mulf %63, %66 : vector<128x128xf32>
    %68 = math.erf %67 : vector<128x128xf32>
    %cst_47 = arith.constant 1.000000e+00 : f32
    %69 = vector.broadcast %cst_47 : f32 to vector<128x128xf32>
    %70 = arith.addf %69, %68 : vector<128x128xf32>
    %71 = arith.mulf %65, %70 : vector<128x128xf32>
    %72 = arith.truncf %71 : vector<128x128xf32> to vector<128x128xbf16>
    %c0_48 = arith.constant 0 : index
    %c0_49 = arith.constant 0 : index
    %73 = vector.load %arg6[%c0_48, %c0_49] : memref<128x128xbf16, #tpu.memory_space<vmem>>, vector<128x128xbf16>
    %cst_50 = arith.constant dense<0.000000e+00> : vector<128x128xf32>
    %74 = tpu.matmul %72, %73, %cst_50 {dimension_numbers = #tpu.dot_dimension_numbers<[1], [0], [0], [1], [0, 0, 1, 1], [], []>} : vector<128x128xbf16>, vector<128x128xbf16>, vector<128x128xf32> -> vector<128x128xf32>
    %75 = arith.truncf %74 : vector<128x128xf32> to vector<128x128xbf16>
    %cst_51 = arith.constant dense<0.000000e+00> : vector<128x128xf32>
    %76 = tpu.matmul %52, %75, %cst_51 {dimension_numbers = #tpu.dot_dimension_numbers<[1], [0], [0], [1], [0, 0, 1, 1], [], []>} : vector<128x128xbf16>, vector<128x128xbf16>, vector<128x128xf32> -> vector<128x128xf32>
    %c0_52 = arith.constant 0 : index
    %c0_53 = arith.constant 0 : index
    %77 = vector.load %arg13[%c0_52, %c0_53] : memref<1x128xf32, #tpu.memory_space<vmem>>, vector<1x128xf32>
    %78 = vector.broadcast %77 : vector<1x128xf32> to vector<128x128xf32>
    %79 = arith.mulf %76, %78 : vector<128x128xf32>
    %c0_54 = arith.constant 0 : index
    %c0_55 = arith.constant 0 : index
    %80 = vector.load %arg14[%c0_54, %c0_55] : memref<1x128xf32, #tpu.memory_space<vmem>>, vector<1x128xf32>
    %81 = vector.broadcast %80 : vector<1x128xf32> to vector<128x128xf32>
    %82 = arith.addf %79, %81 : vector<128x128xf32>
    %cst_56 = arith.constant 5.000000e-01 : f32
    %83 = vector.broadcast %cst_56 : f32 to vector<128x128xf32>
    %84 = arith.mulf %83, %82 : vector<128x128xf32>
    %cst_57 = arith.constant 0.707106769 : f32
    %85 = vector.broadcast %cst_57 : f32 to vector<128x128xf32>
    %86 = arith.mulf %82, %85 : vector<128x128xf32>
    %87 = math.erf %86 : vector<128x128xf32>
    %cst_58 = arith.constant 1.000000e+00 : f32
    %88 = vector.broadcast %cst_58 : f32 to vector<128x128xf32>
    %89 = arith.addf %88, %87 : vector<128x128xf32>
    %90 = arith.mulf %84, %89 : vector<128x128xf32>
    %91 = arith.truncf %90 : vector<128x128xf32> to vector<128x128xbf16>
    %c0_59 = arith.constant 0 : index
    %c0_60 = arith.constant 0 : index
    %92 = vector.load %arg7[%c0_59, %c0_60] : memref<128x128xbf16, #tpu.memory_space<vmem>>, vector<128x128xbf16>
    %cst_61 = arith.constant dense<0.000000e+00> : vector<128x128xf32>
    %93 = tpu.matmul %91, %92, %cst_61 {dimension_numbers = #tpu.dot_dimension_numbers<[1], [0], [0], [1], [0, 0, 1, 1], [], []>} : vector<128x128xbf16>, vector<128x128xbf16>, vector<128x128xf32> -> vector<128x128xf32>
    %94 = arith.truncf %93 : vector<128x128xf32> to vector<128x128xbf16>
    %cst_62 = arith.constant dense<0.000000e+00> : vector<128x128xf32>
    %95 = tpu.matmul %52, %94, %cst_62 {dimension_numbers = #tpu.dot_dimension_numbers<[1], [0], [0], [1], [0, 0, 1, 1], [], []>} : vector<128x128xbf16>, vector<128x128xbf16>, vector<128x128xf32> -> vector<128x128xf32>
    %c0_63 = arith.constant 0 : index
    %c0_64 = arith.constant 0 : index
    %96 = vector.load %arg15[%c0_63, %c0_64] : memref<1x128xf32, #tpu.memory_space<vmem>>, vector<1x128xf32>
    %97 = vector.broadcast %96 : vector<1x128xf32> to vector<128x128xf32>
    %98 = arith.mulf %95, %97 : vector<128x128xf32>
    %c0_65 = arith.constant 0 : index
    %c0_66 = arith.constant 0 : index
    %99 = vector.load %arg16[%c0_65, %c0_66] : memref<1x128xf32, #tpu.memory_space<vmem>>, vector<1x128xf32>
    %100 = vector.broadcast %99 : vector<1x128xf32> to vector<128x128xf32>
    %101 = arith.addf %98, %100 : vector<128x128xf32>
    %cst_67 = arith.constant 5.000000e-01 : f32
    %102 = vector.broadcast %cst_67 : f32 to vector<128x128xf32>
    %103 = arith.mulf %102, %101 : vector<128x128xf32>
    %cst_68 = arith.constant 0.707106769 : f32
    %104 = vector.broadcast %cst_68 : f32 to vector<128x128xf32>
    %105 = arith.mulf %101, %104 : vector<128x128xf32>
    %106 = math.erf %105 : vector<128x128xf32>
    %cst_69 = arith.constant 1.000000e+00 : f32
    %107 = vector.broadcast %cst_69 : f32 to vector<128x128xf32>
    %108 = arith.addf %107, %106 : vector<128x128xf32>
    %109 = arith.mulf %103, %108 : vector<128x128xf32>
    %110 = arith.truncf %109 : vector<128x128xf32> to vector<128x128xbf16>
    %c0_70 = arith.constant 0 : index
    %c0_71 = arith.constant 0 : index
    %111 = vector.load %arg8[%c0_70, %c0_71] : memref<128x128xbf16, #tpu.memory_space<vmem>>, vector<128x128xbf16>
    %cst_72 = arith.constant dense<0.000000e+00> : vector<128x128xf32>
    %112 = tpu.matmul %110, %111, %cst_72 {dimension_numbers = #tpu.dot_dimension_numbers<[1], [0], [0], [1], [0, 0, 1, 1], [], []>} : vector<128x128xbf16>, vector<128x128xbf16>, vector<128x128xf32> -> vector<128x128xf32>
    %113 = arith.truncf %112 : vector<128x128xf32> to vector<128x128xbf16>
    %cst_73 = arith.constant dense<0.000000e+00> : vector<128x128xf32>
    %114 = tpu.matmul %52, %113, %cst_73 {dimension_numbers = #tpu.dot_dimension_numbers<[1], [0], [0], [1], [0, 0, 1, 1], [], []>} : vector<128x128xbf16>, vector<128x128xbf16>, vector<128x128xf32> -> vector<128x128xf32>
    %c0_74 = arith.constant 0 : index
    %c0_75 = arith.constant 0 : index
    %115 = vector.load %arg17[%c0_74, %c0_75] : memref<1x128xf32, #tpu.memory_space<vmem>>, vector<1x128xf32>
    %116 = vector.broadcast %115 : vector<1x128xf32> to vector<128x128xf32>
    %117 = arith.mulf %114, %116 : vector<128x128xf32>
    %c0_76 = arith.constant 0 : index
    %c0_77 = arith.constant 0 : index
    %118 = vector.load %arg18[%c0_76, %c0_77] : memref<1x128xf32, #tpu.memory_space<vmem>>, vector<1x128xf32>
    %119 = vector.broadcast %118 : vector<1x128xf32> to vector<128x128xf32>
    %120 = arith.addf %117, %119 : vector<128x128xf32>
    %cst_78 = arith.constant 5.000000e-01 : f32
    %121 = vector.broadcast %cst_78 : f32 to vector<128x128xf32>
    %122 = arith.mulf %121, %120 : vector<128x128xf32>
    %cst_79 = arith.constant 0.707106769 : f32
    %123 = vector.broadcast %cst_79 : f32 to vector<128x128xf32>
    %124 = arith.mulf %120, %123 : vector<128x128xf32>
    %125 = math.erf %124 : vector<128x128xf32>
    %cst_80 = arith.constant 1.000000e+00 : f32
    %126 = vector.broadcast %cst_80 : f32 to vector<128x128xf32>
    %127 = arith.addf %126, %125 : vector<128x128xf32>
    %128 = arith.mulf %122, %127 : vector<128x128xf32>
    %c0_81 = arith.constant 0 : index
    %c0_82 = arith.constant 0 : index
    %129 = vector.load %arg3[%c0_81, %c0_82] : memref<128x8xf32, #tpu.memory_space<vmem>>, vector<128x8xf32>
    %130 = vector.extract_strided_slice %129 {offsets = [0, 0], sizes = [128, 1], strides = [1, 1]} : vector<128x8xf32> to vector<128x1xf32>
    %131 = vector.broadcast %130 : vector<128x1xf32> to vector<128x128xf32>
    %132 = arith.addf %128, %131 : vector<128x128xf32>
    %cst_83 = arith.constant dense<0xFF800000> : vector<128xf32>
    %133 = vector.multi_reduction <maximumf>, %132, %cst_83 [0] : vector<128x128xf32> to vector<128xf32>
    %134 = vector.shape_cast %133 : vector<128xf32> to vector<1x128xf32>
    %135 = vector.extract_strided_slice %129 {offsets = [0, 1], sizes = [128, 1], strides = [1, 1]} : vector<128x8xf32> to vector<128x1xf32>
    %136 = vector.broadcast %135 : vector<128x1xf32> to vector<128x128xf32>
    %137 = arith.addf %128, %136 : vector<128x128xf32>
    %cst_84 = arith.constant dense<0xFF800000> : vector<128xf32>
    %138 = vector.multi_reduction <maximumf>, %137, %cst_84 [0] : vector<128x128xf32> to vector<128xf32>
    %139 = vector.shape_cast %138 : vector<128xf32> to vector<1x128xf32>
    %140 = vector.extract_strided_slice %129 {offsets = [0, 2], sizes = [128, 1], strides = [1, 1]} : vector<128x8xf32> to vector<128x1xf32>
    %141 = vector.broadcast %140 : vector<128x1xf32> to vector<128x128xf32>
    %142 = arith.addf %128, %141 : vector<128x128xf32>
    %cst_85 = arith.constant dense<0xFF800000> : vector<128xf32>
    %143 = vector.multi_reduction <maximumf>, %142, %cst_85 [0] : vector<128x128xf32> to vector<128xf32>
    %144 = vector.shape_cast %143 : vector<128xf32> to vector<1x128xf32>
    %145 = vector.extract_strided_slice %129 {offsets = [0, 3], sizes = [128, 1], strides = [1, 1]} : vector<128x8xf32> to vector<128x1xf32>
    %146 = vector.broadcast %145 : vector<128x1xf32> to vector<128x128xf32>
    %147 = arith.addf %128, %146 : vector<128x128xf32>
    %cst_86 = arith.constant dense<0xFF800000> : vector<128xf32>
    %148 = vector.multi_reduction <maximumf>, %147, %cst_86 [0] : vector<128x128xf32> to vector<128xf32>
    %149 = vector.shape_cast %148 : vector<128xf32> to vector<1x128xf32>
    %150 = vector.extract_strided_slice %129 {offsets = [0, 4], sizes = [128, 1], strides = [1, 1]} : vector<128x8xf32> to vector<128x1xf32>
    %151 = vector.broadcast %150 : vector<128x1xf32> to vector<128x128xf32>
    %152 = arith.addf %128, %151 : vector<128x128xf32>
    %cst_87 = arith.constant dense<0xFF800000> : vector<128xf32>
    %153 = vector.multi_reduction <maximumf>, %152, %cst_87 [0] : vector<128x128xf32> to vector<128xf32>
    %154 = vector.shape_cast %153 : vector<128xf32> to vector<1x128xf32>
    %155 = vector.extract_strided_slice %129 {offsets = [0, 5], sizes = [128, 1], strides = [1, 1]} : vector<128x8xf32> to vector<128x1xf32>
    %156 = vector.broadcast %155 : vector<128x1xf32> to vector<128x128xf32>
    %157 = arith.addf %128, %156 : vector<128x128xf32>
    %cst_88 = arith.constant dense<0xFF800000> : vector<128xf32>
    %158 = vector.multi_reduction <maximumf>, %157, %cst_88 [0] : vector<128x128xf32> to vector<128xf32>
    %159 = vector.shape_cast %158 : vector<128xf32> to vector<1x128xf32>
    %160 = vector.extract_strided_slice %129 {offsets = [0, 6], sizes = [128, 1], strides = [1, 1]} : vector<128x8xf32> to vector<128x1xf32>
    %161 = vector.broadcast %160 : vector<128x1xf32> to vector<128x128xf32>
    %162 = arith.addf %128, %161 : vector<128x128xf32>
    %cst_89 = arith.constant dense<0xFF800000> : vector<128xf32>
    %163 = vector.multi_reduction <maximumf>, %162, %cst_89 [0] : vector<128x128xf32> to vector<128xf32>
    %164 = vector.shape_cast %163 : vector<128xf32> to vector<1x128xf32>
    %165 = vector.extract_strided_slice %129 {offsets = [0, 7], sizes = [128, 1], strides = [1, 1]} : vector<128x8xf32> to vector<128x1xf32>
    %166 = vector.broadcast %165 : vector<128x1xf32> to vector<128x128xf32>
    %167 = arith.addf %128, %166 : vector<128x128xf32>
    %cst_90 = arith.constant dense<0xFF800000> : vector<128xf32>
    %168 = vector.multi_reduction <maximumf>, %167, %cst_90 [0] : vector<128x128xf32> to vector<128xf32>
    %169 = vector.shape_cast %168 : vector<128xf32> to vector<1x128xf32>
    %170 = tpu.concatenate %134, %139, %144, %149, %154, %159, %164, %169 in 0 : vector<1x128xf32>, vector<1x128xf32>, vector<1x128xf32>, vector<1x128xf32>, vector<1x128xf32>, vector<1x128xf32>, vector<1x128xf32>, vector<1x128xf32> -> vector<8x128xf32>
    %c0_91 = arith.constant 0 : index
    %c0_92 = arith.constant 0 : index
    %171 = vector.load %arg19[%c0_91, %c0_92] : memref<128x128xf32, #tpu.memory_space<vmem>>, vector<128x128xf32>
    %cst_93 = arith.constant dense<0.000000e+00> : vector<8x128xf32>
    %172 = tpu.matmul %170, %171, %cst_93 {dimension_numbers = #tpu.dot_dimension_numbers<[1], [0], [0], [1], [0, 0, 1, 1], [], []>} : vector<8x128xf32>, vector<128x128xf32>, vector<8x128xf32> -> vector<8x128xf32>
    %c0_94 = arith.constant 0 : index
    %c0_95 = arith.constant 0 : index
    %173 = vector.load %arg20[%c0_94, %c0_95] : memref<1x128xf32, #tpu.memory_space<vmem>>, vector<1x128xf32>
    %174 = vector.broadcast %173 : vector<1x128xf32> to vector<8x128xf32>
    %175 = arith.addf %172, %174 : vector<8x128xf32>
    %c0_96 = arith.constant 0 : index
    %c0_97 = arith.constant 0 : index
    %176 = vector.load %arg21[%c0_96, %c0_97] : memref<128x128xf32, #tpu.memory_space<vmem>>, vector<128x128xf32>
    %cst_98 = arith.constant dense<0.000000e+00> : vector<8x128xf32>
    %177 = tpu.matmul %175, %176, %cst_98 {dimension_numbers = #tpu.dot_dimension_numbers<[1], [0], [0], [1], [0, 0, 1, 1], [], []>} : vector<8x128xf32>, vector<128x128xf32>, vector<8x128xf32> -> vector<8x128xf32>
    %c0_99 = arith.constant 0 : index
    %c0_100 = arith.constant 0 : index
    %178 = vector.load %arg22[%c0_99, %c0_100] : memref<1x128xf32, #tpu.memory_space<vmem>>, vector<1x128xf32>
    %179 = vector.broadcast %178 : vector<1x128xf32> to vector<8x128xf32>
    %180 = arith.addf %177, %179 : vector<8x128xf32>
    %c0_101 = arith.constant 0 : index
    %c0_102 = arith.constant 0 : index
    %181 = vector.load %arg23[%c0_101, %c0_102] : memref<8x128xf32, #tpu.memory_space<vmem>>, vector<8x128xf32>
    tpu.vector_store %arg23[%c0_101, %c0_102], %180 {strides = array<i32>} : memref<8x128xf32, #tpu.memory_space<vmem>>, vector<8x128xf32>,
    return
  }
  func.func @transform_1(%arg0: i32) -> (i32, i32) {
    %c0_i32 = arith.constant 0 : i32
    %c0_i32_0 = arith.constant 0 : i32
    %c0_i32_1 = arith.constant 0 : i32
    return %c0_i32, %c0_i32_0 : i32, i32
  }
  func.func @transform_2(%arg0: i32) -> (i32, i32) {
    %c0_i32 = arith.constant 0 : i32
    %c0_i32_0 = arith.constant 0 : i32
    %c0_i32_1 = arith.constant 0 : i32
    return %c0_i32, %c0_i32_0 : i32, i32
  }
  func.func @transform_3(%arg0: i32) -> (i32, i32) {
    %c0_i32 = arith.constant 0 : i32
    %c0_i32_0 = arith.constant 0 : i32
    %c0_i32_1 = arith.constant 0 : i32
    return %c0_i32, %c0_i32_0 : i32, i32
  }
  func.func @transform_4(%arg0: i32) -> (i32, i32) {
    %c0_i32 = arith.constant 0 : i32
    %c0_i32_0 = arith.constant 0 : i32
    %c0_i32_1 = arith.constant 0 : i32
    return %c0_i32, %c0_i32_0 : i32, i32
  }
  func.func @transform_5(%arg0: i32) -> (i32, i32) {
    %c0_i32 = arith.constant 0 : i32
    %c0_i32_0 = arith.constant 0 : i32
    %c0_i32_1 = arith.constant 0 : i32
    return %c0_i32, %c0_i32_0 : i32, i32
  }
  func.func @transform_6(%arg0: i32) -> (i32, i32) {
    %c0_i32 = arith.constant 0 : i32
    %c0_i32_0 = arith.constant 0 : i32
    %c0_i32_1 = arith.constant 0 : i32
    return %c0_i32, %c0_i32_0 : i32, i32
  }
  func.func @transform_7(%arg0: i32) -> (i32, i32) {
    %c0_i32 = arith.constant 0 : i32
    %c0_i32_0 = arith.constant 0 : i32
    %c0_i32_1 = arith.constant 0 : i32
    return %c0_i32, %c0_i32_0 : i32, i32
  }
  func.func @transform_8(%arg0: i32) -> (i32, i32) {
    %c0_i32 = arith.constant 0 : i32
    %c0_i32_0 = arith.constant 0 : i32
    %c0_i32_1 = arith.constant 0 : i32
    return %c0_i32, %c0_i32_0 : i32, i32
  }
  func.func @transform_9(%arg0: i32) -> (i32, i32) {
    %c0_i32 = arith.constant 0 : i32
    %c0_i32_0 = arith.constant 0 : i32
    %c0_i32_1 = arith.constant 0 : i32
    return %c0_i32, %c0_i32_0 : i32, i32
  }
  func.func @transform_10(%arg0: i32) -> (i32, i32) {
    %c0_i32 = arith.constant 0 : i32
    %c0_i32_0 = arith.constant 0 : i32
    %c0_i32_1 = arith.constant 0 : i32
    return %c0_i32, %c0_i32_0 : i32, i32
  }
  func.func @transform_11(%arg0: i32) -> (i32, i32) {
    %c0_i32 = arith.constant 0 : i32
    %c0_i32_0 = arith.constant 0 : i32
    %c0_i32_1 = arith.constant 0 : i32
    return %c0_i32, %c0_i32_0 : i32, i32
  }
  func.func @transform_12(%arg0: i32) -> (i32, i32) {
    %c0_i32 = arith.constant 0 : i32
    %c0_i32_0 = arith.constant 0 : i32
    %c0_i32_1 = arith.constant 0 : i32
    return %c0_i32, %c0_i32_0 : i32, i32
  }
  func.func @transform_13(%arg0: i32) -> (i32, i32) {
    %c0_i32 = arith.constant 0 : i32
    %c0_i32_0 = arith.constant 0 : i32
    %c0_i32_1 = arith.constant 0 : i32
    return %c0_i32, %c0_i32_0 : i32, i32
  }
  func.func @transform_14(%arg0: i32) -> (i32, i32) {
    %c0_i32 = arith.constant 0 : i32
    %c0_i32_0 = arith.constant 0 : i32
    %c0_i32_1 = arith.constant 0 : i32
    return %c0_i32, %c0_i32_0 : i32, i32
  }
  func.func @transform_15(%arg0: i32) -> (i32, i32) {
    %c0_i32 = arith.constant 0 : i32
    %c0_i32_0 = arith.constant 0 : i32
    %c0_i32_1 = arith.constant 0 : i32
    return %c0_i32, %c0_i32_0 : i32, i32
  }
  func.func @transform_16(%arg0: i32) -> (i32, i32) {
    %c0_i32 = arith.constant 0 : i32
    %c0_i32_0 = arith.constant 0 : i32
    %c0_i32_1 = arith.constant 0 : i32
    return %c0_i32, %c0_i32_0 : i32, i32
  }
  func.func @transform_17(%arg0: i32) -> (i32, i32) {
    %c0_i32 = arith.constant 0 : i32
    %c0_i32_0 = arith.constant 0 : i32
    %c0_i32_1 = arith.constant 0 : i32
    return %c0_i32, %c0_i32_0 : i32, i32
  }
  func.func @transform_18(%arg0: i32) -> (i32, i32) {
    %c0_i32 = arith.constant 0 : i32
    %c0_i32_0 = arith.constant 0 : i32
    %c0_i32_1 = arith.constant 0 : i32
    return %c0_i32, %c0_i32_0 : i32, i32
  }
  func.func @transform_19(%arg0: i32) -> (i32, i32) {
    %c0_i32 = arith.constant 0 : i32
    %c0_i32_0 = arith.constant 0 : i32
    %c0_i32_1 = arith.constant 0 : i32
    return %c0_i32, %c0_i32_0 : i32, i32
  }
  func.func @transform_20(%arg0: i32) -> (i32, i32) {
    %c0_i32 = arith.constant 0 : i32
    %c0_i32_0 = arith.constant 0 : i32
    %c0_i32_1 = arith.constant 0 : i32
    return %c0_i32, %c0_i32_0 : i32, i32
  }
  func.func @transform_21(%arg0: i32) -> (i32, i32) {
    %c0_i32 = arith.constant 0 : i32
    %c0_i32_0 = arith.constant 0 : i32
    %c0_i32_1 = arith.constant 0 : i32
    return %c0_i32, %c0_i32_0 : i32, i32
  }
  func.func @transform_22(%arg0: i32) -> (i32, i32) {
    %c0_i32 = arith.constant 0 : i32
    %c0_i32_0 = arith.constant 0 : i32
    %c0_i32_1 = arith.constant 0 : i32
    return %c0_i32, %c0_i32_0 : i32, i32
  }
}

</mosaic_0001>

<llo_original>
// kernel: gcn_forward.1
$region0: #{gcn_forward.1}
  #allocation0 [shape = 'u32[]', space=smem, size = 0x4, offset = 0x4, fixed_abs, tag = 'smem constant byte address 0x4 - core index']
  #allocation1 [shape = 'u32[144,128]{1,0:T(1,128)}', space=vmem, size = 0x12000, scoped, tag = 'internal scratch']
  #allocation2 [shape = 'bf16[128,128]{1,0:T(8,128)(2,1)}', space=vmem, size = 0x8000, scoped, tag = 'scratch operand']
  #allocation3 [shape = 'bf16[128,128]{1,0:T(8,128)(2,1)}', space=vmem, size = 0x8000, scoped, tag = 'scratch operand']
  #allocation4 [shape = 's32[2]{0}', space=sflag, size = 0x8, scoped, tag = 'scratch operand']
  #allocation5 [shape = 's32[]', space=sflag, size = 0x4, offset = 0, fixed_abs, tag = 'sflag constant byte address 0x0 - dummy sync flag']
  %s0 = inlined_call_operand.vmem [shape: bf16[128,128], index: 0, kind: input, shape index: {}]
  %s1 = inlined_call_operand.vmem [shape: bf16[128,8], index: 1, kind: input, shape index: {}]
  %s2 = inlined_call_operand.vmem [shape: f32[128,8], index: 2, kind: input, shape index: {}]
  %s3 = inlined_call_operand.vmem [shape: bf16[8,128], index: 3, kind: input, shape index: {}]
  %s4 = inlined_call_operand.vmem [shape: bf16[128,128], index: 4, kind: input, shape index: {}]
  %s5 = inlined_call_operand.vmem [shape: bf16[128,128], index: 5, kind: input, shape index: {}]
  %s6 = inlined_call_operand.vmem [shape: bf16[128,128], index: 6, kind: input, shape index: {}]
  %s7 = inlined_call_operand.vmem [shape: bf16[128,128], index: 7, kind: input, shape index: {}]
  %s8 = inlined_call_operand.vmem [shape: f32[1,128], index: 8, kind: input, shape index: {}]
  %s9 = inlined_call_operand.vmem [shape: f32[1,128], index: 9, kind: input, shape index: {}]
  %s10 = inlined_call_operand.vmem [shape: f32[1,128], index: 10, kind: input, shape index: {}]
  %s11 = inlined_call_operand.vmem [shape: f32[1,128], index: 11, kind: input, shape index: {}]
  %s12 = inlined_call_operand.vmem [shape: f32[1,128], index: 12, kind: input, shape index: {}]
  %s13 = inlined_call_operand.vmem [shape: f32[1,128], index: 13, kind: input, shape index: {}]
  %s14 = inlined_call_operand.vmem [shape: f32[1,128], index: 14, kind: input, shape index: {}]
  %s15 = inlined_call_operand.vmem [shape: f32[1,128], index: 15, kind: input, shape index: {}]
  %s16 = inlined_call_operand.vmem [shape: f32[1,128], index: 16, kind: input, shape index: {}]
  %s17 = inlined_call_operand.vmem [shape: f32[1,128], index: 17, kind: input, shape index: {}]
  %s18 = inlined_call_operand.vmem [shape: f32[128,128], index: 18, kind: input, shape index: {}]
  %s19 = inlined_call_operand.vmem [shape: f32[1,128], index: 19, kind: input, shape index: {}]
  %s20 = inlined_call_operand.vmem [shape: f32[128,128], index: 20, kind: input, shape index: {}]
  %s21 = inlined_call_operand.vmem [shape: f32[1,128], index: 21, kind: input, shape index: {}]
  %s22 = inlined_call_operand.vmem [shape: f32[8,128], index: 22, kind: output, shape index: {}]
  %s23 = sld [smem:[#allocation0]]
  $region128: #{gcn_forward.1} parent=0
    _
  %s25 = ssub.s32 1, %s23
  %s26 = scalar_select 0, %s25, %s23
  // Predicated region
  $region2: #{gcn_forward.1} parent=0 // pred_check
    _
  $region3: #{gcn_forward.1} parent=0 // pred_check_branch
    %28 = sbr.rel (0) target = $region5
  $region4: #{gcn_forward.1} parent=0 // pred_region
    _
  $region5: #{gcn_forward.1} parent=0 // pred_fallthru
    _
  // Predicated region
  $region6: #{gcn_forward.1} parent=0 // pred_check
    _
  $region7: #{gcn_forward.1} parent=0 // pred_check_branch
    %30 = sbr.rel (0) target = $region9
  $region8: #{gcn_forward.1} parent=0 // pred_region
    _
  $region9: #{gcn_forward.1} parent=0 // pred_fallthru
    _
  // Predicated region
  $region10: #{gcn_forward.1} parent=0 // pred_check
    _
  $region11: #{gcn_forward.1} parent=0 // pred_check_branch
    %32 = sbr.rel (0) target = $region13
  $region12: #{gcn_forward.1} parent=0 // pred_region
    _
  $region13: #{gcn_forward.1} parent=0 // pred_fallthru
    _
  // Predicated region
  $region14: #{gcn_forward.1} parent=0 // pred_check
    _
  $region15: #{gcn_forward.1} parent=0 // pred_check_branch
    %34 = sbr.rel (0) target = $region17
  $region16: #{gcn_forward.1} parent=0 // pred_region
    _
  $region17: #{gcn_forward.1} parent=0 // pred_fallthru
    _
  // Predicated region
  $region18: #{gcn_forward.1} parent=0 // pred_check
    _
  $region19: #{gcn_forward.1} parent=0 // pred_check_branch
    %36 = sbr.rel (0) target = $region21
  $region20: #{gcn_forward.1} parent=0 // pred_region
    _
  $region21: #{gcn_forward.1} parent=0 // pred_fallthru
    _
  // Predicated region
  $region22: #{gcn_forward.1} parent=0 // pred_check
    _
  $region23: #{gcn_forward.1} parent=0 // pred_check_branch
    %38 = sbr.rel (0) target = $region25
  $region24: #{gcn_forward.1} parent=0 // pred_region
    _
  $region25: #{gcn_forward.1} parent=0 // pred_fallthru
    _
  // Predicated region
  $region26: #{gcn_forward.1} parent=0 // pred_check
    _
  $region27: #{gcn_forward.1} parent=0 // pred_check_branch
    %40 = sbr.rel (0) target = $region29
  $region28: #{gcn_forward.1} parent=0 // pred_region
    _
  $region29: #{gcn_forward.1} parent=0 // pred_fallthru
    _
  // Predicated region
  $region30: #{gcn_forward.1} parent=0 // pred_check
    _
  $region31: #{gcn_forward.1} parent=0 // pred_check_branch
    %42 = sbr.rel (0) target = $region33
  $region32: #{gcn_forward.1} parent=0 // pred_region
    _
  $region33: #{gcn_forward.1} parent=0 // pred_fallthru
    _
  // Predicated region
  $region34: #{gcn_forward.1} parent=0 // pred_check
    _
  $region35: #{gcn_forward.1} parent=0 // pred_check_branch
    %44 = sbr.rel (0) target = $region37
  $region36: #{gcn_forward.1} parent=0 // pred_region
    _
  $region37: #{gcn_forward.1} parent=0 // pred_fallthru
    _
  // Predicated region
  $region38: #{gcn_forward.1} parent=0 // pred_check
    _
  $region39: #{gcn_forward.1} parent=0 // pred_check_branch
    %46 = sbr.rel (0) target = $region41
  $region40: #{gcn_forward.1} parent=0 // pred_region
    _
  $region41: #{gcn_forward.1} parent=0 // pred_fallthru
    _
  // Predicated region
  $region42: #{gcn_forward.1} parent=0 // pred_check
    _
  $region43: #{gcn_forward.1} parent=0 // pred_check_branch
    %48 = sbr.rel (0) target = $region45
  $region44: #{gcn_forward.1} parent=0 // pred_region
    _
  $region45: #{gcn_forward.1} parent=0 // pred_fallthru
    _
  // Predicated region
  $region46: #{gcn_forward.1} parent=0 // pred_check
    _
  $region47: #{gcn_forward.1} parent=0 // pred_check_branch
    %50 = sbr.rel (0) target = $region49
  $region48: #{gcn_forward.1} parent=0 // pred_region
    _
  $region49: #{gcn_forward.1} parent=0 // pred_fallthru
    _
  // Predicated region
  $region50: #{gcn_forward.1} parent=0 // pred_check
    _
  $region51: #{gcn_forward.1} parent=0 // pred_check_branch
    %52 = sbr.rel (0) target = $region53
  $region52: #{gcn_forward.1} parent=0 // pred_region
    _
  $region53: #{gcn_forward.1} parent=0 // pred_fallthru
    _
  // Predicated region
  $region54: #{gcn_forward.1} parent=0 // pred_check
    _
  $region55: #{gcn_forward.1} parent=0 // pred_check_branch
    %54 = sbr.rel (0) target = $region57
  $region56: #{gcn_forward.1} parent=0 // pred_region
    _
  $region57: #{gcn_forward.1} parent=0 // pred_fallthru
    _
  // Predicated region
  $region58: #{gcn_forward.1} parent=0 // pred_check
    _
  $region59: #{gcn_forward.1} parent=0 // pred_check_branch
    %56 = sbr.rel (0) target = $region61
  $region60: #{gcn_forward.1} parent=0 // pred_region
    _
  $region61: #{gcn_forward.1} parent=0 // pred_fallthru
    _
  // Predicated region
  $region62: #{gcn_forward.1} parent=0 // pred_check
    _
  $region63: #{gcn_forward.1} parent=0 // pred_check_branch
    %58 = sbr.rel (0) target = $region65
  $region64: #{gcn_forward.1} parent=0 // pred_region
    _
  $region65: #{gcn_forward.1} parent=0 // pred_fallthru
    _
  // Predicated region
  $region66: #{gcn_forward.1} parent=0 // pred_check
    _
  $region67: #{gcn_forward.1} parent=0 // pred_check_branch
    %60 = sbr.rel (0) target = $region69
  $region68: #{gcn_forward.1} parent=0 // pred_region
    _
  $region69: #{gcn_forward.1} parent=0 // pred_fallthru
    _
  // Predicated region
  $region70: #{gcn_forward.1} parent=0 // pred_check
    _
  $region71: #{gcn_forward.1} parent=0 // pred_check_branch
    %62 = sbr.rel (0) target = $region73
  $region72: #{gcn_forward.1} parent=0 // pred_region
    _
  $region73: #{gcn_forward.1} parent=0 // pred_fallthru
    _
  // Predicated region
  $region74: #{gcn_forward.1} parent=0 // pred_check
    _
  $region75: #{gcn_forward.1} parent=0 // pred_check_branch
    %64 = sbr.rel (0) target = $region77
  $region76: #{gcn_forward.1} parent=0 // pred_region
    _
  $region77: #{gcn_forward.1} parent=0 // pred_fallthru
    _
  // Predicated region
  $region78: #{gcn_forward.1} parent=0 // pred_check
    _
  $region79: #{gcn_forward.1} parent=0 // pred_check_branch
    %66 = sbr.rel (0) target = $region81
  $region80: #{gcn_forward.1} parent=0 // pred_region
    _
  $region81: #{gcn_forward.1} parent=0 // pred_fallthru
    _
  // Predicated region
  $region82: #{gcn_forward.1} parent=0 // pred_check
    _
  $region83: #{gcn_forward.1} parent=0 // pred_check_branch
    %68 = sbr.rel (0) target = $region85
  $region84: #{gcn_forward.1} parent=0 // pred_region
    _
  $region85: #{gcn_forward.1} parent=0 // pred_fallthru
    _
  %p71 = scmp.lt.u32.totalorder 64, 8
  %p72 = pneg %p71
  // Predicated region
  $region86: #{gcn_forward.1} parent=0 // pred_check
    _
  $region87: #{gcn_forward.1} parent=0 // pred_check_branch
    %74 = sbr.rel (%p71) target = $region89
  $region88: #{gcn_forward.1} parent=0 // pred_region
    %s90 = sand.u32 64, 7
    %p91 = scmp.eq.s32.totalorder %s90, 0
    // Predicated region
    $region101: #{gcn_forward.1} parent=88 // pred_check
      %p92 = pneg %p91
    $region102: #{gcn_forward.1} parent=88 // pred_check_branch
      %94 = sbr.rel (%p92) target = $region104
    $region103: #{gcn_forward.1} parent=88 // pred_region
      loop: start=0, step=1, limit=1
      $region105: #{gcn_forward.1} parent=103 // loop_pre_header
        _
      $region106: #{gcn_forward.1} parent=103 // loop_header
        %s96 = sphi 0, %s100
        %p97 = scmp.ge.s32.totalorder %s96, 1
        %s101 = sphi %s0, %s0
        %s102 = sphi [#allocation2], [#allocation2]
      $region107: #{gcn_forward.1} parent=103 // loop_header_branch
        %99 = sbr.rel (%p97) target = $region111
      $region108: #{gcn_forward.1} parent=103 // loop_body
        %v103 = vld [vmem:[%s101] sm:$0xff]
        %104 = vst [vmem:[%s102] sm:$0xff] %v103
        %v105 = vld [vmem:[%s101 + $0x8] sm:$0xff]
        %106 = vst [vmem:[%s102 + $0x8] sm:$0xff] %v105
        %v107 = vld [vmem:[%s101 + $0x10] sm:$0xff]
        %108 = vst [vmem:[%s102 + $0x10] sm:$0xff] %v107
        %v109 = vld [vmem:[%s101 + $0x18] sm:$0xff]
        %110 = vst [vmem:[%s102 + $0x18] sm:$0xff] %v109
        %v111 = vld [vmem:[%s101 + $0x20] sm:$0xff]
        %112 = vst [vmem:[%s102 + $0x20] sm:$0xff] %v111
        %v113 = vld [vmem:[%s101 + $0x28] sm:$0xff]
        %114 = vst [vmem:[%s102 + $0x28] sm:$0xff] %v113
        %v115 = vld [vmem:[%s101 + $0x30] sm:$0xff]
        %116 = vst [vmem:[%s102 + $0x30] sm:$0xff] %v115
        %v117 = vld [vmem:[%s101 + $0x38] sm:$0xff]
        %118 = vst [vmem:[%s102 + $0x38] sm:$0xff] %v117
      $region109: #{gcn_forward.1} parent=103 // loop_footer
        %s100 = sadd.s32 1, %s96
      $region110: #{gcn_forward.1} parent=103 // loop_footer_branch
        %95 = sbr.rel target = $region106
      $region111: #{gcn_forward.1} parent=103 // loop_exit
        _
    $region104: #{gcn_forward.1} parent=88 // pred_fallthru
      _
    %p119 = pneg %p91
    // Predicated region
    $region112: #{gcn_forward.1} parent=88 // pred_check
      _
    $region113: #{gcn_forward.1} parent=88 // pred_check_branch
      %121 = sbr.rel (%p91) target = $region115
    $region114: #{gcn_forward.1} parent=88 // pred_region
      %s122 = sand.u32 64, 7
    $region115: #{gcn_forward.1} parent=88 // pred_fallthru
      _
  $region89: #{gcn_forward.1} parent=0 // pred_fallthru
    _
  // Predicated region
  $region90: #{gcn_forward.1} parent=0 // pred_check
    %p75 = pneg %p71
  $region91: #{gcn_forward.1} parent=0 // pred_check_branch
    %77 = sbr.rel (%p75) target = $region93
  $region92: #{gcn_forward.1} parent=0 // pred_region
    %s78 = sshll.u32 1, 64
    %s79 = ssub.s32 %s78, 1
    loop: start=0, step=1, limit=1
    $region94: #{gcn_forward.1} parent=92 // loop_pre_header
      _
    $region95: #{gcn_forward.1} parent=92 // loop_header
      %s81 = sphi 0, %s85
      %p82 = scmp.ge.s32.totalorder %s81, 1
      %s86 = sphi %s0, %s0
      %s87 = sphi [#allocation2], [#allocation2]
    $region96: #{gcn_forward.1} parent=92 // loop_header_branch
      %84 = sbr.rel (%p82) target = $region100
    $region97: #{gcn_forward.1} parent=92 // loop_body
      %v88 = vld [vmem:[%s86] sm:%s79]
      %89 = vst [vmem:[%s87] sm:%s79] %v88
    $region98: #{gcn_forward.1} parent=92 // loop_footer
      %s85 = sadd.s32 1, %s81
    $region99: #{gcn_forward.1} parent=92 // loop_footer_branch
      %80 = sbr.rel target = $region95
    $region100: #{gcn_forward.1} parent=92 // loop_exit
      _
  $region93: #{gcn_forward.1} parent=0 // pred_fallthru
    _
  // Predicated region
  $region116: #{gcn_forward.1} parent=0 // pred_check
    _
  $region117: #{gcn_forward.1} parent=0 // pred_check_branch
    %125 = sbr.rel (0) target = $region119
  $region118: #{gcn_forward.1} parent=0 // pred_region
    %126 = vsyncadd [#allocation4], 1024
  $region119: #{gcn_forward.1} parent=0 // pred_fallthru
    _
  %s127 = smul.u32 4, 16
  %s128 = smul.u32 %s127, 1
  %s129 = sshll.u32 %s128, 4
  %130 = dma.done [#allocation4], %s129
  %v131 = vld [vmem:[#allocation2] sm:$0xf]
  %v132 = vld [vmem:[#allocation2 + $0x4] sm:$0xf]
  %v133 = vld [vmem:[#allocation2 + $0x8] sm:$0xf]
  %v134 = vld [vmem:[#allocation2 + $0xc] sm:$0xf]
  %v135 = vld [vmem:[#allocation2 + $0x10] sm:$0xf]
  %v136 = vld [vmem:[#allocation2 + $0x14] sm:$0xf]
  %v137 = vld [vmem:[#allocation2 + $0x18] sm:$0xf]
  %v138 = vld [vmem:[#allocation2 + $0x1c] sm:$0xf]
  %v139 = vld [vmem:[#allocation2 + $0x20] sm:$0xf]
  %v140 = vld [vmem:[#allocation2 + $0x24] sm:$0xf]
  %v141 = vld [vmem:[#allocation2 + $0x28] sm:$0xf]
  %v142 = vld [vmem:[#allocation2 + $0x2c] sm:$0xf]
  %v143 = vld [vmem:[#allocation2 + $0x30] sm:$0xf]
  %v144 = vld [vmem:[#allocation2 + $0x34] sm:$0xf]
  %v145 = vld [vmem:[#allocation2 + $0x38] sm:$0xf]
  %v146 = vld [vmem:[#allocation2 + $0x3c] sm:$0xf]
  %v147 = vld [vmem:[%s1] sm:$0xf]
  %v148 = vld [vmem:[%s1 + $0x4] sm:$0xf]
  %v149 = vld [vmem:[%s1 + $0x8] sm:$0xf]
  %v150 = vld [vmem:[%s1 + $0xc] sm:$0xf]
  %v151 = vld [vmem:[%s1 + $0x10] sm:$0xf]
  %v152 = vld [vmem:[%s1 + $0x14] sm:$0xf]
  %v153 = vld [vmem:[%s1 + $0x18] sm:$0xf]
  %v154 = vld [vmem:[%s1 + $0x1c] sm:$0xf]
  %v155 = vld [vmem:[%s1 + $0x20] sm:$0xf]
  %v156 = vld [vmem:[%s1 + $0x24] sm:$0xf]
  %v157 = vld [vmem:[%s1 + $0x28] sm:$0xf]
  %v158 = vld [vmem:[%s1 + $0x2c] sm:$0xf]
  %v159 = vld [vmem:[%s1 + $0x30] sm:$0xf]
  %v160 = vld [vmem:[%s1 + $0x34] sm:$0xf]
  %v161 = vld [vmem:[%s1 + $0x38] sm:$0xf]
  %v162 = vld [vmem:[%s1 + $0x3c] sm:$0xf]
  %v179 = vunpack.c.l.b16 %v131
  %v180 = vunpack.c.l.b16 %v132
  %v181 = vunpack.c.l.b16 %v133
  %v182 = vunpack.c.l.b16 %v134
  %v183 = vunpack.c.l.b16 %v135
  %v184 = vunpack.c.l.b16 %v136
  %v185 = vunpack.c.l.b16 %v137
  %v186 = vunpack.c.l.b16 %v138
  %v187 = vunpack.c.l.b16 %v139
  %v188 = vunpack.c.l.b16 %v140
  %v189 = vunpack.c.l.b16 %v141
  %v190 = vunpack.c.l.b16 %v142
  %v191 = vunpack.c.l.b16 %v143
  %v192 = vunpack.c.l.b16 %v144
  %v193 = vunpack.c.l.b16 %v145
  %v194 = vunpack.c.l.b16 %v146
  %v195 = vpack.c.b16 %v180, %v179
  %v196 = vpack.c.b16 %v182, %v181
  %v197 = vpack.c.b16 %v184, %v183
  %v198 = vpack.c.b16 %v186, %v185
  %v199 = vpack.c.b16 %v188, %v187
  %v200 = vpack.c.b16 %v190, %v189
  %v201 = vpack.c.b16 %v192, %v191
  %v202 = vpack.c.b16 %v194, %v193
  %v227 = vunpack.c.l.b16 %v147
  %v228 = vunpack.c.l.b16 %v148
  %v229 = vunpack.c.l.b16 %v149
  %v230 = vunpack.c.l.b16 %v150
  %v231 = vunpack.c.l.b16 %v151
  %v232 = vunpack.c.l.b16 %v152
  %v233 = vunpack.c.l.b16 %v153
  %v234 = vunpack.c.l.b16 %v154
  %v235 = vunpack.c.l.b16 %v155
  %v236 = vunpack.c.l.b16 %v156
  %v237 = vunpack.c.l.b16 %v157
  %v238 = vunpack.c.l.b16 %v158
  %v239 = vunpack.c.l.b16 %v159
  %v240 = vunpack.c.l.b16 %v160
  %v241 = vunpack.c.l.b16 %v161
  %v242 = vunpack.c.l.b16 %v162
  %v243 = vpack.c.b16 %v228, %v227
  %v244 = vpack.c.b16 %v230, %v229
  %v245 = vpack.c.b16 %v232, %v231
  %v246 = vpack.c.b16 %v234, %v233
  %v247 = vpack.c.b16 %v236, %v235
  %v248 = vpack.c.b16 %v238, %v237
  %v249 = vpack.c.b16 %v240, %v239
  %v250 = vpack.c.b16 %v242, %v241
  %259 = vmatprep.subr.bf16.mxu0 0
  %260 = vmatpush1.bf16.msra.mxu0 %v250
  %261 = vmatprep.subr.bf16.mxu0 0
  %262 = vmatpush1.bf16.msra.mxu0 %v249
  %263 = vmatprep.subr.bf16.mxu0 0
  %264 = vmatpush1.bf16.msra.mxu0 %v248
  %265 = vmatprep.subr.bf16.mxu0 0
  %266 = vmatpush1.bf16.msra.mxu0 %v247
  %267 = vmatprep.subr.bf16.mxu0 0
  %268 = vmatpush1.bf16.msra.mxu0 %v246
  %269 = vmatprep.subr.bf16.mxu0 0
  %270 = vmatpush1.bf16.msra.mxu0 %v245
  %271 = vmatprep.subr.bf16.mxu0 0
  %272 = vmatpush1.bf16.msra.mxu0 %v244
  %273 = vmatprep.subr.bf16.mxu0 0
  %274 = vmatpush1.bf16.msra.mxu0 %v243
  %275 = vmatprep.subr.bf16.mxu0 0
  %276 = vmatpush2.bf16.msra.mxu0 0
  %277 = vmatprep.subr.bf16.mxu0 0
  %278 = vmatpush2.bf16.msra.mxu0 0
  %279 = vmatprep.subr.bf16.mxu0 0
  %280 = vmatpush2.bf16.msra.mxu0 0
  %281 = vmatprep.subr.bf16.mxu0 0
  %282 = vmatpush2.bf16.msra.mxu0 0
  %283 = vmatprep.subr.bf16.mxu0 0
  %284 = vmatpush2.bf16.msra.mxu0 0
  %285 = vmatprep.subr.bf16.mxu0 0
  %286 = vmatpush2.bf16.msra.mxu0 0
  %287 = vmatprep.subr.bf16.mxu0 0
  %288 = vmatpush2.bf16.msra.mxu0 0
  %289 = vmatprep.subr.bf16.mxu0 0
  %290 = vmatpush2.bf16.msra.mxu0 0
  %291 = vmatprep.mubr.bf16.mxu0 0
  %292 = vmatmul.mubr.bf16.gmra.mxu0 %v195
  %v293 = vpop.f32.mrf.mxu0
  %v294 = vadd.f32 0.0, %v293
  %v295 = vpop.f32.mrf.mxu0
  %v296 = vpop.f32.mrf.mxu0
  %v297 = vadd.f32 0.0, %v296
  %v298 = vpop.f32.mrf.mxu0
  %299 = vmatprep.mubr.bf16.mxu0 0
  %300 = vmatmul.mubr.bf16.gmra.mxu0 %v196
  %v301 = vpop.f32.mrf.mxu0
  %v302 = vadd.f32 0.0, %v301
  %v303 = vpop.f32.mrf.mxu0
  %v304 = vpop.f32.mrf.mxu0
  %v305 = vadd.f32 0.0, %v304
  %v306 = vpop.f32.mrf.mxu0
  %307 = vmatprep.mubr.bf16.mxu0 0
  %308 = vmatmul.mubr.bf16.gmra.mxu0 %v197
  %v309 = vpop.f32.mrf.mxu0
  %v310 = vadd.f32 0.0, %v309
  %v311 = vpop.f32.mrf.mxu0
  %v312 = vpop.f32.mrf.mxu0
  %v313 = vadd.f32 0.0, %v312
  %v314 = vpop.f32.mrf.mxu0
  %315 = vmatprep.mubr.bf16.mxu0 0
  %316 = vmatmul.mubr.bf16.gmra.mxu0 %v198
  %v317 = vpop.f32.mrf.mxu0
  %v318 = vadd.f32 0.0, %v317
  %v319 = vpop.f32.mrf.mxu0
  %v320 = vpop.f32.mrf.mxu0
  %v321 = vadd.f32 0.0, %v320
  %v322 = vpop.f32.mrf.mxu0
  %323 = vmatprep.mubr.bf16.mxu0 0
  %324 = vmatmul.mubr.bf16.gmra.mxu0 %v199
  %v325 = vpop.f32.mrf.mxu0
  %v326 = vadd.f32 0.0, %v325
  %v327 = vpop.f32.mrf.mxu0
  %v328 = vpop.f32.mrf.mxu0
  %v329 = vadd.f32 0.0, %v328
  %v330 = vpop.f32.mrf.mxu0
  %331 = vmatprep.mubr.bf16.mxu0 0
  %332 = vmatmul.mubr.bf16.gmra.mxu0 %v200
  %v333 = vpop.f32.mrf.mxu0
  %v334 = vadd.f32 0.0, %v333
  %v335 = vpop.f32.mrf.mxu0
  %v336 = vpop.f32.mrf.mxu0
  %v337 = vadd.f32 0.0, %v336
  %v338 = vpop.f32.mrf.mxu0
  %339 = vmatprep.mubr.bf16.mxu0 0
  %340 = vmatmul.mubr.bf16.gmra.mxu0 %v201
  %v341 = vpop.f32.mrf.mxu0
  %v342 = vadd.f32 0.0, %v341
  %v343 = vpop.f32.mrf.mxu0
  %v344 = vpop.f32.mrf.mxu0
  %v345 = vadd.f32 0.0, %v344
  %v346 = vpop.f32.mrf.mxu0
  %347 = vmatprep.mubr.bf16.mxu0 0
  %348 = vmatmul.mubr.bf16.gmra.mxu0 %v202
  %v349 = vpop.f32.mrf.mxu0
  %v350 = vadd.f32 0.0, %v349
  %v351 = vpop.f32.mrf.mxu0
  %v352 = vpop.f32.mrf.mxu0
  %v353 = vadd.f32 0.0, %v352
  %v354 = vpop.f32.mrf.mxu0
  %355 = vdwg.mxu0
  %v356 = vpack.c.bf16 %v297, %v294
  %v357 = vpack.c.bf16 %v305, %v302
  %v358 = vpack.c.bf16 %v313, %v310
  %v359 = vpack.c.bf16 %v321, %v318
  %v360 = vpack.c.bf16 %v329, %v326
  %v361 = vpack.c.bf16 %v337, %v334
  %v362 = vpack.c.bf16 %v345, %v342
  %v363 = vpack.c.bf16 %v353, %v350
  %v364 = vld [vmem:[%s3] sm:$0xf]
  %vm365 = vcmask 64512
  %v367 = vsel %vm365, %v356, 0
  %v370 = vsel %vm365, %v357, 0
  %v373 = vsel %vm365, %v358, 0
  %v376 = vsel %vm365, %v359, 0
  %v379 = vsel %vm365, %v360, 0
  %v382 = vsel %vm365, %v361, 0
  %v385 = vsel %vm365, %v362, 0
  %v388 = vsel %vm365, %v363, 0
  %vm390 = vcmask 1043456
  %v392 = vsel %vm390, %v364, 0
  %394 = vmatprep.subr.bf16.mxu0 0
  %395 = vmatpush1.bf16.msra.mxu0 0
  %396 = vmatprep.subr.bf16.mxu0 0
  %397 = vmatpush1.bf16.msra.mxu0 0
  %398 = vmatprep.subr.bf16.mxu0 0
  %399 = vmatpush1.bf16.msra.mxu0 0
  %400 = vmatprep.subr.bf16.mxu0 0
  %401 = vmatpush1.bf16.msra.mxu0 0
  %402 = vmatprep.subr.bf16.mxu0 0
  %403 = vmatpush1.bf16.msra.mxu0 0
  %404 = vmatprep.subr.bf16.mxu0 0
  %405 = vmatpush1.bf16.msra.mxu0 0
  %406 = vmatprep.subr.bf16.mxu0 0
  %407 = vmatpush1.bf16.msra.mxu0 0
  %408 = vmatprep.subr.bf16.mxu0 0
  %409 = vmatpush1.bf16.msra.mxu0 %v392
  %410 = vmatprep.subr.bf16.mxu0 0
  %411 = vmatpush2.bf16.msra.mxu0 0
  %412 = vmatprep.subr.bf16.mxu0 0
  %413 = vmatpush2.bf16.msra.mxu0 0
  %414 = vmatprep.subr.bf16.mxu0 0
  %415 = vmatpush2.bf16.msra.mxu0 0
  %416 = vmatprep.subr.bf16.mxu0 0
  %417 = vmatpush2.bf16.msra.mxu0 0
  %418 = vmatprep.subr.bf16.mxu0 0
  %419 = vmatpush2.bf16.msra.mxu0 0
  %420 = vmatprep.subr.bf16.mxu0 0
  %421 = vmatpush2.bf16.msra.mxu0 0
  %422 = vmatprep.subr.bf16.mxu0 0
  %423 = vmatpush2.bf16.msra.mxu0 0
  %424 = vmatprep.subr.bf16.mxu0 0
  %425 = vmatpush2.bf16.msra.mxu0 0
  %426 = vmatprep.mubr.bf16.mxu0 0
  %427 = vmatmul.mubr.bf16.gmra.mxu0 %v367
  %v428 = vpop.f32.mrf.mxu0
  %v429 = vadd.f32 0.0, %v428
  %v430 = vpop.f32.mrf.mxu0
  %v431 = vpop.f32.mrf.mxu0
  %v432 = vadd.f32 0.0, %v431
  %v433 = vpop.f32.mrf.mxu0
  %434 = vmatprep.mubr.bf16.mxu0 0
  %435 = vmatmul.mubr.bf16.gmra.mxu0 %v370
  %v436 = vpop.f32.mrf.mxu0
  %v437 = vadd.f32 0.0, %v436
  %v438 = vpop.f32.mrf.mxu0
  %v439 = vpop.f32.mrf.mxu0
  %v440 = vadd.f32 0.0, %v439
  %v441 = vpop.f32.mrf.mxu0
  %442 = vmatprep.mubr.bf16.mxu0 0
  %443 = vmatmul.mubr.bf16.gmra.mxu0 %v373
  %v444 = vpop.f32.mrf.mxu0
  %v445 = vadd.f32 0.0, %v444
  %v446 = vpop.f32.mrf.mxu0
  %v447 = vpop.f32.mrf.mxu0
  %v448 = vadd.f32 0.0, %v447
  %v449 = vpop.f32.mrf.mxu0
  %450 = vmatprep.mubr.bf16.mxu0 0
  %451 = vmatmul.mubr.bf16.gmra.mxu0 %v376
  %v452 = vpop.f32.mrf.mxu0
  %v453 = vadd.f32 0.0, %v452
  %v454 = vpop.f32.mrf.mxu0
  %v455 = vpop.f32.mrf.mxu0
  %v456 = vadd.f32 0.0, %v455
  %v457 = vpop.f32.mrf.mxu0
  %458 = vmatprep.mubr.bf16.mxu0 0
  %459 = vmatmul.mubr.bf16.gmra.mxu0 %v379
  %v460 = vpop.f32.mrf.mxu0
  %v461 = vadd.f32 0.0, %v460
  %v462 = vpop.f32.mrf.mxu0
  %v463 = vpop.f32.mrf.mxu0
  %v464 = vadd.f32 0.0, %v463
  %v465 = vpop.f32.mrf.mxu0
  %466 = vmatprep.mubr.bf16.mxu0 0
  %467 = vmatmul.mubr.bf16.gmra.mxu0 %v382
  %v468 = vpop.f32.mrf.mxu0
  %v469 = vadd.f32 0.0, %v468
  %v470 = vpop.f32.mrf.mxu0
  %v471 = vpop.f32.mrf.mxu0
  %v472 = vadd.f32 0.0, %v471
  %v473 = vpop.f32.mrf.mxu0
  %474 = vmatprep.mubr.bf16.mxu0 0
  %475 = vmatmul.mubr.bf16.gmra.mxu0 %v385
  %v476 = vpop.f32.mrf.mxu0
  %v477 = vadd.f32 0.0, %v476
  %v478 = vpop.f32.mrf.mxu0
  %v479 = vpop.f32.mrf.mxu0
  %v480 = vadd.f32 0.0, %v479
  %v481 = vpop.f32.mrf.mxu0
  %482 = vmatprep.mubr.bf16.mxu0 0
  %483 = vmatmul.mubr.bf16.gmra.mxu0 %v388
  %v484 = vpop.f32.mrf.mxu0
  %v485 = vadd.f32 0.0, %v484
  %v486 = vpop.f32.mrf.mxu0
  %v487 = vpop.f32.mrf.mxu0
  %v488 = vadd.f32 0.0, %v487
  %v489 = vpop.f32.mrf.mxu0
  %490 = vdwg.mxu0
  %v491 = vld [vmem:[%s8] sm:$0x1]
  %v493 = vlaneseq
  %v494 = vshrl.u32 %v493, 7
  %v495 = vsub.s32 0, %v494
  %v496 = vrot.slane %v491, %v495
  %v498 = vmul.f32 %v429, %v496
  %v499 = vmul.f32 %v432, %v496
  %v500 = vmul.f32 %v437, %v496
  %v501 = vmul.f32 %v440, %v496
  %v502 = vmul.f32 %v445, %v496
  %v503 = vmul.f32 %v448, %v496
  %v504 = vmul.f32 %v453, %v496
  %v505 = vmul.f32 %v456, %v496
  %v506 = vmul.f32 %v461, %v496
  %v507 = vmul.f32 %v464, %v496
  %v508 = vmul.f32 %v469, %v496
  %v509 = vmul.f32 %v472, %v496
  %v510 = vmul.f32 %v477, %v496
  %v511 = vmul.f32 %v480, %v496
  %v512 = vmul.f32 %v485, %v496
  %v513 = vmul.f32 %v488, %v496
  %v514 = vld [vmem:[%s9] sm:$0x1]
  %v516 = vlaneseq
  %v517 = vshrl.u32 %v516, 7
  %v518 = vsub.s32 0, %v517
  %v519 = vrot.slane %v514, %v518
  %v521 = vadd.f32 %v498, %v519
  %v522 = vadd.f32 %v499, %v519
  %v523 = vadd.f32 %v500, %v519
  %v524 = vadd.f32 %v501, %v519
  %v525 = vadd.f32 %v502, %v519
  %v526 = vadd.f32 %v503, %v519
  %v527 = vadd.f32 %v504, %v519
  %v528 = vadd.f32 %v505, %v519
  %v529 = vadd.f32 %v506, %v519
  %v530 = vadd.f32 %v507, %v519
  %v531 = vadd.f32 %v508, %v519
  %v532 = vadd.f32 %v509, %v519
  %v533 = vadd.f32 %v510, %v519
  %v534 = vadd.f32 %v511, %v519
  %v535 = vadd.f32 %v512, %v519
  %v536 = vadd.f32 %v513, %v519
  %v537 = vmul.f32 %v521, 0.5
  %v538 = vmul.f32 %v522, 0.5
  %v539 = vmul.f32 %v523, 0.5
  %v540 = vmul.f32 %v524, 0.5
  %v541 = vmul.f32 %v525, 0.5
  %v542 = vmul.f32 %v526, 0.5
  %v543 = vmul.f32 %v527, 0.5
  %v544 = vmul.f32 %v528, 0.5
  %v545 = vmul.f32 %v529, 0.5
  %v546 = vmul.f32 %v530, 0.5
  %v547 = vmul.f32 %v531, 0.5
  %v548 = vmul.f32 %v532, 0.5
  %v549 = vmul.f32 %v533, 0.5
  %v550 = vmul.f32 %v534, 0.5
  %v551 = vmul.f32 %v535, 0.5
  %v552 = vmul.f32 %v536, 0.5
  %v553 = vmul.f32 %v521, 0.70710677
  %v554 = vmul.f32 %v522, 0.70710677
  %v555 = vmul.f32 %v523, 0.70710677
  %v556 = vmul.f32 %v524, 0.70710677
  %v557 = vmul.f32 %v525, 0.70710677
  %v558 = vmul.f32 %v526, 0.70710677
  %v559 = vmul.f32 %v527, 0.70710677
  %v560 = vmul.f32 %v528, 0.70710677
  %v561 = vmul.f32 %v529, 0.70710677
  %v562 = vmul.f32 %v530, 0.70710677
  %v563 = vmul.f32 %v531, 0.70710677
  %v564 = vmul.f32 %v532, 0.70710677
  %v565 = vmul.f32 %v533, 0.70710677
  %v566 = vmul.f32 %v534, 0.70710677
  %v567 = vmul.f32 %v535, 0.70710677
  %v568 = vmul.f32 %v536, 0.70710677
  %v569 = verf.f32.pop %v553
  %v570 = verf.f32.pop %v554
  %v571 = verf.f32.pop %v555
  %v572 = verf.f32.pop %v556
  %v573 = verf.f32.pop %v557
  %v574 = verf.f32.pop %v558
  %v575 = verf.f32.pop %v559
  %v576 = verf.f32.pop %v560
  %v577 = verf.f32.pop %v561
  %v578 = verf.f32.pop %v562
  %v579 = verf.f32.pop %v563
  %v580 = verf.f32.pop %v564
  %v581 = verf.f32.pop %v565
  %v582 = verf.f32.pop %v566
  %v583 = verf.f32.pop %v567
  %v584 = verf.f32.pop %v568
  %v585 = vadd.f32 %v569, 1.0
  %v586 = vadd.f32 %v570, 1.0
  %v587 = vadd.f32 %v571, 1.0
  %v588 = vadd.f32 %v572, 1.0
  %v589 = vadd.f32 %v573, 1.0
  %v590 = vadd.f32 %v574, 1.0
  %v591 = vadd.f32 %v575, 1.0
  %v592 = vadd.f32 %v576, 1.0
  %v593 = vadd.f32 %v577, 1.0
  %v594 = vadd.f32 %v578, 1.0
  %v595 = vadd.f32 %v579, 1.0
  %v596 = vadd.f32 %v580, 1.0
  %v597 = vadd.f32 %v581, 1.0
  %v598 = vadd.f32 %v582, 1.0
  %v599 = vadd.f32 %v583, 1.0
  %v600 = vadd.f32 %v584, 1.0
  %v601 = vmul.f32 %v537, %v585
  %v602 = vmul.f32 %v538, %v586
  %v603 = vmul.f32 %v539, %v587
  %v604 = vmul.f32 %v540, %v588
  %v605 = vmul.f32 %v541, %v589
  %v606 = vmul.f32 %v542, %v590
  %v607 = vmul.f32 %v543, %v591
  %v608 = vmul.f32 %v544, %v592
  %v609 = vmul.f32 %v545, %v593
  %v610 = vmul.f32 %v546, %v594
  %v611 = vmul.f32 %v547, %v595
  %v612 = vmul.f32 %v548, %v596
  %v613 = vmul.f32 %v549, %v597
  %v614 = vmul.f32 %v550, %v598
  %v615 = vmul.f32 %v551, %v599
  %v616 = vmul.f32 %v552, %v600
  %v617 = vpack.c.bf16 %v602, %v601
  %v618 = vpack.c.bf16 %v604, %v603
  %v619 = vpack.c.bf16 %v606, %v605
  %v620 = vpack.c.bf16 %v608, %v607
  %v621 = vpack.c.bf16 %v610, %v609
  %v622 = vpack.c.bf16 %v612, %v611
  %v623 = vpack.c.bf16 %v614, %v613
  %v624 = vpack.c.bf16 %v616, %v615
  %v633 = vunpack.c.l.b16 %v617
  %v634 = vunpack.c.h.b16 %v617
  %v635 = vunpack.c.l.b16 %v618
  %v636 = vunpack.c.h.b16 %v618
  %v637 = vunpack.c.l.b16 %v619
  %v638 = vunpack.c.h.b16 %v619
  %v639 = vunpack.c.l.b16 %v620
  %v640 = vunpack.c.h.b16 %v620
  %v641 = vunpack.c.l.b16 %v621
  %v642 = vunpack.c.h.b16 %v621
  %v643 = vunpack.c.l.b16 %v622
  %v644 = vunpack.c.h.b16 %v622
  %v645 = vunpack.c.l.b16 %v623
  %v646 = vunpack.c.h.b16 %v623
  %v647 = vunpack.c.l.b16 %v624
  %v648 = vunpack.c.h.b16 %v624
  %v649 = vpack.c.b16 %v633, %v633
  %v650 = vpack.c.b16 %v634, %v634
  %v651 = vpack.c.b16 %v635, %v635
  %v652 = vpack.c.b16 %v636, %v636
  %v653 = vpack.c.b16 %v637, %v637
  %v654 = vpack.c.b16 %v638, %v638
  %v655 = vpack.c.b16 %v639, %v639
  %v656 = vpack.c.b16 %v640, %v640
  %v657 = vpack.c.b16 %v641, %v641
  %v658 = vpack.c.b16 %v642, %v642
  %v659 = vpack.c.b16 %v643, %v643
  %v660 = vpack.c.b16 %v644, %v644
  %v661 = vpack.c.b16 %v645, %v645
  %v662 = vpack.c.b16 %v646, %v646
  %v663 = vpack.c.b16 %v647, %v647
  %v664 = vpack.c.b16 %v648, %v648
  %681 = vst [vmem:[#allocation3] sm:$0xf] %v649
  %682 = vst [vmem:[#allocation3 + $0x4] sm:$0xf] %v650
  %683 = vst [vmem:[#allocation3 + $0x8] sm:$0xf] %v651
  %684 = vst [vmem:[#allocation3 + $0xc] sm:$0xf] %v652
  %685 = vst [vmem:[#allocation3 + $0x10] sm:$0xf] %v653
  %686 = vst [vmem:[#allocation3 + $0x14] sm:$0xf] %v654
  %687 = vst [vmem:[#allocation3 + $0x18] sm:$0xf] %v655
  %688 = vst [vmem:[#allocation3 + $0x1c] sm:$0xf] %v656
  %689 = vst [vmem:[#allocation3 + $0x20] sm:$0xf] %v657
  %690 = vst [vmem:[#allocation3 + $0x24] sm:$0xf] %v658
  %691 = vst [vmem:[#allocation3 + $0x28] sm:$0xf] %v659
  %692 = vst [vmem:[#allocation3 + $0x2c] sm:$0xf] %v660
  %693 = vst [vmem:[#allocation3 + $0x30] sm:$0xf] %v661
  %694 = vst [vmem:[#allocation3 + $0x34] sm:$0xf] %v662
  %695 = vst [vmem:[#allocation3 + $0x38] sm:$0xf] %v663
  %696 = vst [vmem:[#allocation3 + $0x3c] sm:$0xf] %v664
  %v697 = vld [vmem:[#allocation2] sm:$0xf]
  %v698 = vld [vmem:[#allocation2 + $0x4] sm:$0xf]
  %v699 = vld [vmem:[#allocation2 + $0x8] sm:$0xf]
  %v700 = vld [vmem:[#allocation2 + $0xc] sm:$0xf]
  %v701 = vld [vmem:[#allocation2 + $0x10] sm:$0xf]
  %v702 = vld [vmem:[#allocation2 + $0x14] sm:$0xf]
  %v703 = vld [vmem:[#allocation2 + $0x18] sm:$0xf]
  %v704 = vld [vmem:[#allocation2 + $0x1c] sm:$0xf]
  %v705 = vld [vmem:[#allocation2 + $0x20] sm:$0xf]
  %v706 = vld [vmem:[#allocation2 + $0x24] sm:$0xf]
  %v707 = vld [vmem:[#allocation2 + $0x28] sm:$0xf]
  %v708 = vld [vmem:[#allocation2 + $0x2c] sm:$0xf]
  %v709 = vld [vmem:[#allocation2 + $0x30] sm:$0xf]
  %v710 = vld [vmem:[#allocation2 + $0x34] sm:$0xf]
  %v711 = vld [vmem:[#allocation2 + $0x38] sm:$0xf]
  %v712 = vld [vmem:[#allocation2 + $0x3c] sm:$0xf]
  %v713 = vld [vmem:[#allocation3] sm:$0xf]
  %v714 = vld [vmem:[#allocation3 + $0x4] sm:$0xf]
  %v715 = vld [vmem:[#allocation3 + $0x8] sm:$0xf]
  %v716 = vld [vmem:[#allocation3 + $0xc] sm:$0xf]
  %v717 = vld [vmem:[#allocation3 + $0x10] sm:$0xf]
  %v718 = vld [vmem:[#allocation3 + $0x14] sm:$0xf]
  %v719 = vld [vmem:[#allocation3 + $0x18] sm:$0xf]
  %v720 = vld [vmem:[#allocation3 + $0x1c] sm:$0xf]
  %v721 = vld [vmem:[#allocation3 + $0x20] sm:$0xf]
  %v722 = vld [vmem:[#allocation3 + $0x24] sm:$0xf]
  %v723 = vld [vmem:[#allocation3 + $0x28] sm:$0xf]
  %v724 = vld [vmem:[#allocation3 + $0x2c] sm:$0xf]
  %v725 = vld [vmem:[#allocation3 + $0x30] sm:$0xf]
  %v726 = vld [vmem:[#allocation3 + $0x34] sm:$0xf]
  %v727 = vld [vmem:[#allocation3 + $0x38] sm:$0xf]
  %v728 = vld [vmem:[#allocation3 + $0x3c] sm:$0xf]
  %v729 = vld [vmem:[%s4] sm:$0xf]
  %v730 = vld [vmem:[%s4 + $0x4] sm:$0xf]
  %v731 = vld [vmem:[%s4 + $0x8] sm:$0xf]
  %v732 = vld [vmem:[%s4 + $0xc] sm:$0xf]
  %v733 = vld [vmem:[%s4 + $0x10] sm:$0xf]
  %v734 = vld [vmem:[%s4 + $0x14] sm:$0xf]
  %v735 = vld [vmem:[%s4 + $0x18] sm:$0xf]
  %v736 = vld [vmem:[%s4 + $0x1c] sm:$0xf]
  %v737 = vld [vmem:[%s4 + $0x20] sm:$0xf]
  %v738 = vld [vmem:[%s4 + $0x24] sm:$0xf]
  %v739 = vld [vmem:[%s4 + $0x28] sm:$0xf]
  %v740 = vld [vmem:[%s4 + $0x2c] sm:$0xf]
  %v741 = vld [vmem:[%s4 + $0x30] sm:$0xf]
  %v742 = vld [vmem:[%s4 + $0x34] sm:$0xf]
  %v743 = vld [vmem:[%s4 + $0x38] sm:$0xf]
  %v744 = vld [vmem:[%s4 + $0x3c] sm:$0xf]
  %v761 = vunpack.c.l.b16 %v713
  %v762 = vunpack.c.l.b16 %v714
  %v763 = vunpack.c.l.b16 %v715
  %v764 = vunpack.c.l.b16 %v716
  %v765 = vunpack.c.l.b16 %v717
  %v766 = vunpack.c.l.b16 %v718
  %v767 = vunpack.c.l.b16 %v719
  %v768 = vunpack.c.l.b16 %v720
  %v769 = vunpack.c.l.b16 %v721
  %v770 = vunpack.c.l.b16 %v722
  %v771 = vunpack.c.l.b16 %v723
  %v772 = vunpack.c.l.b16 %v724
  %v773 = vunpack.c.l.b16 %v725
  %v774 = vunpack.c.l.b16 %v726
  %v775 = vunpack.c.l.b16 %v727
  %v776 = vunpack.c.l.b16 %v728
  %v777 = vpack.c.b16 %v762, %v761
  %v778 = vpack.c.b16 %v764, %v763
  %v779 = vpack.c.b16 %v766, %v765
  %v780 = vpack.c.b16 %v768, %v767
  %v781 = vpack.c.b16 %v770, %v769
  %v782 = vpack.c.b16 %v772, %v771
  %v783 = vpack.c.b16 %v774, %v773
  %v784 = vpack.c.b16 %v776, %v775
  %v809 = vunpack.c.l.b16 %v729
  %v810 = vunpack.c.l.b16 %v730
  %v811 = vunpack.c.l.b16 %v731
  %v812 = vunpack.c.l.b16 %v732
  %v813 = vunpack.c.l.b16 %v733
  %v814 = vunpack.c.l.b16 %v734
  %v815 = vunpack.c.l.b16 %v735
  %v816 = vunpack.c.l.b16 %v736
  %v817 = vunpack.c.l.b16 %v737
  %v818 = vunpack.c.l.b16 %v738
  %v819 = vunpack.c.l.b16 %v739
  %v820 = vunpack.c.l.b16 %v740
  %v821 = vunpack.c.l.b16 %v741
  %v822 = vunpack.c.l.b16 %v742
  %v823 = vunpack.c.l.b16 %v743
  %v824 = vunpack.c.l.b16 %v744
  %v825 = vpack.c.b16 %v810, %v809
  %v826 = vpack.c.b16 %v812, %v811
  %v827 = vpack.c.b16 %v814, %v813
  %v828 = vpack.c.b16 %v816, %v815
  %v829 = vpack.c.b16 %v818, %v817
  %v830 = vpack.c.b16 %v820, %v819
  %v831 = vpack.c.b16 %v822, %v821
  %v832 = vpack.c.b16 %v824, %v823
  %841 = vmatprep.subr.bf16.mxu0 0
  %842 = vmatpush1.bf16.msra.mxu0 %v832
  %843 = vmatprep.subr.bf16.mxu0 0
  %844 = vmatpush1.bf16.msra.mxu0 %v831
  %845 = vmatprep.subr.bf16.mxu0 0
  %846 = vmatpush1.bf16.msra.mxu0 %v830
  %847 = vmatprep.subr.bf16.mxu0 0
  %848 = vmatpush1.bf16.msra.mxu0 %v829
  %849 = vmatprep.subr.bf16.mxu0 0
  %850 = vmatpush1.bf16.msra.mxu0 %v828
  %851 = vmatprep.subr.bf16.mxu0 0
  %852 = vmatpush1.bf16.msra.mxu0 %v827
  %853 = vmatprep.subr.bf16.mxu0 0
  %854 = vmatpush1.bf16.msra.mxu0 %v826
  %855 = vmatprep.subr.bf16.mxu0 0
  %856 = vmatpush1.bf16.msra.mxu0 %v825
  %857 = vmatprep.subr.bf16.mxu0 0
  %858 = vmatpush2.bf16.msra.mxu0 0
  %859 = vmatprep.subr.bf16.mxu0 0
  %860 = vmatpush2.bf16.msra.mxu0 0
  %861 = vmatprep.subr.bf16.mxu0 0
  %862 = vmatpush2.bf16.msra.mxu0 0
  %863 = vmatprep.subr.bf16.mxu0 0
  %864 = vmatpush2.bf16.msra.mxu0 0
  %865 = vmatprep.subr.bf16.mxu0 0
  %866 = vmatpush2.bf16.msra.mxu0 0
  %867 = vmatprep.subr.bf16.mxu0 0
  %868 = vmatpush2.bf16.msra.mxu0 0
  %869 = vmatprep.subr.bf16.mxu0 0
  %870 = vmatpush2.bf16.msra.mxu0 0
  %871 = vmatprep.subr.bf16.mxu0 0
  %872 = vmatpush2.bf16.msra.mxu0 0
  %873 = vmatprep.mubr.bf16.mxu0 0
  %874 = vmatmul.mubr.bf16.gmra.mxu0 %v777
  %v875 = vpop.f32.mrf.mxu0
  %v876 = vadd.f32 0.0, %v875
  %v877 = vpop.f32.mrf.mxu0
  %v878 = vpop.f32.mrf.mxu0
  %v879 = vadd.f32 0.0, %v878
  %v880 = vpop.f32.mrf.mxu0
  %881 = vmatprep.mubr.bf16.mxu0 0
  %882 = vmatmul.mubr.bf16.gmra.mxu0 %v778
  %v883 = vpop.f32.mrf.mxu0
  %v884 = vadd.f32 0.0, %v883
  %v885 = vpop.f32.mrf.mxu0
  %v886 = vpop.f32.mrf.mxu0
  %v887 = vadd.f32 0.0, %v886
  %v888 = vpop.f32.mrf.mxu0
  %889 = vmatprep.mubr.bf16.mxu0 0
  %890 = vmatmul.mubr.bf16.gmra.mxu0 %v779
  %v891 = vpop.f32.mrf.mxu0
  %v892 = vadd.f32 0.0, %v891
  %v893 = vpop.f32.mrf.mxu0
  %v894 = vpop.f32.mrf.mxu0
  %v895 = vadd.f32 0.0, %v894
  %v896 = vpop.f32.mrf.mxu0
  %897 = vmatprep.mubr.bf16.mxu0 0
  %898 = vmatmul.mubr.bf16.gmra.mxu0 %v780
  %v899 = vpop.f32.mrf.mxu0
  %v900 = vadd.f32 0.0, %v899
  %v901 = vpop.f32.mrf.mxu0
  %v902 = vpop.f32.mrf.mxu0
  %v903 = vadd.f32 0.0, %v902
  %v904 = vpop.f32.mrf.mxu0
  %905 = vmatprep.mubr.bf16.mxu0 0
  %906 = vmatmul.mubr.bf16.gmra.mxu0 %v781
  %v907 = vpop.f32.mrf.mxu0
  %v908 = vadd.f32 0.0, %v907
  %v909 = vpop.f32.mrf.mxu0
  %v910 = vpop.f32.mrf.mxu0
  %v911 = vadd.f32 0.0, %v910
  %v912 = vpop.f32.mrf.mxu0
  %913 = vmatprep.mubr.bf16.mxu0 0
  %914 = vmatmul.mubr.bf16.gmra.mxu0 %v782
  %v915 = vpop.f32.mrf.mxu0
  %v916 = vadd.f32 0.0, %v915
  %v917 = vpop.f32.mrf.mxu0
  %v918 = vpop.f32.mrf.mxu0
  %v919 = vadd.f32 0.0, %v918
  %v920 = vpop.f32.mrf.mxu0
  %921 = vmatprep.mubr.bf16.mxu0 0
  %922 = vmatmul.mubr.bf16.gmra.mxu0 %v783
  %v923 = vpop.f32.mrf.mxu0
  %v924 = vadd.f32 0.0, %v923
  %v925 = vpop.f32.mrf.mxu0
  %v926 = vpop.f32.mrf.mxu0
  %v927 = vadd.f32 0.0, %v926
  %v928 = vpop.f32.mrf.mxu0
  %929 = vmatprep.mubr.bf16.mxu0 0
  %930 = vmatmul.mubr.bf16.gmra.mxu0 %v784
  %v931 = vpop.f32.mrf.mxu0
  %v932 = vadd.f32 0.0, %v931
  %v933 = vpop.f32.mrf.mxu0
  %v934 = vpop.f32.mrf.mxu0
  %v935 = vadd.f32 0.0, %v934
  %v936 = vpop.f32.mrf.mxu0
  %937 = vdwg.mxu0
  %v938 = vpack.c.bf16 %v879, %v876
  %v939 = vpack.c.bf16 %v887, %v884
  %v940 = vpack.c.bf16 %v895, %v892
  %v941 = vpack.c.bf16 %v903, %v900
  %v942 = vpack.c.bf16 %v911, %v908
  %v943 = vpack.c.bf16 %v919, %v916
  %v944 = vpack.c.bf16 %v927, %v924
  %v945 = vpack.c.bf16 %v935, %v932
  %v962 = vunpack.c.l.b16 %v697
  %v963 = vunpack.c.l.b16 %v698
  %v964 = vunpack.c.l.b16 %v699
  %v965 = vunpack.c.l.b16 %v700
  %v966 = vunpack.c.l.b16 %v701
  %v967 = vunpack.c.l.b16 %v702
  %v968 = vunpack.c.l.b16 %v703
  %v969 = vunpack.c.l.b16 %v704
  %v970 = vunpack.c.l.b16 %v705
  %v971 = vunpack.c.l.b16 %v706
  %v972 = vunpack.c.l.b16 %v707
  %v973 = vunpack.c.l.b16 %v708
  %v974 = vunpack.c.l.b16 %v709
  %v975 = vunpack.c.l.b16 %v710
  %v976 = vunpack.c.l.b16 %v711
  %v977 = vunpack.c.l.b16 %v712
  %v978 = vpack.c.b16 %v963, %v962
  %v979 = vpack.c.b16 %v965, %v964
  %v980 = vpack.c.b16 %v967, %v966
  %v981 = vpack.c.b16 %v969, %v968
  %v982 = vpack.c.b16 %v971, %v970
  %v983 = vpack.c.b16 %v973, %v972
  %v984 = vpack.c.b16 %v975, %v974
  %v985 = vpack.c.b16 %v977, %v976
  %994 = vmatprep.subr.bf16.mxu0 0
  %995 = vmatpush1.bf16.msra.mxu0 %v945
  %996 = vmatprep.subr.bf16.mxu0 0
  %997 = vmatpush1.bf16.msra.mxu0 %v944
  %998 = vmatprep.subr.bf16.mxu0 0
  %999 = vmatpush1.bf16.msra.mxu0 %v943
  %1000 = vmatprep.subr.bf16.mxu0 0
  %1001 = vmatpush1.bf16.msra.mxu0 %v942
  %1002 = vmatprep.subr.bf16.mxu0 0
  %1003 = vmatpush1.bf16.msra.mxu0 %v941
  %1004 = vmatprep.subr.bf16.mxu0 0
  %1005 = vmatpush1.bf16.msra.mxu0 %v940
  %1006 = vmatprep.subr.bf16.mxu0 0
  %1007 = vmatpush1.bf16.msra.mxu0 %v939
  %1008 = vmatprep.subr.bf16.mxu0 0
  %1009 = vmatpush1.bf16.msra.mxu0 %v938
  %1010 = vmatprep.subr.bf16.mxu0 0
  %1011 = vmatpush2.bf16.msra.mxu0 0
  %1012 = vmatprep.subr.bf16.mxu0 0
  %1013 = vmatpush2.bf16.msra.mxu0 0
  %1014 = vmatprep.subr.bf16.mxu0 0
  %1015 = vmatpush2.bf16.msra.mxu0 0
  %1016 = vmatprep.subr.bf16.mxu0 0
  %1017 = vmatpush2.bf16.msra.mxu0 0
  %1018 = vmatprep.subr.bf16.mxu0 0
  %1019 = vmatpush2.bf16.msra.mxu0 0
  %1020 = vmatprep.subr.bf16.mxu0 0
  %1021 = vmatpush2.bf16.msra.mxu0 0
  %1022 = vmatprep.subr.bf16.mxu0 0
  %1023 = vmatpush2.bf16.msra.mxu0 0
  %1024 = vmatprep.subr.bf16.mxu0 0
  %1025 = vmatpush2.bf16.msra.mxu0 0
  %1026 = vmatprep.mubr.bf16.mxu0 0
  %1027 = vmatmul.mubr.bf16.gmra.mxu0 %v978
  %v1028 = vpop.f32.mrf.mxu0
  %v1029 = vadd.f32 0.0, %v1028
  %v1030 = vpop.f32.mrf.mxu0
  %v1031 = vpop.f32.mrf.mxu0
  %v1032 = vadd.f32 0.0, %v1031
  %v1033 = vpop.f32.mrf.mxu0
  %1034 = vmatprep.mubr.bf16.mxu0 0
  %1035 = vmatmul.mubr.bf16.gmra.mxu0 %v979
  %v1036 = vpop.f32.mrf.mxu0
  %v1037 = vadd.f32 0.0, %v1036
  %v1038 = vpop.f32.mrf.mxu0
  %v1039 = vpop.f32.mrf.mxu0
  %v1040 = vadd.f32 0.0, %v1039
  %v1041 = vpop.f32.mrf.mxu0
  %1042 = vmatprep.mubr.bf16.mxu0 0
  %1043 = vmatmul.mubr.bf16.gmra.mxu0 %v980
  %v1044 = vpop.f32.mrf.mxu0
  %v1045 = vadd.f32 0.0, %v1044
  %v1046 = vpop.f32.mrf.mxu0
  %v1047 = vpop.f32.mrf.mxu0
  %v1048 = vadd.f32 0.0, %v1047
  %v1049 = vpop.f32.mrf.mxu0
  %1050 = vmatprep.mubr.bf16.mxu0 0
  %1051 = vmatmul.mubr.bf16.gmra.mxu0 %v981
  %v1052 = vpop.f32.mrf.mxu0
  %v1053 = vadd.f32 0.0, %v1052
  %v1054 = vpop.f32.mrf.mxu0
  %v1055 = vpop.f32.mrf.mxu0
  %v1056 = vadd.f32 0.0, %v1055
  %v1057 = vpop.f32.mrf.mxu0
  %1058 = vmatprep.mubr.bf16.mxu0 0
  %1059 = vmatmul.mubr.bf16.gmra.mxu0 %v982
  %v1060 = vpop.f32.mrf.mxu0
  %v1061 = vadd.f32 0.0, %v1060
  %v1062 = vpop.f32.mrf.mxu0
  %v1063 = vpop.f32.mrf.mxu0
  %v1064 = vadd.f32 0.0, %v1063
  %v1065 = vpop.f32.mrf.mxu0
  %1066 = vmatprep.mubr.bf16.mxu0 0
  %1067 = vmatmul.mubr.bf16.gmra.mxu0 %v983
  %v1068 = vpop.f32.mrf.mxu0
  %v1069 = vadd.f32 0.0, %v1068
  %v1070 = vpop.f32.mrf.mxu0
  %v1071 = vpop.f32.mrf.mxu0
  %v1072 = vadd.f32 0.0, %v1071
  %v1073 = vpop.f32.mrf.mxu0
  %1074 = vmatprep.mubr.bf16.mxu0 0
  %1075 = vmatmul.mubr.bf16.gmra.mxu0 %v984
  %v1076 = vpop.f32.mrf.mxu0
  %v1077 = vadd.f32 0.0, %v1076
  %v1078 = vpop.f32.mrf.mxu0
  %v1079 = vpop.f32.mrf.mxu0
  %v1080 = vadd.f32 0.0, %v1079
  %v1081 = vpop.f32.mrf.mxu0
  %1082 = vmatprep.mubr.bf16.mxu0 0
  %1083 = vmatmul.mubr.bf16.gmra.mxu0 %v985
  %v1084 = vpop.f32.mrf.mxu0
  %v1085 = vadd.f32 0.0, %v1084
  %v1086 = vpop.f32.mrf.mxu0
  %v1087 = vpop.f32.mrf.mxu0
  %v1088 = vadd.f32 0.0, %v1087
  %v1089 = vpop.f32.mrf.mxu0
  %1090 = vdwg.mxu0
  %v1091 = vld [vmem:[%s10] sm:$0x1]
  %v1093 = vlaneseq
  %v1094 = vshrl.u32 %v1093, 7
  %v1095 = vsub.s32 0, %v1094
  %v1096 = vrot.slane %v1091, %v1095
  %v1098 = vmul.f32 %v1029, %v1096
  %v1099 = vmul.f32 %v1032, %v1096
  %v1100 = vmul.f32 %v1037, %v1096
  %v1101 = vmul.f32 %v1040, %v1096
  %v1102 = vmul.f32 %v1045, %v1096
  %v1103 = vmul.f32 %v1048, %v1096
  %v1104 = vmul.f32 %v1053, %v1096
  %v1105 = vmul.f32 %v1056, %v1096
  %v1106 = vmul.f32 %v1061, %v1096
  %v1107 = vmul.f32 %v1064, %v1096
  %v1108 = vmul.f32 %v1069, %v1096
  %v1109 = vmul.f32 %v1072, %v1096
  %v1110 = vmul.f32 %v1077, %v1096
  %v1111 = vmul.f32 %v1080, %v1096
  %v1112 = vmul.f32 %v1085, %v1096
  %v1113 = vmul.f32 %v1088, %v1096
  %v1114 = vld [vmem:[%s11] sm:$0x1]
  %v1116 = vlaneseq
  %v1117 = vshrl.u32 %v1116, 7
  %v1118 = vsub.s32 0, %v1117
  %v1119 = vrot.slane %v1114, %v1118
  %v1121 = vadd.f32 %v1098, %v1119
  %v1122 = vadd.f32 %v1099, %v1119
  %v1123 = vadd.f32 %v1100, %v1119
  %v1124 = vadd.f32 %v1101, %v1119
  %v1125 = vadd.f32 %v1102, %v1119
  %v1126 = vadd.f32 %v1103, %v1119
  %v1127 = vadd.f32 %v1104, %v1119
  %v1128 = vadd.f32 %v1105, %v1119
  %v1129 = vadd.f32 %v1106, %v1119
  %v1130 = vadd.f32 %v1107, %v1119
  %v1131 = vadd.f32 %v1108, %v1119
  %v1132 = vadd.f32 %v1109, %v1119
  %v1133 = vadd.f32 %v1110, %v1119
  %v1134 = vadd.f32 %v1111, %v1119
  %v1135 = vadd.f32 %v1112, %v1119
  %v1136 = vadd.f32 %v1113, %v1119
  %v1137 = vmul.f32 %v1121, 0.5
  %v1138 = vmul.f32 %v1122, 0.5
  %v1139 = vmul.f32 %v1123, 0.5
  %v1140 = vmul.f32 %v1124, 0.5
  %v1141 = vmul.f32 %v1125, 0.5
  %v1142 = vmul.f32 %v1126, 0.5
  %v1143 = vmul.f32 %v1127, 0.5
  %v1144 = vmul.f32 %v1128, 0.5
  %v1145 = vmul.f32 %v1129, 0.5
  %v1146 = vmul.f32 %v1130, 0.5
  %v1147 = vmul.f32 %v1131, 0.5
  %v1148 = vmul.f32 %v1132, 0.5
  %v1149 = vmul.f32 %v1133, 0.5
  %v1150 = vmul.f32 %v1134, 0.5
  %v1151 = vmul.f32 %v1135, 0.5
  %v1152 = vmul.f32 %v1136, 0.5
  %v1153 = vmul.f32 %v1121, 0.70710677
  %v1154 = vmul.f32 %v1122, 0.70710677
  %v1155 = vmul.f32 %v1123, 0.70710677
  %v1156 = vmul.f32 %v1124, 0.70710677
  %v1157 = vmul.f32 %v1125, 0.70710677
  %v1158 = vmul.f32 %v1126, 0.70710677
  %v1159 = vmul.f32 %v1127, 0.70710677
  %v1160 = vmul.f32 %v1128, 0.70710677
  %v1161 = vmul.f32 %v1129, 0.70710677
  %v1162 = vmul.f32 %v1130, 0.70710677
  %v1163 = vmul.f32 %v1131, 0.70710677
  %v1164 = vmul.f32 %v1132, 0.70710677
  %v1165 = vmul.f32 %v1133, 0.70710677
  %v1166 = vmul.f32 %v1134, 0.70710677
  %v1167 = vmul.f32 %v1135, 0.70710677
  %v1168 = vmul.f32 %v1136, 0.70710677
  %v1169 = verf.f32.pop %v1153
  %v1170 = verf.f32.pop %v1154
  %v1171 = verf.f32.pop %v1155
  %v1172 = verf.f32.pop %v1156
  %v1173 = verf.f32.pop %v1157
  %v1174 = verf.f32.pop %v1158
  %v1175 = verf.f32.pop %v1159
  %v1176 = verf.f32.pop %v1160
  %v1177 = verf.f32.pop %v1161
  %v1178 = verf.f32.pop %v1162
  %v1179 = verf.f32.pop %v1163
  %v1180 = verf.f32.pop %v1164
  %v1181 = verf.f32.pop %v1165
  %v1182 = verf.f32.pop %v1166
  %v1183 = verf.f32.pop %v1167
  %v1184 = verf.f32.pop %v1168
  %v1185 = vadd.f32 %v1169, 1.0
  %v1186 = vadd.f32 %v1170, 1.0
  %v1187 = vadd.f32 %v1171, 1.0
  %v1188 = vadd.f32 %v1172, 1.0
  %v1189 = vadd.f32 %v1173, 1.0
  %v1190 = vadd.f32 %v1174, 1.0
  %v1191 = vadd.f32 %v1175, 1.0
  %v1192 = vadd.f32 %v1176, 1.0
  %v1193 = vadd.f32 %v1177, 1.0
  %v1194 = vadd.f32 %v1178, 1.0
  %v1195 = vadd.f32 %v1179, 1.0
  %v1196 = vadd.f32 %v1180, 1.0
  %v1197 = vadd.f32 %v1181, 1.0
  %v1198 = vadd.f32 %v1182, 1.0
  %v1199 = vadd.f32 %v1183, 1.0
  %v1200 = vadd.f32 %v1184, 1.0
  %v1201 = vmul.f32 %v1137, %v1185
  %v1202 = vmul.f32 %v1138, %v1186
  %v1203 = vmul.f32 %v1139, %v1187
  %v1204 = vmul.f32 %v1140, %v1188
  %v1205 = vmul.f32 %v1141, %v1189
  %v1206 = vmul.f32 %v1142, %v1190
  %v1207 = vmul.f32 %v1143, %v1191
  %v1208 = vmul.f32 %v1144, %v1192
  %v1209 = vmul.f32 %v1145, %v1193
  %v1210 = vmul.f32 %v1146, %v1194
  %v1211 = vmul.f32 %v1147, %v1195
  %v1212 = vmul.f32 %v1148, %v1196
  %v1213 = vmul.f32 %v1149, %v1197
  %v1214 = vmul.f32 %v1150, %v1198
  %v1215 = vmul.f32 %v1151, %v1199
  %v1216 = vmul.f32 %v1152, %v1200
  %v1217 = vpack.c.bf16 %v1202, %v1201
  %v1218 = vpack.c.bf16 %v1204, %v1203
  %v1219 = vpack.c.bf16 %v1206, %v1205
  %v1220 = vpack.c.bf16 %v1208, %v1207
  %v1221 = vpack.c.bf16 %v1210, %v1209
  %v1222 = vpack.c.bf16 %v1212, %v1211
  %v1223 = vpack.c.bf16 %v1214, %v1213
  %v1224 = vpack.c.bf16 %v1216, %v1215
  %v1225 = vld [vmem:[%s5] sm:$0xf]
  %v1226 = vld [vmem:[%s5 + $0x4] sm:$0xf]
  %v1227 = vld [vmem:[%s5 + $0x8] sm:$0xf]
  %v1228 = vld [vmem:[%s5 + $0xc] sm:$0xf]
  %v1229 = vld [vmem:[%s5 + $0x10] sm:$0xf]
  %v1230 = vld [vmem:[%s5 + $0x14] sm:$0xf]
  %v1231 = vld [vmem:[%s5 + $0x18] sm:$0xf]
  %v1232 = vld [vmem:[%s5 + $0x1c] sm:$0xf]
  %v1233 = vld [vmem:[%s5 + $0x20] sm:$0xf]
  %v1234 = vld [vmem:[%s5 + $0x24] sm:$0xf]
  %v1235 = vld [vmem:[%s5 + $0x28] sm:$0xf]
  %v1236 = vld [vmem:[%s5 + $0x2c] sm:$0xf]
  %v1237 = vld [vmem:[%s5 + $0x30] sm:$0xf]
  %v1238 = vld [vmem:[%s5 + $0x34] sm:$0xf]
  %v1239 = vld [vmem:[%s5 + $0x38] sm:$0xf]
  %v1240 = vld [vmem:[%s5 + $0x3c] sm:$0xf]
  %v1257 = vunpack.c.l.b16 %v1225
  %v1258 = vunpack.c.l.b16 %v1226
  %v1259 = vunpack.c.l.b16 %v1227
  %v1260 = vunpack.c.l.b16 %v1228
  %v1261 = vunpack.c.l.b16 %v1229
  %v1262 = vunpack.c.l.b16 %v1230
  %v1263 = vunpack.c.l.b16 %v1231
  %v1264 = vunpack.c.l.b16 %v1232
  %v1265 = vunpack.c.l.b16 %v1233
  %v1266 = vunpack.c.l.b16 %v1234
  %v1267 = vunpack.c.l.b16 %v1235
  %v1268 = vunpack.c.l.b16 %v1236
  %v1269 = vunpack.c.l.b16 %v1237
  %v1270 = vunpack.c.l.b16 %v1238
  %v1271 = vunpack.c.l.b16 %v1239
  %v1272 = vunpack.c.l.b16 %v1240
  %v1273 = vpack.c.b16 %v1258, %v1257
  %v1274 = vpack.c.b16 %v1260, %v1259
  %v1275 = vpack.c.b16 %v1262, %v1261
  %v1276 = vpack.c.b16 %v1264, %v1263
  %v1277 = vpack.c.b16 %v1266, %v1265
  %v1278 = vpack.c.b16 %v1268, %v1267
  %v1279 = vpack.c.b16 %v1270, %v1269
  %v1280 = vpack.c.b16 %v1272, %v1271
  %1289 = vmatprep.subr.bf16.mxu0 0
  %1290 = vmatpush1.bf16.msra.mxu0 %v1280
  %1291 = vmatprep.subr.bf16.mxu0 0
  %1292 = vmatpush1.bf16.msra.mxu0 %v1279
  %1293 = vmatprep.subr.bf16.mxu0 0
  %1294 = vmatpush1.bf16.msra.mxu0 %v1278
  %1295 = vmatprep.subr.bf16.mxu0 0
  %1296 = vmatpush1.bf16.msra.mxu0 %v1277
  %1297 = vmatprep.subr.bf16.mxu0 0
  %1298 = vmatpush1.bf16.msra.mxu0 %v1276
  %1299 = vmatprep.subr.bf16.mxu0 0
  %1300 = vmatpush1.bf16.msra.mxu0 %v1275
  %1301 = vmatprep.subr.bf16.mxu0 0
  %1302 = vmatpush1.bf16.msra.mxu0 %v1274
  %1303 = vmatprep.subr.bf16.mxu0 0
  %1304 = vmatpush1.bf16.msra.mxu0 %v1273
  %1305 = vmatprep.subr.bf16.mxu0 0
  %1306 = vmatpush2.bf16.msra.mxu0 0
  %1307 = vmatprep.subr.bf16.mxu0 0
  %1308 = vmatpush2.bf16.msra.mxu0 0
  %1309 = vmatprep.subr.bf16.mxu0 0
  %1310 = vmatpush2.bf16.msra.mxu0 0
  %1311 = vmatprep.subr.bf16.mxu0 0
  %1312 = vmatpush2.bf16.msra.mxu0 0
  %1313 = vmatprep.subr.bf16.mxu0 0
  %1314 = vmatpush2.bf16.msra.mxu0 0
  %1315 = vmatprep.subr.bf16.mxu0 0
  %1316 = vmatpush2.bf16.msra.mxu0 0
  %1317 = vmatprep.subr.bf16.mxu0 0
  %1318 = vmatpush2.bf16.msra.mxu0 0
  %1319 = vmatprep.subr.bf16.mxu0 0
  %1320 = vmatpush2.bf16.msra.mxu0 0
  %1321 = vmatprep.mubr.bf16.mxu0 0
  %1322 = vmatmul.mubr.bf16.gmra.mxu0 %v1217
  %v1323 = vpop.f32.mrf.mxu0
  %v1324 = vadd.f32 0.0, %v1323
  %v1325 = vpop.f32.mrf.mxu0
  %v1326 = vpop.f32.mrf.mxu0
  %v1327 = vadd.f32 0.0, %v1326
  %v1328 = vpop.f32.mrf.mxu0
  %1329 = vmatprep.mubr.bf16.mxu0 0
  %1330 = vmatmul.mubr.bf16.gmra.mxu0 %v1218
  %v1331 = vpop.f32.mrf.mxu0
  %v1332 = vadd.f32 0.0, %v1331
  %v1333 = vpop.f32.mrf.mxu0
  %v1334 = vpop.f32.mrf.mxu0
  %v1335 = vadd.f32 0.0, %v1334
  %v1336 = vpop.f32.mrf.mxu0
  %1337 = vmatprep.mubr.bf16.mxu0 0
  %1338 = vmatmul.mubr.bf16.gmra.mxu0 %v1219
  %v1339 = vpop.f32.mrf.mxu0
  %v1340 = vadd.f32 0.0, %v1339
  %v1341 = vpop.f32.mrf.mxu0
  %v1342 = vpop.f32.mrf.mxu0
  %v1343 = vadd.f32 0.0, %v1342
  %v1344 = vpop.f32.mrf.mxu0
  %1345 = vmatprep.mubr.bf16.mxu0 0
  %1346 = vmatmul.mubr.bf16.gmra.mxu0 %v1220
  %v1347 = vpop.f32.mrf.mxu0
  %v1348 = vadd.f32 0.0, %v1347
  %v1349 = vpop.f32.mrf.mxu0
  %v1350 = vpop.f32.mrf.mxu0
  %v1351 = vadd.f32 0.0, %v1350
  %v1352 = vpop.f32.mrf.mxu0
  %1353 = vmatprep.mubr.bf16.mxu0 0
  %1354 = vmatmul.mubr.bf16.gmra.mxu0 %v1221
  %v1355 = vpop.f32.mrf.mxu0
  %v1356 = vadd.f32 0.0, %v1355
  %v1357 = vpop.f32.mrf.mxu0
  %v1358 = vpop.f32.mrf.mxu0
  %v1359 = vadd.f32 0.0, %v1358
  %v1360 = vpop.f32.mrf.mxu0
  %1361 = vmatprep.mubr.bf16.mxu0 0
  %1362 = vmatmul.mubr.bf16.gmra.mxu0 %v1222
  %v1363 = vpop.f32.mrf.mxu0
  %v1364 = vadd.f32 0.0, %v1363
  %v1365 = vpop.f32.mrf.mxu0
  %v1366 = vpop.f32.mrf.mxu0
  %v1367 = vadd.f32 0.0, %v1366
  %v1368 = vpop.f32.mrf.mxu0
  %1369 = vmatprep.mubr.bf16.mxu0 0
  %1370 = vmatmul.mubr.bf16.gmra.mxu0 %v1223
  %v1371 = vpop.f32.mrf.mxu0
  %v1372 = vadd.f32 0.0, %v1371
  %v1373 = vpop.f32.mrf.mxu0
  %v1374 = vpop.f32.mrf.mxu0
  %v1375 = vadd.f32 0.0, %v1374
  %v1376 = vpop.f32.mrf.mxu0
  %1377 = vmatprep.mubr.bf16.mxu0 0
  %1378 = vmatmul.mubr.bf16.gmra.mxu0 %v1224
  %v1379 = vpop.f32.mrf.mxu0
  %v1380 = vadd.f32 0.0, %v1379
  %v1381 = vpop.f32.mrf.mxu0
  %v1382 = vpop.f32.mrf.mxu0
  %v1383 = vadd.f32 0.0, %v1382
  %v1384 = vpop.f32.mrf.mxu0
  %1385 = vdwg.mxu0
  %v1386 = vpack.c.bf16 %v1327, %v1324
  %v1387 = vpack.c.bf16 %v1335, %v1332
  %v1388 = vpack.c.bf16 %v1343, %v1340
  %v1389 = vpack.c.bf16 %v1351, %v1348
  %v1390 = vpack.c.bf16 %v1359, %v1356
  %v1391 = vpack.c.bf16 %v1367, %v1364
  %v1392 = vpack.c.bf16 %v1375, %v1372
  %v1393 = vpack.c.bf16 %v1383, %v1380
  %1394 = vmatprep.subr.bf16.mxu0 0
  %1395 = vmatpush1.bf16.msra.mxu0 %v1393
  %1396 = vmatprep.subr.bf16.mxu0 0
  %1397 = vmatpush1.bf16.msra.mxu0 %v1392
  %1398 = vmatprep.subr.bf16.mxu0 0
  %1399 = vmatpush1.bf16.msra.mxu0 %v1391
  %1400 = vmatprep.subr.bf16.mxu0 0
  %1401 = vmatpush1.bf16.msra.mxu0 %v1390
  %1402 = vmatprep.subr.bf16.mxu0 0
  %1403 = vmatpush1.bf16.msra.mxu0 %v1389
  %1404 = vmatprep.subr.bf16.mxu0 0
  %1405 = vmatpush1.bf16.msra.mxu0 %v1388
  %1406 = vmatprep.subr.bf16.mxu0 0
  %1407 = vmatpush1.bf16.msra.mxu0 %v1387
  %1408 = vmatprep.subr.bf16.mxu0 0
  %1409 = vmatpush1.bf16.msra.mxu0 %v1386
  %1410 = vmatprep.subr.bf16.mxu0 0
  %1411 = vmatpush2.bf16.msra.mxu0 0
  %1412 = vmatprep.subr.bf16.mxu0 0
  %1413 = vmatpush2.bf16.msra.mxu0 0
  %1414 = vmatprep.subr.bf16.mxu0 0
  %1415 = vmatpush2.bf16.msra.mxu0 0
  %1416 = vmatprep.subr.bf16.mxu0 0
  %1417 = vmatpush2.bf16.msra.mxu0 0
  %1418 = vmatprep.subr.bf16.mxu0 0
  %1419 = vmatpush2.bf16.msra.mxu0 0
  %1420 = vmatprep.subr.bf16.mxu0 0
  %1421 = vmatpush2.bf16.msra.mxu0 0
  %1422 = vmatprep.subr.bf16.mxu0 0
  %1423 = vmatpush2.bf16.msra.mxu0 0
  %1424 = vmatprep.subr.bf16.mxu0 0
  %1425 = vmatpush2.bf16.msra.mxu0 0
  %1426 = vmatprep.mubr.bf16.mxu0 0
  %1427 = vmatmul.mubr.bf16.gmra.mxu0 %v978
  %v1428 = vpop.f32.mrf.mxu0
  %v1429 = vadd.f32 0.0, %v1428
  %v1430 = vpop.f32.mrf.mxu0
  %v1431 = vpop.f32.mrf.mxu0
  %v1432 = vadd.f32 0.0, %v1431
  %v1433 = vpop.f32.mrf.mxu0
  %1434 = vmatprep.mubr.bf16.mxu0 0
  %1435 = vmatmul.mubr.bf16.gmra.mxu0 %v979
  %v1436 = vpop.f32.mrf.mxu0
  %v1437 = vadd.f32 0.0, %v1436
  %v1438 = vpop.f32.mrf.mxu0
  %v1439 = vpop.f32.mrf.mxu0
  %v1440 = vadd.f32 0.0, %v1439
  %v1441 = vpop.f32.mrf.mxu0
  %1442 = vmatprep.mubr.bf16.mxu0 0
  %1443 = vmatmul.mubr.bf16.gmra.mxu0 %v980
  %v1444 = vpop.f32.mrf.mxu0
  %v1445 = vadd.f32 0.0, %v1444
  %v1446 = vpop.f32.mrf.mxu0
  %v1447 = vpop.f32.mrf.mxu0
  %v1448 = vadd.f32 0.0, %v1447
  %v1449 = vpop.f32.mrf.mxu0
  %1450 = vmatprep.mubr.bf16.mxu0 0
  %1451 = vmatmul.mubr.bf16.gmra.mxu0 %v981
  %v1452 = vpop.f32.mrf.mxu0
  %v1453 = vadd.f32 0.0, %v1452
  %v1454 = vpop.f32.mrf.mxu0
  %v1455 = vpop.f32.mrf.mxu0
  %v1456 = vadd.f32 0.0, %v1455
  %v1457 = vpop.f32.mrf.mxu0
  %1458 = vmatprep.mubr.bf16.mxu0 0
  %1459 = vmatmul.mubr.bf16.gmra.mxu0 %v982
  %v1460 = vpop.f32.mrf.mxu0
  %v1461 = vadd.f32 0.0, %v1460
  %v1462 = vpop.f32.mrf.mxu0
  %v1463 = vpop.f32.mrf.mxu0
  %v1464 = vadd.f32 0.0, %v1463
  %v1465 = vpop.f32.mrf.mxu0
  %1466 = vmatprep.mubr.bf16.mxu0 0
  %1467 = vmatmul.mubr.bf16.gmra.mxu0 %v983
  %v1468 = vpop.f32.mrf.mxu0
  %v1469 = vadd.f32 0.0, %v1468
  %v1470 = vpop.f32.mrf.mxu0
  %v1471 = vpop.f32.mrf.mxu0
  %v1472 = vadd.f32 0.0, %v1471
  %v1473 = vpop.f32.mrf.mxu0
  %1474 = vmatprep.mubr.bf16.mxu0 0
  %1475 = vmatmul.mubr.bf16.gmra.mxu0 %v984
  %v1476 = vpop.f32.mrf.mxu0
  %v1477 = vadd.f32 0.0, %v1476
  %v1478 = vpop.f32.mrf.mxu0
  %v1479 = vpop.f32.mrf.mxu0
  %v1480 = vadd.f32 0.0, %v1479
  %v1481 = vpop.f32.mrf.mxu0
  %1482 = vmatprep.mubr.bf16.mxu0 0
  %1483 = vmatmul.mubr.bf16.gmra.mxu0 %v985
  %v1484 = vpop.f32.mrf.mxu0
  %v1485 = vadd.f32 0.0, %v1484
  %v1486 = vpop.f32.mrf.mxu0
  %v1487 = vpop.f32.mrf.mxu0
  %v1488 = vadd.f32 0.0, %v1487
  %v1489 = vpop.f32.mrf.mxu0
  %1490 = vdwg.mxu0
  %v1491 = vld [vmem:[%s12] sm:$0x1]
  %v1493 = vlaneseq
  %v1494 = vshrl.u32 %v1493, 7
  %v1495 = vsub.s32 0, %v1494
  %v1496 = vrot.slane %v1491, %v1495
  %v1498 = vmul.f32 %v1429, %v1496
  %v1499 = vmul.f32 %v1432, %v1496
  %v1500 = vmul.f32 %v1437, %v1496
  %v1501 = vmul.f32 %v1440, %v1496
  %v1502 = vmul.f32 %v1445, %v1496
  %v1503 = vmul.f32 %v1448, %v1496
  %v1504 = vmul.f32 %v1453, %v1496
  %v1505 = vmul.f32 %v1456, %v1496
  %v1506 = vmul.f32 %v1461, %v1496
  %v1507 = vmul.f32 %v1464, %v1496
  %v1508 = vmul.f32 %v1469, %v1496
  %v1509 = vmul.f32 %v1472, %v1496
  %v1510 = vmul.f32 %v1477, %v1496
  %v1511 = vmul.f32 %v1480, %v1496
  %v1512 = vmul.f32 %v1485, %v1496
  %v1513 = vmul.f32 %v1488, %v1496
  %v1514 = vld [vmem:[%s13] sm:$0x1]
  %v1516 = vlaneseq
  %v1517 = vshrl.u32 %v1516, 7
  %v1518 = vsub.s32 0, %v1517
  %v1519 = vrot.slane %v1514, %v1518
  %v1521 = vadd.f32 %v1498, %v1519
  %v1522 = vadd.f32 %v1499, %v1519
  %v1523 = vadd.f32 %v1500, %v1519
  %v1524 = vadd.f32 %v1501, %v1519
  %v1525 = vadd.f32 %v1502, %v1519
  %v1526 = vadd.f32 %v1503, %v1519
  %v1527 = vadd.f32 %v1504, %v1519
  %v1528 = vadd.f32 %v1505, %v1519
  %v1529 = vadd.f32 %v1506, %v1519
  %v1530 = vadd.f32 %v1507, %v1519
  %v1531 = vadd.f32 %v1508, %v1519
  %v1532 = vadd.f32 %v1509, %v1519
  %v1533 = vadd.f32 %v1510, %v1519
  %v1534 = vadd.f32 %v1511, %v1519
  %v1535 = vadd.f32 %v1512, %v1519
  %v1536 = vadd.f32 %v1513, %v1519
  %v1537 = vmul.f32 %v1521, 0.5
  %v1538 = vmul.f32 %v1522, 0.5
  %v1539 = vmul.f32 %v1523, 0.5
  %v1540 = vmul.f32 %v1524, 0.5
  %v1541 = vmul.f32 %v1525, 0.5
  %v1542 = vmul.f32 %v1526, 0.5
  %v1543 = vmul.f32 %v1527, 0.5
  %v1544 = vmul.f32 %v1528, 0.5
  %v1545 = vmul.f32 %v1529, 0.5
  %v1546 = vmul.f32 %v1530, 0.5
  %v1547 = vmul.f32 %v1531, 0.5
  %v1548 = vmul.f32 %v1532, 0.5
  %v1549 = vmul.f32 %v1533, 0.5
  %v1550 = vmul.f32 %v1534, 0.5
  %v1551 = vmul.f32 %v1535, 0.5
  %v1552 = vmul.f32 %v1536, 0.5
  %v1553 = vmul.f32 %v1521, 0.70710677
  %v1554 = vmul.f32 %v1522, 0.70710677
  %v1555 = vmul.f32 %v1523, 0.70710677
  %v1556 = vmul.f32 %v1524, 0.70710677
  %v1557 = vmul.f32 %v1525, 0.70710677
  %v1558 = vmul.f32 %v1526, 0.70710677
  %v1559 = vmul.f32 %v1527, 0.70710677
  %v1560 = vmul.f32 %v1528, 0.70710677
  %v1561 = vmul.f32 %v1529, 0.70710677
  %v1562 = vmul.f32 %v1530, 0.70710677
  %v1563 = vmul.f32 %v1531, 0.70710677
  %v1564 = vmul.f32 %v1532, 0.70710677
  %v1565 = vmul.f32 %v1533, 0.70710677
  %v1566 = vmul.f32 %v1534, 0.70710677
  %v1567 = vmul.f32 %v1535, 0.70710677
  %v1568 = vmul.f32 %v1536, 0.70710677
  %v1569 = verf.f32.pop %v1553
  %v1570 = verf.f32.pop %v1554
  %v1571 = verf.f32.pop %v1555
  %v1572 = verf.f32.pop %v1556
  %v1573 = verf.f32.pop %v1557
  %v1574 = verf.f32.pop %v1558
  %v1575 = verf.f32.pop %v1559
  %v1576 = verf.f32.pop %v1560
  %v1577 = verf.f32.pop %v1561
  %v1578 = verf.f32.pop %v1562
  %v1579 = verf.f32.pop %v1563
  %v1580 = verf.f32.pop %v1564
  %v1581 = verf.f32.pop %v1565
  %v1582 = verf.f32.pop %v1566
  %v1583 = verf.f32.pop %v1567
  %v1584 = verf.f32.pop %v1568
  %v1585 = vadd.f32 %v1569, 1.0
  %v1586 = vadd.f32 %v1570, 1.0
  %v1587 = vadd.f32 %v1571, 1.0
  %v1588 = vadd.f32 %v1572, 1.0
  %v1589 = vadd.f32 %v1573, 1.0
  %v1590 = vadd.f32 %v1574, 1.0
  %v1591 = vadd.f32 %v1575, 1.0
  %v1592 = vadd.f32 %v1576, 1.0
  %v1593 = vadd.f32 %v1577, 1.0
  %v1594 = vadd.f32 %v1578, 1.0
  %v1595 = vadd.f32 %v1579, 1.0
  %v1596 = vadd.f32 %v1580, 1.0
  %v1597 = vadd.f32 %v1581, 1.0
  %v1598 = vadd.f32 %v1582, 1.0
  %v1599 = vadd.f32 %v1583, 1.0
  %v1600 = vadd.f32 %v1584, 1.0
  %v1601 = vmul.f32 %v1537, %v1585
  %v1602 = vmul.f32 %v1538, %v1586
  %v1603 = vmul.f32 %v1539, %v1587
  %v1604 = vmul.f32 %v1540, %v1588
  %v1605 = vmul.f32 %v1541, %v1589
  %v1606 = vmul.f32 %v1542, %v1590
  %v1607 = vmul.f32 %v1543, %v1591
  %v1608 = vmul.f32 %v1544, %v1592
  %v1609 = vmul.f32 %v1545, %v1593
  %v1610 = vmul.f32 %v1546, %v1594
  %v1611 = vmul.f32 %v1547, %v1595
  %v1612 = vmul.f32 %v1548, %v1596
  %v1613 = vmul.f32 %v1549, %v1597
  %v1614 = vmul.f32 %v1550, %v1598
  %v1615 = vmul.f32 %v1551, %v1599
  %v1616 = vmul.f32 %v1552, %v1600
  %v1617 = vpack.c.bf16 %v1602, %v1601
  %v1618 = vpack.c.bf16 %v1604, %v1603
  %v1619 = vpack.c.bf16 %v1606, %v1605
  %v1620 = vpack.c.bf16 %v1608, %v1607
  %v1621 = vpack.c.bf16 %v1610, %v1609
  %v1622 = vpack.c.bf16 %v1612, %v1611
  %v1623 = vpack.c.bf16 %v1614, %v1613
  %v1624 = vpack.c.bf16 %v1616, %v1615
  %v1625 = vld [vmem:[%s6] sm:$0xf]
  %v1626 = vld [vmem:[%s6 + $0x4] sm:$0xf]
  %v1627 = vld [vmem:[%s6 + $0x8] sm:$0xf]
  %v1628 = vld [vmem:[%s6 + $0xc] sm:$0xf]
  %v1629 = vld [vmem:[%s6 + $0x10] sm:$0xf]
  %v1630 = vld [vmem:[%s6 + $0x14] sm:$0xf]
  %v1631 = vld [vmem:[%s6 + $0x18] sm:$0xf]
  %v1632 = vld [vmem:[%s6 + $0x1c] sm:$0xf]
  %v1633 = vld [vmem:[%s6 + $0x20] sm:$0xf]
  %v1634 = vld [vmem:[%s6 + $0x24] sm:$0xf]
  %v1635 = vld [vmem:[%s6 + $0x28] sm:$0xf]
  %v1636 = vld [vmem:[%s6 + $0x2c] sm:$0xf]
  %v1637 = vld [vmem:[%s6 + $0x30] sm:$0xf]
  %v1638 = vld [vmem:[%s6 + $0x34] sm:$0xf]
  %v1639 = vld [vmem:[%s6 + $0x38] sm:$0xf]
  %v1640 = vld [vmem:[%s6 + $0x3c] sm:$0xf]
  %v1657 = vunpack.c.l.b16 %v1625
  %v1658 = vunpack.c.l.b16 %v1626
  %v1659 = vunpack.c.l.b16 %v1627
  %v1660 = vunpack.c.l.b16 %v1628
  %v1661 = vunpack.c.l.b16 %v1629
  %v1662 = vunpack.c.l.b16 %v1630
  %v1663 = vunpack.c.l.b16 %v1631
  %v1664 = vunpack.c.l.b16 %v1632
  %v1665 = vunpack.c.l.b16 %v1633
  %v1666 = vunpack.c.l.b16 %v1634
  %v1667 = vunpack.c.l.b16 %v1635
  %v1668 = vunpack.c.l.b16 %v1636
  %v1669 = vunpack.c.l.b16 %v1637
  %v1670 = vunpack.c.l.b16 %v1638
  %v1671 = vunpack.c.l.b16 %v1639
  %v1672 = vunpack.c.l.b16 %v1640
  %v1673 = vpack.c.b16 %v1658, %v1657
  %v1674 = vpack.c.b16 %v1660, %v1659
  %v1675 = vpack.c.b16 %v1662, %v1661
  %v1676 = vpack.c.b16 %v1664, %v1663
  %v1677 = vpack.c.b16 %v1666, %v1665
  %v1678 = vpack.c.b16 %v1668, %v1667
  %v1679 = vpack.c.b16 %v1670, %v1669
  %v1680 = vpack.c.b16 %v1672, %v1671
  %1689 = vmatprep.subr.bf16.mxu0 0
  %1690 = vmatpush1.bf16.msra.mxu0 %v1680
  %1691 = vmatprep.subr.bf16.mxu0 0
  %1692 = vmatpush1.bf16.msra.mxu0 %v1679
  %1693 = vmatprep.subr.bf16.mxu0 0
  %1694 = vmatpush1.bf16.msra.mxu0 %v1678
  %1695 = vmatprep.subr.bf16.mxu0 0
  %1696 = vmatpush1.bf16.msra.mxu0 %v1677
  %1697 = vmatprep.subr.bf16.mxu0 0
  %1698 = vmatpush1.bf16.msra.mxu0 %v1676
  %1699 = vmatprep.subr.bf16.mxu0 0
  %1700 = vmatpush1.bf16.msra.mxu0 %v1675
  %1701 = vmatprep.subr.bf16.mxu0 0
  %1702 = vmatpush1.bf16.msra.mxu0 %v1674
  %1703 = vmatprep.subr.bf16.mxu0 0
  %1704 = vmatpush1.bf16.msra.mxu0 %v1673
  %1705 = vmatprep.subr.bf16.mxu0 0
  %1706 = vmatpush2.bf16.msra.mxu0 0
  %1707 = vmatprep.subr.bf16.mxu0 0
  %1708 = vmatpush2.bf16.msra.mxu0 0
  %1709 = vmatprep.subr.bf16.mxu0 0
  %1710 = vmatpush2.bf16.msra.mxu0 0
  %1711 = vmatprep.subr.bf16.mxu0 0
  %1712 = vmatpush2.bf16.msra.mxu0 0
  %1713 = vmatprep.subr.bf16.mxu0 0
  %1714 = vmatpush2.bf16.msra.mxu0 0
  %1715 = vmatprep.subr.bf16.mxu0 0
  %1716 = vmatpush2.bf16.msra.mxu0 0
  %1717 = vmatprep.subr.bf16.mxu0 0
  %1718 = vmatpush2.bf16.msra.mxu0 0
  %1719 = vmatprep.subr.bf16.mxu0 0
  %1720 = vmatpush2.bf16.msra.mxu0 0
  %1721 = vmatprep.mubr.bf16.mxu0 0
  %1722 = vmatmul.mubr.bf16.gmra.mxu0 %v1617
  %v1723 = vpop.f32.mrf.mxu0
  %v1724 = vadd.f32 0.0, %v1723
  %v1725 = vpop.f32.mrf.mxu0
  %v1726 = vpop.f32.mrf.mxu0
  %v1727 = vadd.f32 0.0, %v1726
  %v1728 = vpop.f32.mrf.mxu0
  %1729 = vmatprep.mubr.bf16.mxu0 0
  %1730 = vmatmul.mubr.bf16.gmra.mxu0 %v1618
  %v1731 = vpop.f32.mrf.mxu0
  %v1732 = vadd.f32 0.0, %v1731
  %v1733 = vpop.f32.mrf.mxu0
  %v1734 = vpop.f32.mrf.mxu0
  %v1735 = vadd.f32 0.0, %v1734
  %v1736 = vpop.f32.mrf.mxu0
  %1737 = vmatprep.mubr.bf16.mxu0 0
  %1738 = vmatmul.mubr.bf16.gmra.mxu0 %v1619
  %v1739 = vpop.f32.mrf.mxu0
  %v1740 = vadd.f32 0.0, %v1739
  %v1741 = vpop.f32.mrf.mxu0
  %v1742 = vpop.f32.mrf.mxu0
  %v1743 = vadd.f32 0.0, %v1742
  %v1744 = vpop.f32.mrf.mxu0
  %1745 = vmatprep.mubr.bf16.mxu0 0
  %1746 = vmatmul.mubr.bf16.gmra.mxu0 %v1620
  %v1747 = vpop.f32.mrf.mxu0
  %v1748 = vadd.f32 0.0, %v1747
  %v1749 = vpop.f32.mrf.mxu0
  %v1750 = vpop.f32.mrf.mxu0
  %v1751 = vadd.f32 0.0, %v1750
  %v1752 = vpop.f32.mrf.mxu0
  %1753 = vmatprep.mubr.bf16.mxu0 0
  %1754 = vmatmul.mubr.bf16.gmra.mxu0 %v1621
  %v1755 = vpop.f32.mrf.mxu0
  %v1756 = vadd.f32 0.0, %v1755
  %v1757 = vpop.f32.mrf.mxu0
  %v1758 = vpop.f32.mrf.mxu0
  %v1759 = vadd.f32 0.0, %v1758
  %v1760 = vpop.f32.mrf.mxu0
  %1761 = vmatprep.mubr.bf16.mxu0 0
  %1762 = vmatmul.mubr.bf16.gmra.mxu0 %v1622
  %v1763 = vpop.f32.mrf.mxu0
  %v1764 = vadd.f32 0.0, %v1763
  %v1765 = vpop.f32.mrf.mxu0
  %v1766 = vpop.f32.mrf.mxu0
  %v1767 = vadd.f32 0.0, %v1766
  %v1768 = vpop.f32.mrf.mxu0
  %1769 = vmatprep.mubr.bf16.mxu0 0
  %1770 = vmatmul.mubr.bf16.gmra.mxu0 %v1623
  %v1771 = vpop.f32.mrf.mxu0
  %v1772 = vadd.f32 0.0, %v1771
  %v1773 = vpop.f32.mrf.mxu0
  %v1774 = vpop.f32.mrf.mxu0
  %v1775 = vadd.f32 0.0, %v1774
  %v1776 = vpop.f32.mrf.mxu0
  %1777 = vmatprep.mubr.bf16.mxu0 0
  %1778 = vmatmul.mubr.bf16.gmra.mxu0 %v1624
  %v1779 = vpop.f32.mrf.mxu0
  %v1780 = vadd.f32 0.0, %v1779
  %v1781 = vpop.f32.mrf.mxu0
  %v1782 = vpop.f32.mrf.mxu0
  %v1783 = vadd.f32 0.0, %v1782
  %v1784 = vpop.f32.mrf.mxu0
  %1785 = vdwg.mxu0
  %v1786 = vpack.c.bf16 %v1727, %v1724
  %v1787 = vpack.c.bf16 %v1735, %v1732
  %v1788 = vpack.c.bf16 %v1743, %v1740
  %v1789 = vpack.c.bf16 %v1751, %v1748
  %v1790 = vpack.c.bf16 %v1759, %v1756
  %v1791 = vpack.c.bf16 %v1767, %v1764
  %v1792 = vpack.c.bf16 %v1775, %v1772
  %v1793 = vpack.c.bf16 %v1783, %v1780
  %1794 = vmatprep.subr.bf16.mxu0 0
  %1795 = vmatpush1.bf16.msra.mxu0 %v1793
  %1796 = vmatprep.subr.bf16.mxu0 0
  %1797 = vmatpush1.bf16.msra.mxu0 %v1792
  %1798 = vmatprep.subr.bf16.mxu0 0
  %1799 = vmatpush1.bf16.msra.mxu0 %v1791
  %1800 = vmatprep.subr.bf16.mxu0 0
  %1801 = vmatpush1.bf16.msra.mxu0 %v1790
  %1802 = vmatprep.subr.bf16.mxu0 0
  %1803 = vmatpush1.bf16.msra.mxu0 %v1789
  %1804 = vmatprep.subr.bf16.mxu0 0
  %1805 = vmatpush1.bf16.msra.mxu0 %v1788
  %1806 = vmatprep.subr.bf16.mxu0 0
  %1807 = vmatpush1.bf16.msra.mxu0 %v1787
  %1808 = vmatprep.subr.bf16.mxu0 0
  %1809 = vmatpush1.bf16.msra.mxu0 %v1786
  %1810 = vmatprep.subr.bf16.mxu0 0
  %1811 = vmatpush2.bf16.msra.mxu0 0
  %1812 = vmatprep.subr.bf16.mxu0 0
  %1813 = vmatpush2.bf16.msra.mxu0 0
  %1814 = vmatprep.subr.bf16.mxu0 0
  %1815 = vmatpush2.bf16.msra.mxu0 0
  %1816 = vmatprep.subr.bf16.mxu0 0
  %1817 = vmatpush2.bf16.msra.mxu0 0
  %1818 = vmatprep.subr.bf16.mxu0 0
  %1819 = vmatpush2.bf16.msra.mxu0 0
  %1820 = vmatprep.subr.bf16.mxu0 0
  %1821 = vmatpush2.bf16.msra.mxu0 0
  %1822 = vmatprep.subr.bf16.mxu0 0
  %1823 = vmatpush2.bf16.msra.mxu0 0
  %1824 = vmatprep.subr.bf16.mxu0 0
  %1825 = vmatpush2.bf16.msra.mxu0 0
  %1826 = vmatprep.mubr.bf16.mxu0 0
  %1827 = vmatmul.mubr.bf16.gmra.mxu0 %v978
  %v1828 = vpop.f32.mrf.mxu0
  %v1829 = vadd.f32 0.0, %v1828
  %v1830 = vpop.f32.mrf.mxu0
  %v1831 = vpop.f32.mrf.mxu0
  %v1832 = vadd.f32 0.0, %v1831
  %v1833 = vpop.f32.mrf.mxu0
  %1834 = vmatprep.mubr.bf16.mxu0 0
  %1835 = vmatmul.mubr.bf16.gmra.mxu0 %v979
  %v1836 = vpop.f32.mrf.mxu0
  %v1837 = vadd.f32 0.0, %v1836
  %v1838 = vpop.f32.mrf.mxu0
  %v1839 = vpop.f32.mrf.mxu0
  %v1840 = vadd.f32 0.0, %v1839
  %v1841 = vpop.f32.mrf.mxu0
  %1842 = vmatprep.mubr.bf16.mxu0 0
  %1843 = vmatmul.mubr.bf16.gmra.mxu0 %v980
  %v1844 = vpop.f32.mrf.mxu0
  %v1845 = vadd.f32 0.0, %v1844
  %v1846 = vpop.f32.mrf.mxu0
  %v1847 = vpop.f32.mrf.mxu0
  %v1848 = vadd.f32 0.0, %v1847
  %v1849 = vpop.f32.mrf.mxu0
  %1850 = vmatprep.mubr.bf16.mxu0 0
  %1851 = vmatmul.mubr.bf16.gmra.mxu0 %v981
  %v1852 = vpop.f32.mrf.mxu0
  %v1853 = vadd.f32 0.0, %v1852
  %v1854 = vpop.f32.mrf.mxu0
  %v1855 = vpop.f32.mrf.mxu0
  %v1856 = vadd.f32 0.0, %v1855
  %v1857 = vpop.f32.mrf.mxu0
  %1858 = vmatprep.mubr.bf16.mxu0 0
  %1859 = vmatmul.mubr.bf16.gmra.mxu0 %v982
  %v1860 = vpop.f32.mrf.mxu0
  %v1861 = vadd.f32 0.0, %v1860
  %v1862 = vpop.f32.mrf.mxu0
  %v1863 = vpop.f32.mrf.mxu0
  %v1864 = vadd.f32 0.0, %v1863
  %v1865 = vpop.f32.mrf.mxu0
  %1866 = vmatprep.mubr.bf16.mxu0 0
  %1867 = vmatmul.mubr.bf16.gmra.mxu0 %v983
  %v1868 = vpop.f32.mrf.mxu0
  %v1869 = vadd.f32 0.0, %v1868
  %v1870 = vpop.f32.mrf.mxu0
  %v1871 = vpop.f32.mrf.mxu0
  %v1872 = vadd.f32 0.0, %v1871
  %v1873 = vpop.f32.mrf.mxu0
  %1874 = vmatprep.mubr.bf16.mxu0 0
  %1875 = vmatmul.mubr.bf16.gmra.mxu0 %v984
  %v1876 = vpop.f32.mrf.mxu0
  %v1877 = vadd.f32 0.0, %v1876
  %v1878 = vpop.f32.mrf.mxu0
  %v1879 = vpop.f32.mrf.mxu0
  %v1880 = vadd.f32 0.0, %v1879
  %v1881 = vpop.f32.mrf.mxu0
  %1882 = vmatprep.mubr.bf16.mxu0 0
  %1883 = vmatmul.mubr.bf16.gmra.mxu0 %v985
  %v1884 = vpop.f32.mrf.mxu0
  %v1885 = vadd.f32 0.0, %v1884
  %v1886 = vpop.f32.mrf.mxu0
  %v1887 = vpop.f32.mrf.mxu0
  %v1888 = vadd.f32 0.0, %v1887
  %v1889 = vpop.f32.mrf.mxu0
  %1890 = vdwg.mxu0
  %v1891 = vld [vmem:[%s14] sm:$0x1]
  %v1893 = vlaneseq
  %v1894 = vshrl.u32 %v1893, 7
  %v1895 = vsub.s32 0, %v1894
  %v1896 = vrot.slane %v1891, %v1895
  %v1898 = vmul.f32 %v1829, %v1896
  %v1899 = vmul.f32 %v1832, %v1896
  %v1900 = vmul.f32 %v1837, %v1896
  %v1901 = vmul.f32 %v1840, %v1896
  %v1902 = vmul.f32 %v1845, %v1896
  %v1903 = vmul.f32 %v1848, %v1896
  %v1904 = vmul.f32 %v1853, %v1896
  %v1905 = vmul.f32 %v1856, %v1896
  %v1906 = vmul.f32 %v1861, %v1896
  %v1907 = vmul.f32 %v1864, %v1896
  %v1908 = vmul.f32 %v1869, %v1896
  %v1909 = vmul.f32 %v1872, %v1896
  %v1910 = vmul.f32 %v1877, %v1896
  %v1911 = vmul.f32 %v1880, %v1896
  %v1912 = vmul.f32 %v1885, %v1896
  %v1913 = vmul.f32 %v1888, %v1896
  %v1914 = vld [vmem:[%s15] sm:$0x1]
  %v1916 = vlaneseq
  %v1917 = vshrl.u32 %v1916, 7
  %v1918 = vsub.s32 0, %v1917
  %v1919 = vrot.slane %v1914, %v1918
  %v1921 = vadd.f32 %v1898, %v1919
  %v1922 = vadd.f32 %v1899, %v1919
  %v1923 = vadd.f32 %v1900, %v1919
  %v1924 = vadd.f32 %v1901, %v1919
  %v1925 = vadd.f32 %v1902, %v1919
  %v1926 = vadd.f32 %v1903, %v1919
  %v1927 = vadd.f32 %v1904, %v1919
  %v1928 = vadd.f32 %v1905, %v1919
  %v1929 = vadd.f32 %v1906, %v1919
  %v1930 = vadd.f32 %v1907, %v1919
  %v1931 = vadd.f32 %v1908, %v1919
  %v1932 = vadd.f32 %v1909, %v1919
  %v1933 = vadd.f32 %v1910, %v1919
  %v1934 = vadd.f32 %v1911, %v1919
  %v1935 = vadd.f32 %v1912, %v1919
  %v1936 = vadd.f32 %v1913, %v1919
  %v1937 = vmul.f32 %v1921, 0.5
  %v1938 = vmul.f32 %v1922, 0.5
  %v1939 = vmul.f32 %v1923, 0.5
  %v1940 = vmul.f32 %v1924, 0.5
  %v1941 = vmul.f32 %v1925, 0.5
  %v1942 = vmul.f32 %v1926, 0.5
  %v1943 = vmul.f32 %v1927, 0.5
  %v1944 = vmul.f32 %v1928, 0.5
  %v1945 = vmul.f32 %v1929, 0.5
  %v1946 = vmul.f32 %v1930, 0.5
  %v1947 = vmul.f32 %v1931, 0.5
  %v1948 = vmul.f32 %v1932, 0.5
  %v1949 = vmul.f32 %v1933, 0.5
  %v1950 = vmul.f32 %v1934, 0.5
  %v1951 = vmul.f32 %v1935, 0.5
  %v1952 = vmul.f32 %v1936, 0.5
  %v1953 = vmul.f32 %v1921, 0.70710677
  %v1954 = vmul.f32 %v1922, 0.70710677
  %v1955 = vmul.f32 %v1923, 0.70710677
  %v1956 = vmul.f32 %v1924, 0.70710677
  %v1957 = vmul.f32 %v1925, 0.70710677
  %v1958 = vmul.f32 %v1926, 0.70710677
  %v1959 = vmul.f32 %v1927, 0.70710677
  %v1960 = vmul.f32 %v1928, 0.70710677
  %v1961 = vmul.f32 %v1929, 0.70710677
  %v1962 = vmul.f32 %v1930, 0.70710677
  %v1963 = vmul.f32 %v1931, 0.70710677
  %v1964 = vmul.f32 %v1932, 0.70710677
  %v1965 = vmul.f32 %v1933, 0.70710677
  %v1966 = vmul.f32 %v1934, 0.70710677
  %v1967 = vmul.f32 %v1935, 0.70710677
  %v1968 = vmul.f32 %v1936, 0.70710677
  %v1969 = verf.f32.pop %v1953
  %v1970 = verf.f32.pop %v1954
  %v1971 = verf.f32.pop %v1955
  %v1972 = verf.f32.pop %v1956
  %v1973 = verf.f32.pop %v1957
  %v1974 = verf.f32.pop %v1958
  %v1975 = verf.f32.pop %v1959
  %v1976 = verf.f32.pop %v1960
  %v1977 = verf.f32.pop %v1961
  %v1978 = verf.f32.pop %v1962
  %v1979 = verf.f32.pop %v1963
  %v1980 = verf.f32.pop %v1964
  %v1981 = verf.f32.pop %v1965
  %v1982 = verf.f32.pop %v1966
  %v1983 = verf.f32.pop %v1967
  %v1984 = verf.f32.pop %v1968
  %v1985 = vadd.f32 %v1969, 1.0
  %v1986 = vadd.f32 %v1970, 1.0
  %v1987 = vadd.f32 %v1971, 1.0
  %v1988 = vadd.f32 %v1972, 1.0
  %v1989 = vadd.f32 %v1973, 1.0
  %v1990 = vadd.f32 %v1974, 1.0
  %v1991 = vadd.f32 %v1975, 1.0
  %v1992 = vadd.f32 %v1976, 1.0
  %v1993 = vadd.f32 %v1977, 1.0
  %v1994 = vadd.f32 %v1978, 1.0
  %v1995 = vadd.f32 %v1979, 1.0
  %v1996 = vadd.f32 %v1980, 1.0
  %v1997 = vadd.f32 %v1981, 1.0
  %v1998 = vadd.f32 %v1982, 1.0
  %v1999 = vadd.f32 %v1983, 1.0
  %v2000 = vadd.f32 %v1984, 1.0
  %v2001 = vmul.f32 %v1937, %v1985
  %v2002 = vmul.f32 %v1938, %v1986
  %v2003 = vmul.f32 %v1939, %v1987
  %v2004 = vmul.f32 %v1940, %v1988
  %v2005 = vmul.f32 %v1941, %v1989
  %v2006 = vmul.f32 %v1942, %v1990
  %v2007 = vmul.f32 %v1943, %v1991
  %v2008 = vmul.f32 %v1944, %v1992
  %v2009 = vmul.f32 %v1945, %v1993
  %v2010 = vmul.f32 %v1946, %v1994
  %v2011 = vmul.f32 %v1947, %v1995
  %v2012 = vmul.f32 %v1948, %v1996
  %v2013 = vmul.f32 %v1949, %v1997
  %v2014 = vmul.f32 %v1950, %v1998
  %v2015 = vmul.f32 %v1951, %v1999
  %v2016 = vmul.f32 %v1952, %v2000
  %v2017 = vpack.c.bf16 %v2002, %v2001
  %v2018 = vpack.c.bf16 %v2004, %v2003
  %v2019 = vpack.c.bf16 %v2006, %v2005
  %v2020 = vpack.c.bf16 %v2008, %v2007
  %v2021 = vpack.c.bf16 %v2010, %v2009
  %v2022 = vpack.c.bf16 %v2012, %v2011
  %v2023 = vpack.c.bf16 %v2014, %v2013
  %v2024 = vpack.c.bf16 %v2016, %v2015
  %v2025 = vld [vmem:[%s7] sm:$0xf]
  %v2026 = vld [vmem:[%s7 + $0x4] sm:$0xf]
  %v2027 = vld [vmem:[%s7 + $0x8] sm:$0xf]
  %v2028 = vld [vmem:[%s7 + $0xc] sm:$0xf]
  %v2029 = vld [vmem:[%s7 + $0x10] sm:$0xf]
  %v2030 = vld [vmem:[%s7 + $0x14] sm:$0xf]
  %v2031 = vld [vmem:[%s7 + $0x18] sm:$0xf]
  %v2032 = vld [vmem:[%s7 + $0x1c] sm:$0xf]
  %v2033 = vld [vmem:[%s7 + $0x20] sm:$0xf]
  %v2034 = vld [vmem:[%s7 + $0x24] sm:$0xf]
  %v2035 = vld [vmem:[%s7 + $0x28] sm:$0xf]
  %v2036 = vld [vmem:[%s7 + $0x2c] sm:$0xf]
  %v2037 = vld [vmem:[%s7 + $0x30] sm:$0xf]
  %v2038 = vld [vmem:[%s7 + $0x34] sm:$0xf]
  %v2039 = vld [vmem:[%s7 + $0x38] sm:$0xf]
  %v2040 = vld [vmem:[%s7 + $0x3c] sm:$0xf]
  %v2057 = vunpack.c.l.b16 %v2025
  %v2058 = vunpack.c.l.b16 %v2026
  %v2059 = vunpack.c.l.b16 %v2027
  %v2060 = vunpack.c.l.b16 %v2028
  %v2061 = vunpack.c.l.b16 %v2029
  %v2062 = vunpack.c.l.b16 %v2030
  %v2063 = vunpack.c.l.b16 %v2031
  %v2064 = vunpack.c.l.b16 %v2032
  %v2065 = vunpack.c.l.b16 %v2033
  %v2066 = vunpack.c.l.b16 %v2034
  %v2067 = vunpack.c.l.b16 %v2035
  %v2068 = vunpack.c.l.b16 %v2036
  %v2069 = vunpack.c.l.b16 %v2037
  %v2070 = vunpack.c.l.b16 %v2038
  %v2071 = vunpack.c.l.b16 %v2039
  %v2072 = vunpack.c.l.b16 %v2040
  %v2073 = vpack.c.b16 %v2058, %v2057
  %v2074 = vpack.c.b16 %v2060, %v2059
  %v2075 = vpack.c.b16 %v2062, %v2061
  %v2076 = vpack.c.b16 %v2064, %v2063
  %v2077 = vpack.c.b16 %v2066, %v2065
  %v2078 = vpack.c.b16 %v2068, %v2067
  %v2079 = vpack.c.b16 %v2070, %v2069
  %v2080 = vpack.c.b16 %v2072, %v2071
  %2089 = vmatprep.subr.bf16.mxu0 0
  %2090 = vmatpush1.bf16.msra.mxu0 %v2080
  %2091 = vmatprep.subr.bf16.mxu0 0
  %2092 = vmatpush1.bf16.msra.mxu0 %v2079
  %2093 = vmatprep.subr.bf16.mxu0 0
  %2094 = vmatpush1.bf16.msra.mxu0 %v2078
  %2095 = vmatprep.subr.bf16.mxu0 0
  %2096 = vmatpush1.bf16.msra.mxu0 %v2077
  %2097 = vmatprep.subr.bf16.mxu0 0
  %2098 = vmatpush1.bf16.msra.mxu0 %v2076
  %2099 = vmatprep.subr.bf16.mxu0 0
  %2100 = vmatpush1.bf16.msra.mxu0 %v2075
  %2101 = vmatprep.subr.bf16.mxu0 0
  %2102 = vmatpush1.bf16.msra.mxu0 %v2074
  %2103 = vmatprep.subr.bf16.mxu0 0
  %2104 = vmatpush1.bf16.msra.mxu0 %v2073
  %2105 = vmatprep.subr.bf16.mxu0 0
  %2106 = vmatpush2.bf16.msra.mxu0 0
  %2107 = vmatprep.subr.bf16.mxu0 0
  %2108 = vmatpush2.bf16.msra.mxu0 0
  %2109 = vmatprep.subr.bf16.mxu0 0
  %2110 = vmatpush2.bf16.msra.mxu0 0
  %2111 = vmatprep.subr.bf16.mxu0 0
  %2112 = vmatpush2.bf16.msra.mxu0 0
  %2113 = vmatprep.subr.bf16.mxu0 0
  %2114 = vmatpush2.bf16.msra.mxu0 0
  %2115 = vmatprep.subr.bf16.mxu0 0
  %2116 = vmatpush2.bf16.msra.mxu0 0
  %2117 = vmatprep.subr.bf16.mxu0 0
  %2118 = vmatpush2.bf16.msra.mxu0 0
  %2119 = vmatprep.subr.bf16.mxu0 0
  %2120 = vmatpush2.bf16.msra.mxu0 0
  %2121 = vmatprep.mubr.bf16.mxu0 0
  %2122 = vmatmul.mubr.bf16.gmra.mxu0 %v2017
  %v2123 = vpop.f32.mrf.mxu0
  %v2124 = vadd.f32 0.0, %v2123
  %v2125 = vpop.f32.mrf.mxu0
  %v2126 = vpop.f32.mrf.mxu0
  %v2127 = vadd.f32 0.0, %v2126
  %v2128 = vpop.f32.mrf.mxu0
  %2129 = vmatprep.mubr.bf16.mxu0 0
  %2130 = vmatmul.mubr.bf16.gmra.mxu0 %v2018
  %v2131 = vpop.f32.mrf.mxu0
  %v2132 = vadd.f32 0.0, %v2131
  %v2133 = vpop.f32.mrf.mxu0
  %v2134 = vpop.f32.mrf.mxu0
  %v2135 = vadd.f32 0.0, %v2134
  %v2136 = vpop.f32.mrf.mxu0
  %2137 = vmatprep.mubr.bf16.mxu0 0
  %2138 = vmatmul.mubr.bf16.gmra.mxu0 %v2019
  %v2139 = vpop.f32.mrf.mxu0
  %v2140 = vadd.f32 0.0, %v2139
  %v2141 = vpop.f32.mrf.mxu0
  %v2142 = vpop.f32.mrf.mxu0
  %v2143 = vadd.f32 0.0, %v2142
  %v2144 = vpop.f32.mrf.mxu0
  %2145 = vmatprep.mubr.bf16.mxu0 0
  %2146 = vmatmul.mubr.bf16.gmra.mxu0 %v2020
  %v2147 = vpop.f32.mrf.mxu0
  %v2148 = vadd.f32 0.0, %v2147
  %v2149 = vpop.f32.mrf.mxu0
  %v2150 = vpop.f32.mrf.mxu0
  %v2151 = vadd.f32 0.0, %v2150
  %v2152 = vpop.f32.mrf.mxu0
  %2153 = vmatprep.mubr.bf16.mxu0 0
  %2154 = vmatmul.mubr.bf16.gmra.mxu0 %v2021
  %v2155 = vpop.f32.mrf.mxu0
  %v2156 = vadd.f32 0.0, %v2155
  %v2157 = vpop.f32.mrf.mxu0
  %v2158 = vpop.f32.mrf.mxu0
  %v2159 = vadd.f32 0.0, %v2158
  %v2160 = vpop.f32.mrf.mxu0
  %2161 = vmatprep.mubr.bf16.mxu0 0
  %2162 = vmatmul.mubr.bf16.gmra.mxu0 %v2022
  %v2163 = vpop.f32.mrf.mxu0
  %v2164 = vadd.f32 0.0, %v2163
  %v2165 = vpop.f32.mrf.mxu0
  %v2166 = vpop.f32.mrf.mxu0
  %v2167 = vadd.f32 0.0, %v2166
  %v2168 = vpop.f32.mrf.mxu0
  %2169 = vmatprep.mubr.bf16.mxu0 0
  %2170 = vmatmul.mubr.bf16.gmra.mxu0 %v2023
  %v2171 = vpop.f32.mrf.mxu0
  %v2172 = vadd.f32 0.0, %v2171
  %v2173 = vpop.f32.mrf.mxu0
  %v2174 = vpop.f32.mrf.mxu0
  %v2175 = vadd.f32 0.0, %v2174
  %v2176 = vpop.f32.mrf.mxu0
  %2177 = vmatprep.mubr.bf16.mxu0 0
  %2178 = vmatmul.mubr.bf16.gmra.mxu0 %v2024
  %v2179 = vpop.f32.mrf.mxu0
  %v2180 = vadd.f32 0.0, %v2179
  %v2181 = vpop.f32.mrf.mxu0
  %v2182 = vpop.f32.mrf.mxu0
  %v2183 = vadd.f32 0.0, %v2182
  %v2184 = vpop.f32.mrf.mxu0
  %2185 = vdwg.mxu0
  %v2186 = vpack.c.bf16 %v2127, %v2124
  %v2187 = vpack.c.bf16 %v2135, %v2132
  %v2188 = vpack.c.bf16 %v2143, %v2140
  %v2189 = vpack.c.bf16 %v2151, %v2148
  %v2190 = vpack.c.bf16 %v2159, %v2156
  %v2191 = vpack.c.bf16 %v2167, %v2164
  %v2192 = vpack.c.bf16 %v2175, %v2172
  %v2193 = vpack.c.bf16 %v2183, %v2180
  %2194 = vmatprep.subr.bf16.mxu0 0
  %2195 = vmatpush1.bf16.msra.mxu0 %v2193
  %2196 = vmatprep.subr.bf16.mxu0 0
  %2197 = vmatpush1.bf16.msra.mxu0 %v2192
  %2198 = vmatprep.subr.bf16.mxu0 0
  %2199 = vmatpush1.bf16.msra.mxu0 %v2191
  %2200 = vmatprep.subr.bf16.mxu0 0
  %2201 = vmatpush1.bf16.msra.mxu0 %v2190
  %2202 = vmatprep.subr.bf16.mxu0 0
  %2203 = vmatpush1.bf16.msra.mxu0 %v2189
  %2204 = vmatprep.subr.bf16.mxu0 0
  %2205 = vmatpush1.bf16.msra.mxu0 %v2188
  %2206 = vmatprep.subr.bf16.mxu0 0
  %2207 = vmatpush1.bf16.msra.mxu0 %v2187
  %2208 = vmatprep.subr.bf16.mxu0 0
  %2209 = vmatpush1.bf16.msra.mxu0 %v2186
  %2210 = vmatprep.subr.bf16.mxu0 0
  %2211 = vmatpush2.bf16.msra.mxu0 0
  %2212 = vmatprep.subr.bf16.mxu0 0
  %2213 = vmatpush2.bf16.msra.mxu0 0
  %2214 = vmatprep.subr.bf16.mxu0 0
  %2215 = vmatpush2.bf16.msra.mxu0 0
  %2216 = vmatprep.subr.bf16.mxu0 0
  %2217 = vmatpush2.bf16.msra.mxu0 0
  %2218 = vmatprep.subr.bf16.mxu0 0
  %2219 = vmatpush2.bf16.msra.mxu0 0
  %2220 = vmatprep.subr.bf16.mxu0 0
  %2221 = vmatpush2.bf16.msra.mxu0 0
  %2222 = vmatprep.subr.bf16.mxu0 0
  %2223 = vmatpush2.bf16.msra.mxu0 0
  %2224 = vmatprep.subr.bf16.mxu0 0
  %2225 = vmatpush2.bf16.msra.mxu0 0
  %2226 = vmatprep.mubr.bf16.mxu0 0
  %2227 = vmatmul.mubr.bf16.gmra.mxu0 %v978
  %v2228 = vpop.f32.mrf.mxu0
  %v2229 = vadd.f32 0.0, %v2228
  %v2230 = vpop.f32.mrf.mxu0
  %v2231 = vpop.f32.mrf.mxu0
  %v2232 = vadd.f32 0.0, %v2231
  %v2233 = vpop.f32.mrf.mxu0
  %2234 = vmatprep.mubr.bf16.mxu0 0
  %2235 = vmatmul.mubr.bf16.gmra.mxu0 %v979
  %v2236 = vpop.f32.mrf.mxu0
  %v2237 = vadd.f32 0.0, %v2236
  %v2238 = vpop.f32.mrf.mxu0
  %v2239 = vpop.f32.mrf.mxu0
  %v2240 = vadd.f32 0.0, %v2239
  %v2241 = vpop.f32.mrf.mxu0
  %2242 = vmatprep.mubr.bf16.mxu0 0
  %2243 = vmatmul.mubr.bf16.gmra.mxu0 %v980
  %v2244 = vpop.f32.mrf.mxu0
  %v2245 = vadd.f32 0.0, %v2244
  %v2246 = vpop.f32.mrf.mxu0
  %v2247 = vpop.f32.mrf.mxu0
  %v2248 = vadd.f32 0.0, %v2247
  %v2249 = vpop.f32.mrf.mxu0
  %2250 = vmatprep.mubr.bf16.mxu0 0
  %2251 = vmatmul.mubr.bf16.gmra.mxu0 %v981
  %v2252 = vpop.f32.mrf.mxu0
  %v2253 = vadd.f32 0.0, %v2252
  %v2254 = vpop.f32.mrf.mxu0
  %v2255 = vpop.f32.mrf.mxu0
  %v2256 = vadd.f32 0.0, %v2255
  %v2257 = vpop.f32.mrf.mxu0
  %2258 = vmatprep.mubr.bf16.mxu0 0
  %2259 = vmatmul.mubr.bf16.gmra.mxu0 %v982
  %v2260 = vpop.f32.mrf.mxu0
  %v2261 = vadd.f32 0.0, %v2260
  %v2262 = vpop.f32.mrf.mxu0
  %v2263 = vpop.f32.mrf.mxu0
  %v2264 = vadd.f32 0.0, %v2263
  %v2265 = vpop.f32.mrf.mxu0
  %2266 = vmatprep.mubr.bf16.mxu0 0
  %2267 = vmatmul.mubr.bf16.gmra.mxu0 %v983
  %v2268 = vpop.f32.mrf.mxu0
  %v2269 = vadd.f32 0.0, %v2268
  %v2270 = vpop.f32.mrf.mxu0
  %v2271 = vpop.f32.mrf.mxu0
  %v2272 = vadd.f32 0.0, %v2271
  %v2273 = vpop.f32.mrf.mxu0
  %2274 = vmatprep.mubr.bf16.mxu0 0
  %2275 = vmatmul.mubr.bf16.gmra.mxu0 %v984
  %v2276 = vpop.f32.mrf.mxu0
  %v2277 = vadd.f32 0.0, %v2276
  %v2278 = vpop.f32.mrf.mxu0
  %v2279 = vpop.f32.mrf.mxu0
  %v2280 = vadd.f32 0.0, %v2279
  %v2281 = vpop.f32.mrf.mxu0
  %2282 = vmatprep.mubr.bf16.mxu0 0
  %2283 = vmatmul.mubr.bf16.gmra.mxu0 %v985
  %v2284 = vpop.f32.mrf.mxu0
  %v2285 = vadd.f32 0.0, %v2284
  %v2286 = vpop.f32.mrf.mxu0
  %v2287 = vpop.f32.mrf.mxu0
  %v2288 = vadd.f32 0.0, %v2287
  %v2289 = vpop.f32.mrf.mxu0
  %2290 = vdwg.mxu0
  %v2291 = vld [vmem:[%s16] sm:$0x1]
  %v2293 = vlaneseq
  %v2294 = vshrl.u32 %v2293, 7
  %v2295 = vsub.s32 0, %v2294
  %v2296 = vrot.slane %v2291, %v2295
  %v2298 = vmul.f32 %v2229, %v2296
  %v2299 = vmul.f32 %v2232, %v2296
  %v2300 = vmul.f32 %v2237, %v2296
  %v2301 = vmul.f32 %v2240, %v2296
  %v2302 = vmul.f32 %v2245, %v2296
  %v2303 = vmul.f32 %v2248, %v2296
  %v2304 = vmul.f32 %v2253, %v2296
  %v2305 = vmul.f32 %v2256, %v2296
  %v2306 = vmul.f32 %v2261, %v2296
  %v2307 = vmul.f32 %v2264, %v2296
  %v2308 = vmul.f32 %v2269, %v2296
  %v2309 = vmul.f32 %v2272, %v2296
  %v2310 = vmul.f32 %v2277, %v2296
  %v2311 = vmul.f32 %v2280, %v2296
  %v2312 = vmul.f32 %v2285, %v2296
  %v2313 = vmul.f32 %v2288, %v2296
  %v2314 = vld [vmem:[%s17] sm:$0x1]
  %v2316 = vlaneseq
  %v2317 = vshrl.u32 %v2316, 7
  %v2318 = vsub.s32 0, %v2317
  %v2319 = vrot.slane %v2314, %v2318
  %v2321 = vadd.f32 %v2298, %v2319
  %v2322 = vadd.f32 %v2299, %v2319
  %v2323 = vadd.f32 %v2300, %v2319
  %v2324 = vadd.f32 %v2301, %v2319
  %v2325 = vadd.f32 %v2302, %v2319
  %v2326 = vadd.f32 %v2303, %v2319
  %v2327 = vadd.f32 %v2304, %v2319
  %v2328 = vadd.f32 %v2305, %v2319
  %v2329 = vadd.f32 %v2306, %v2319
  %v2330 = vadd.f32 %v2307, %v2319
  %v2331 = vadd.f32 %v2308, %v2319
  %v2332 = vadd.f32 %v2309, %v2319
  %v2333 = vadd.f32 %v2310, %v2319
  %v2334 = vadd.f32 %v2311, %v2319
  %v2335 = vadd.f32 %v2312, %v2319
  %v2336 = vadd.f32 %v2313, %v2319
  %v2337 = vmul.f32 %v2321, 0.5
  %v2338 = vmul.f32 %v2322, 0.5
  %v2339 = vmul.f32 %v2323, 0.5
  %v2340 = vmul.f32 %v2324, 0.5
  %v2341 = vmul.f32 %v2325, 0.5
  %v2342 = vmul.f32 %v2326, 0.5
  %v2343 = vmul.f32 %v2327, 0.5
  %v2344 = vmul.f32 %v2328, 0.5
  %v2345 = vmul.f32 %v2329, 0.5
  %v2346 = vmul.f32 %v2330, 0.5
  %v2347 = vmul.f32 %v2331, 0.5
  %v2348 = vmul.f32 %v2332, 0.5
  %v2349 = vmul.f32 %v2333, 0.5
  %v2350 = vmul.f32 %v2334, 0.5
  %v2351 = vmul.f32 %v2335, 0.5
  %v2352 = vmul.f32 %v2336, 0.5
  %v2353 = vmul.f32 %v2321, 0.70710677
  %v2354 = vmul.f32 %v2322, 0.70710677
  %v2355 = vmul.f32 %v2323, 0.70710677
  %v2356 = vmul.f32 %v2324, 0.70710677
  %v2357 = vmul.f32 %v2325, 0.70710677
  %v2358 = vmul.f32 %v2326, 0.70710677
  %v2359 = vmul.f32 %v2327, 0.70710677
  %v2360 = vmul.f32 %v2328, 0.70710677
  %v2361 = vmul.f32 %v2329, 0.70710677
  %v2362 = vmul.f32 %v2330, 0.70710677
  %v2363 = vmul.f32 %v2331, 0.70710677
  %v2364 = vmul.f32 %v2332, 0.70710677
  %v2365 = vmul.f32 %v2333, 0.70710677
  %v2366 = vmul.f32 %v2334, 0.70710677
  %v2367 = vmul.f32 %v2335, 0.70710677
  %v2368 = vmul.f32 %v2336, 0.70710677
  %v2369 = verf.f32.pop %v2353
  %v2370 = verf.f32.pop %v2354
  %v2371 = verf.f32.pop %v2355
  %v2372 = verf.f32.pop %v2356
  %v2373 = verf.f32.pop %v2357
  %v2374 = verf.f32.pop %v2358
  %v2375 = verf.f32.pop %v2359
  %v2376 = verf.f32.pop %v2360
  %v2377 = verf.f32.pop %v2361
  %v2378 = verf.f32.pop %v2362
  %v2379 = verf.f32.pop %v2363
  %v2380 = verf.f32.pop %v2364
  %v2381 = verf.f32.pop %v2365
  %v2382 = verf.f32.pop %v2366
  %v2383 = verf.f32.pop %v2367
  %v2384 = verf.f32.pop %v2368
  %v2385 = vadd.f32 %v2369, 1.0
  %v2386 = vadd.f32 %v2370, 1.0
  %v2387 = vadd.f32 %v2371, 1.0
  %v2388 = vadd.f32 %v2372, 1.0
  %v2389 = vadd.f32 %v2373, 1.0
  %v2390 = vadd.f32 %v2374, 1.0
  %v2391 = vadd.f32 %v2375, 1.0
  %v2392 = vadd.f32 %v2376, 1.0
  %v2393 = vadd.f32 %v2377, 1.0
  %v2394 = vadd.f32 %v2378, 1.0
  %v2395 = vadd.f32 %v2379, 1.0
  %v2396 = vadd.f32 %v2380, 1.0
  %v2397 = vadd.f32 %v2381, 1.0
  %v2398 = vadd.f32 %v2382, 1.0
  %v2399 = vadd.f32 %v2383, 1.0
  %v2400 = vadd.f32 %v2384, 1.0
  %v2401 = vmul.f32 %v2337, %v2385
  %v2402 = vmul.f32 %v2338, %v2386
  %v2403 = vmul.f32 %v2339, %v2387
  %v2404 = vmul.f32 %v2340, %v2388
  %v2405 = vmul.f32 %v2341, %v2389
  %v2406 = vmul.f32 %v2342, %v2390
  %v2407 = vmul.f32 %v2343, %v2391
  %v2408 = vmul.f32 %v2344, %v2392
  %v2409 = vmul.f32 %v2345, %v2393
  %v2410 = vmul.f32 %v2346, %v2394
  %v2411 = vmul.f32 %v2347, %v2395
  %v2412 = vmul.f32 %v2348, %v2396
  %v2413 = vmul.f32 %v2349, %v2397
  %v2414 = vmul.f32 %v2350, %v2398
  %v2415 = vmul.f32 %v2351, %v2399
  %v2416 = vmul.f32 %v2352, %v2400
  %v2417 = vld [vmem:[%s2] sm:$0xff]
  %v2418 = vld [vmem:[%s2 + $0x8] sm:$0xff]
  %v2419 = vld [vmem:[%s2 + $0x10] sm:$0xff]
  %v2420 = vld [vmem:[%s2 + $0x18] sm:$0xff]
  %v2421 = vld [vmem:[%s2 + $0x20] sm:$0xff]
  %v2422 = vld [vmem:[%s2 + $0x28] sm:$0xff]
  %v2423 = vld [vmem:[%s2 + $0x30] sm:$0xff]
  %v2424 = vld [vmem:[%s2 + $0x38] sm:$0xff]
  %v2425 = vld [vmem:[%s2 + $0x40] sm:$0xff]
  %v2426 = vld [vmem:[%s2 + $0x48] sm:$0xff]
  %v2427 = vld [vmem:[%s2 + $0x50] sm:$0xff]
  %v2428 = vld [vmem:[%s2 + $0x58] sm:$0xff]
  %v2429 = vld [vmem:[%s2 + $0x60] sm:$0xff]
  %v2430 = vld [vmem:[%s2 + $0x68] sm:$0xff]
  %v2431 = vld [vmem:[%s2 + $0x70] sm:$0xff]
  %v2432 = vld [vmem:[%s2 + $0x78] sm:$0xff]
  %2434 = vset.pattern.permute.xlu0 0
  %2435 = vperm.xlu0 %2434, %v2417
  %v2436 = vpop.permute.xlu0 %2435
  %2439 = vset.pattern.permute.xlu0 0
  %2440 = vperm.xlu0 %2439, %v2418
  %v2441 = vpop.permute.xlu0 %2440
  %2444 = vset.pattern.permute.xlu0 0
  %2445 = vperm.xlu0 %2444, %v2419
  %v2446 = vpop.permute.xlu0 %2445
  %2449 = vset.pattern.permute.xlu0 0
  %2450 = vperm.xlu0 %2449, %v2420
  %v2451 = vpop.permute.xlu0 %2450
  %2454 = vset.pattern.permute.xlu0 0
  %2455 = vperm.xlu0 %2454, %v2421
  %v2456 = vpop.permute.xlu0 %2455
  %2459 = vset.pattern.permute.xlu0 0
  %2460 = vperm.xlu0 %2459, %v2422
  %v2461 = vpop.permute.xlu0 %2460
  %2464 = vset.pattern.permute.xlu0 0
  %2465 = vperm.xlu0 %2464, %v2423
  %v2466 = vpop.permute.xlu0 %2465
  %2469 = vset.pattern.permute.xlu0 0
  %2470 = vperm.xlu0 %2469, %v2424
  %v2471 = vpop.permute.xlu0 %2470
  %2474 = vset.pattern.permute.xlu0 0
  %2475 = vperm.xlu0 %2474, %v2425
  %v2476 = vpop.permute.xlu0 %2475
  %2479 = vset.pattern.permute.xlu0 0
  %2480 = vperm.xlu0 %2479, %v2426
  %v2481 = vpop.permute.xlu0 %2480
  %2484 = vset.pattern.permute.xlu0 0
  %2485 = vperm.xlu0 %2484, %v2427
  %v2486 = vpop.permute.xlu0 %2485
  %2489 = vset.pattern.permute.xlu0 0
  %2490 = vperm.xlu0 %2489, %v2428
  %v2491 = vpop.permute.xlu0 %2490
  %2494 = vset.pattern.permute.xlu0 0
  %2495 = vperm.xlu0 %2494, %v2429
  %v2496 = vpop.permute.xlu0 %2495
  %2499 = vset.pattern.permute.xlu0 0
  %2500 = vperm.xlu0 %2499, %v2430
  %v2501 = vpop.permute.xlu0 %2500
  %2504 = vset.pattern.permute.xlu0 0
  %2505 = vperm.xlu0 %2504, %v2431
  %v2506 = vpop.permute.xlu0 %2505
  %2509 = vset.pattern.permute.xlu0 0
  %2510 = vperm.xlu0 %2509, %v2432
  %v2511 = vpop.permute.xlu0 %2510
  %v2513 = vadd.f32 %v2401, %v2436
  %v2514 = vadd.f32 %v2402, %v2441
  %v2515 = vadd.f32 %v2403, %v2446
  %v2516 = vadd.f32 %v2404, %v2451
  %v2517 = vadd.f32 %v2405, %v2456
  %v2518 = vadd.f32 %v2406, %v2461
  %v2519 = vadd.f32 %v2407, %v2466
  %v2520 = vadd.f32 %v2408, %v2471
  %v2521 = vadd.f32 %v2409, %v2476
  %v2522 = vadd.f32 %v2410, %v2481
  %v2523 = vadd.f32 %v2411, %v2486
  %v2524 = vadd.f32 %v2412, %v2491
  %v2525 = vadd.f32 %v2413, %v2496
  %v2526 = vadd.f32 %v2414, %v2501
  %v2527 = vadd.f32 %v2415, %v2506
  %v2528 = vadd.f32 %v2416, %v2511
  %v2529 = vmax.f32 %v2513, %v2517
  %v2530 = vmax.f32 %v2514, %v2518
  %v2531 = vmax.f32 %v2515, %v2519
  %v2532 = vmax.f32 %v2516, %v2520
  %v2533 = vmax.f32 %v2529, %v2521
  %v2534 = vmax.f32 %v2530, %v2522
  %v2535 = vmax.f32 %v2531, %v2523
  %v2536 = vmax.f32 %v2532, %v2524
  %v2537 = vmax.f32 %v2533, %v2525
  %v2538 = vmax.f32 %v2534, %v2526
  %v2539 = vmax.f32 %v2535, %v2527
  %v2540 = vmax.f32 %v2536, %v2528
  %v2541 = vmax.f32 %v2537, %v2538
  %v2542 = vmax.f32 %v2539, %v2540
  %v2543 = vmax.f32 %v2541, %v2542
  %v2544 = vrot.slane %v2543, 4
  %v2545 = vmax.f32 %v2543, %v2544
  %v2546 = vrot.slane %v2545, 2
  %v2547 = vmax.f32 %v2545, %v2546
  %v2548 = vrot.slane %v2547, 1
  %v2549 = vmax.f32 %v2547, %v2548
  %2550 = vset.pattern.permute.xlu0 1
  %2551 = vperm.xlu0 %2550, %v2417
  %v2552 = vpop.permute.xlu0 %2551
  %2554 = vset.pattern.permute.xlu0 1
  %2555 = vperm.xlu0 %2554, %v2418
  %v2556 = vpop.permute.xlu0 %2555
  %2558 = vset.pattern.permute.xlu0 1
  %2559 = vperm.xlu0 %2558, %v2419
  %v2560 = vpop.permute.xlu0 %2559
  %2562 = vset.pattern.permute.xlu0 1
  %2563 = vperm.xlu0 %2562, %v2420
  %v2564 = vpop.permute.xlu0 %2563
  %2566 = vset.pattern.permute.xlu0 1
  %2567 = vperm.xlu0 %2566, %v2421
  %v2568 = vpop.permute.xlu0 %2567
  %2570 = vset.pattern.permute.xlu0 1
  %2571 = vperm.xlu0 %2570, %v2422
  %v2572 = vpop.permute.xlu0 %2571
  %2574 = vset.pattern.permute.xlu0 1
  %2575 = vperm.xlu0 %2574, %v2423
  %v2576 = vpop.permute.xlu0 %2575
  %2578 = vset.pattern.permute.xlu0 1
  %2579 = vperm.xlu0 %2578, %v2424
  %v2580 = vpop.permute.xlu0 %2579
  %2582 = vset.pattern.permute.xlu0 1
  %2583 = vperm.xlu0 %2582, %v2425
  %v2584 = vpop.permute.xlu0 %2583
  %2586 = vset.pattern.permute.xlu0 1
  %2587 = vperm.xlu0 %2586, %v2426
  %v2588 = vpop.permute.xlu0 %2587
  %2590 = vset.pattern.permute.xlu0 1
  %2591 = vperm.xlu0 %2590, %v2427
  %v2592 = vpop.permute.xlu0 %2591
  %2594 = vset.pattern.permute.xlu0 1
  %2595 = vperm.xlu0 %2594, %v2428
  %v2596 = vpop.permute.xlu0 %2595
  %2598 = vset.pattern.permute.xlu0 1
  %2599 = vperm.xlu0 %2598, %v2429
  %v2600 = vpop.permute.xlu0 %2599
  %2602 = vset.pattern.permute.xlu0 1
  %2603 = vperm.xlu0 %2602, %v2430
  %v2604 = vpop.permute.xlu0 %2603
  %2606 = vset.pattern.permute.xlu0 1
  %2607 = vperm.xlu0 %2606, %v2431
  %v2608 = vpop.permute.xlu0 %2607
  %2610 = vset.pattern.permute.xlu0 1
  %2611 = vperm.xlu0 %2610, %v2432
  %v2612 = vpop.permute.xlu0 %2611
  %v2614 = vadd.f32 %v2401, %v2552
  %v2615 = vadd.f32 %v2402, %v2556
  %v2616 = vadd.f32 %v2403, %v2560
  %v2617 = vadd.f32 %v2404, %v2564
  %v2618 = vadd.f32 %v2405, %v2568
  %v2619 = vadd.f32 %v2406, %v2572
  %v2620 = vadd.f32 %v2407, %v2576
  %v2621 = vadd.f32 %v2408, %v2580
  %v2622 = vadd.f32 %v2409, %v2584
  %v2623 = vadd.f32 %v2410, %v2588
  %v2624 = vadd.f32 %v2411, %v2592
  %v2625 = vadd.f32 %v2412, %v2596
  %v2626 = vadd.f32 %v2413, %v2600
  %v2627 = vadd.f32 %v2414, %v2604
  %v2628 = vadd.f32 %v2415, %v2608
  %v2629 = vadd.f32 %v2416, %v2612
  %v2630 = vmax.f32 %v2614, %v2618
  %v2631 = vmax.f32 %v2615, %v2619
  %v2632 = vmax.f32 %v2616, %v2620
  %v2633 = vmax.f32 %v2617, %v2621
  %v2634 = vmax.f32 %v2630, %v2622
  %v2635 = vmax.f32 %v2631, %v2623
  %v2636 = vmax.f32 %v2632, %v2624
  %v2637 = vmax.f32 %v2633, %v2625
  %v2638 = vmax.f32 %v2634, %v2626
  %v2639 = vmax.f32 %v2635, %v2627
  %v2640 = vmax.f32 %v2636, %v2628
  %v2641 = vmax.f32 %v2637, %v2629
  %v2642 = vmax.f32 %v2638, %v2639
  %v2643 = vmax.f32 %v2640, %v2641
  %v2644 = vmax.f32 %v2642, %v2643
  %v2645 = vrot.slane %v2644, 4
  %v2646 = vmax.f32 %v2644, %v2645
  %v2647 = vrot.slane %v2646, 2
  %v2648 = vmax.f32 %v2646, %v2647
  %v2649 = vrot.slane %v2648, 1
  %v2650 = vmax.f32 %v2648, %v2649
  %2651 = vset.pattern.permute.xlu0 2
  %2652 = vperm.xlu0 %2651, %v2417
  %v2653 = vpop.permute.xlu0 %2652
  %2655 = vset.pattern.permute.xlu0 2
  %2656 = vperm.xlu0 %2655, %v2418
  %v2657 = vpop.permute.xlu0 %2656
  %2659 = vset.pattern.permute.xlu0 2
  %2660 = vperm.xlu0 %2659, %v2419
  %v2661 = vpop.permute.xlu0 %2660
  %2663 = vset.pattern.permute.xlu0 2
  %2664 = vperm.xlu0 %2663, %v2420
  %v2665 = vpop.permute.xlu0 %2664
  %2667 = vset.pattern.permute.xlu0 2
  %2668 = vperm.xlu0 %2667, %v2421
  %v2669 = vpop.permute.xlu0 %2668
  %2671 = vset.pattern.permute.xlu0 2
  %2672 = vperm.xlu0 %2671, %v2422
  %v2673 = vpop.permute.xlu0 %2672
  %2675 = vset.pattern.permute.xlu0 2
  %2676 = vperm.xlu0 %2675, %v2423
  %v2677 = vpop.permute.xlu0 %2676
  %2679 = vset.pattern.permute.xlu0 2
  %2680 = vperm.xlu0 %2679, %v2424
  %v2681 = vpop.permute.xlu0 %2680
  %2683 = vset.pattern.permute.xlu0 2
  %2684 = vperm.xlu0 %2683, %v2425
  %v2685 = vpop.permute.xlu0 %2684
  %2687 = vset.pattern.permute.xlu0 2
  %2688 = vperm.xlu0 %2687, %v2426
  %v2689 = vpop.permute.xlu0 %2688
  %2691 = vset.pattern.permute.xlu0 2
  %2692 = vperm.xlu0 %2691, %v2427
  %v2693 = vpop.permute.xlu0 %2692
  %2695 = vset.pattern.permute.xlu0 2
  %2696 = vperm.xlu0 %2695, %v2428
  %v2697 = vpop.permute.xlu0 %2696
  %2699 = vset.pattern.permute.xlu0 2
  %2700 = vperm.xlu0 %2699, %v2429
  %v2701 = vpop.permute.xlu0 %2700
  %2703 = vset.pattern.permute.xlu0 2
  %2704 = vperm.xlu0 %2703, %v2430
  %v2705 = vpop.permute.xlu0 %2704
  %2707 = vset.pattern.permute.xlu0 2
  %2708 = vperm.xlu0 %2707, %v2431
  %v2709 = vpop.permute.xlu0 %2708
  %2711 = vset.pattern.permute.xlu0 2
  %2712 = vperm.xlu0 %2711, %v2432
  %v2713 = vpop.permute.xlu0 %2712
  %v2715 = vadd.f32 %v2401, %v2653
  %v2716 = vadd.f32 %v2402, %v2657
  %v2717 = vadd.f32 %v2403, %v2661
  %v2718 = vadd.f32 %v2404, %v2665
  %v2719 = vadd.f32 %v2405, %v2669
  %v2720 = vadd.f32 %v2406, %v2673
  %v2721 = vadd.f32 %v2407, %v2677
  %v2722 = vadd.f32 %v2408, %v2681
  %v2723 = vadd.f32 %v2409, %v2685
  %v2724 = vadd.f32 %v2410, %v2689
  %v2725 = vadd.f32 %v2411, %v2693
  %v2726 = vadd.f32 %v2412, %v2697
  %v2727 = vadd.f32 %v2413, %v2701
  %v2728 = vadd.f32 %v2414, %v2705
  %v2729 = vadd.f32 %v2415, %v2709
  %v2730 = vadd.f32 %v2416, %v2713
  %v2731 = vmax.f32 %v2715, %v2719
  %v2732 = vmax.f32 %v2716, %v2720
  %v2733 = vmax.f32 %v2717, %v2721
  %v2734 = vmax.f32 %v2718, %v2722
  %v2735 = vmax.f32 %v2731, %v2723
  %v2736 = vmax.f32 %v2732, %v2724
  %v2737 = vmax.f32 %v2733, %v2725
  %v2738 = vmax.f32 %v2734, %v2726
  %v2739 = vmax.f32 %v2735, %v2727
  %v2740 = vmax.f32 %v2736, %v2728
  %v2741 = vmax.f32 %v2737, %v2729
  %v2742 = vmax.f32 %v2738, %v2730
  %v2743 = vmax.f32 %v2739, %v2740
  %v2744 = vmax.f32 %v2741, %v2742
  %v2745 = vmax.f32 %v2743, %v2744
  %v2746 = vrot.slane %v2745, 4
  %v2747 = vmax.f32 %v2745, %v2746
  %v2748 = vrot.slane %v2747, 2
  %v2749 = vmax.f32 %v2747, %v2748
  %v2750 = vrot.slane %v2749, 1
  %v2751 = vmax.f32 %v2749, %v2750
  %2752 = vset.pattern.permute.xlu0 3
  %2753 = vperm.xlu0 %2752, %v2417
  %v2754 = vpop.permute.xlu0 %2753
  %2756 = vset.pattern.permute.xlu0 3
  %2757 = vperm.xlu0 %2756, %v2418
  %v2758 = vpop.permute.xlu0 %2757
  %2760 = vset.pattern.permute.xlu0 3
  %2761 = vperm.xlu0 %2760, %v2419
  %v2762 = vpop.permute.xlu0 %2761
  %2764 = vset.pattern.permute.xlu0 3
  %2765 = vperm.xlu0 %2764, %v2420
  %v2766 = vpop.permute.xlu0 %2765
  %2768 = vset.pattern.permute.xlu0 3
  %2769 = vperm.xlu0 %2768, %v2421
  %v2770 = vpop.permute.xlu0 %2769
  %2772 = vset.pattern.permute.xlu0 3
  %2773 = vperm.xlu0 %2772, %v2422
  %v2774 = vpop.permute.xlu0 %2773
  %2776 = vset.pattern.permute.xlu0 3
  %2777 = vperm.xlu0 %2776, %v2423
  %v2778 = vpop.permute.xlu0 %2777
  %2780 = vset.pattern.permute.xlu0 3
  %2781 = vperm.xlu0 %2780, %v2424
  %v2782 = vpop.permute.xlu0 %2781
  %2784 = vset.pattern.permute.xlu0 3
  %2785 = vperm.xlu0 %2784, %v2425
  %v2786 = vpop.permute.xlu0 %2785
  %2788 = vset.pattern.permute.xlu0 3
  %2789 = vperm.xlu0 %2788, %v2426
  %v2790 = vpop.permute.xlu0 %2789
  %2792 = vset.pattern.permute.xlu0 3
  %2793 = vperm.xlu0 %2792, %v2427
  %v2794 = vpop.permute.xlu0 %2793
  %2796 = vset.pattern.permute.xlu0 3
  %2797 = vperm.xlu0 %2796, %v2428
  %v2798 = vpop.permute.xlu0 %2797
  %2800 = vset.pattern.permute.xlu0 3
  %2801 = vperm.xlu0 %2800, %v2429
  %v2802 = vpop.permute.xlu0 %2801
  %2804 = vset.pattern.permute.xlu0 3
  %2805 = vperm.xlu0 %2804, %v2430
  %v2806 = vpop.permute.xlu0 %2805
  %2808 = vset.pattern.permute.xlu0 3
  %2809 = vperm.xlu0 %2808, %v2431
  %v2810 = vpop.permute.xlu0 %2809
  %2812 = vset.pattern.permute.xlu0 3
  %2813 = vperm.xlu0 %2812, %v2432
  %v2814 = vpop.permute.xlu0 %2813
  %v2816 = vadd.f32 %v2401, %v2754
  %v2817 = vadd.f32 %v2402, %v2758
  %v2818 = vadd.f32 %v2403, %v2762
  %v2819 = vadd.f32 %v2404, %v2766
  %v2820 = vadd.f32 %v2405, %v2770
  %v2821 = vadd.f32 %v2406, %v2774
  %v2822 = vadd.f32 %v2407, %v2778
  %v2823 = vadd.f32 %v2408, %v2782
  %v2824 = vadd.f32 %v2409, %v2786
  %v2825 = vadd.f32 %v2410, %v2790
  %v2826 = vadd.f32 %v2411, %v2794
  %v2827 = vadd.f32 %v2412, %v2798
  %v2828 = vadd.f32 %v2413, %v2802
  %v2829 = vadd.f32 %v2414, %v2806
  %v2830 = vadd.f32 %v2415, %v2810
  %v2831 = vadd.f32 %v2416, %v2814
  %v2832 = vmax.f32 %v2816, %v2820
  %v2833 = vmax.f32 %v2817, %v2821
  %v2834 = vmax.f32 %v2818, %v2822
  %v2835 = vmax.f32 %v2819, %v2823
  %v2836 = vmax.f32 %v2832, %v2824
  %v2837 = vmax.f32 %v2833, %v2825
  %v2838 = vmax.f32 %v2834, %v2826
  %v2839 = vmax.f32 %v2835, %v2827
  %v2840 = vmax.f32 %v2836, %v2828
  %v2841 = vmax.f32 %v2837, %v2829
  %v2842 = vmax.f32 %v2838, %v2830
  %v2843 = vmax.f32 %v2839, %v2831
  %v2844 = vmax.f32 %v2840, %v2841
  %v2845 = vmax.f32 %v2842, %v2843
  %v2846 = vmax.f32 %v2844, %v2845
  %v2847 = vrot.slane %v2846, 4
  %v2848 = vmax.f32 %v2846, %v2847
  %v2849 = vrot.slane %v2848, 2
  %v2850 = vmax.f32 %v2848, %v2849
  %v2851 = vrot.slane %v2850, 1
  %v2852 = vmax.f32 %v2850, %v2851
  %2853 = vset.pattern.permute.xlu0 4
  %2854 = vperm.xlu0 %2853, %v2417
  %v2855 = vpop.permute.xlu0 %2854
  %2857 = vset.pattern.permute.xlu0 4
  %2858 = vperm.xlu0 %2857, %v2418
  %v2859 = vpop.permute.xlu0 %2858
  %2861 = vset.pattern.permute.xlu0 4
  %2862 = vperm.xlu0 %2861, %v2419
  %v2863 = vpop.permute.xlu0 %2862
  %2865 = vset.pattern.permute.xlu0 4
  %2866 = vperm.xlu0 %2865, %v2420
  %v2867 = vpop.permute.xlu0 %2866
  %2869 = vset.pattern.permute.xlu0 4
  %2870 = vperm.xlu0 %2869, %v2421
  %v2871 = vpop.permute.xlu0 %2870
  %2873 = vset.pattern.permute.xlu0 4
  %2874 = vperm.xlu0 %2873, %v2422
  %v2875 = vpop.permute.xlu0 %2874
  %2877 = vset.pattern.permute.xlu0 4
  %2878 = vperm.xlu0 %2877, %v2423
  %v2879 = vpop.permute.xlu0 %2878
  %2881 = vset.pattern.permute.xlu0 4
  %2882 = vperm.xlu0 %2881, %v2424
  %v2883 = vpop.permute.xlu0 %2882
  %2885 = vset.pattern.permute.xlu0 4
  %2886 = vperm.xlu0 %2885, %v2425
  %v2887 = vpop.permute.xlu0 %2886
  %2889 = vset.pattern.permute.xlu0 4
  %2890 = vperm.xlu0 %2889, %v2426
  %v2891 = vpop.permute.xlu0 %2890
  %2893 = vset.pattern.permute.xlu0 4
  %2894 = vperm.xlu0 %2893, %v2427
  %v2895 = vpop.permute.xlu0 %2894
  %2897 = vset.pattern.permute.xlu0 4
  %2898 = vperm.xlu0 %2897, %v2428
  %v2899 = vpop.permute.xlu0 %2898
  %2901 = vset.pattern.permute.xlu0 4
  %2902 = vperm.xlu0 %2901, %v2429
  %v2903 = vpop.permute.xlu0 %2902
  %2905 = vset.pattern.permute.xlu0 4
  %2906 = vperm.xlu0 %2905, %v2430
  %v2907 = vpop.permute.xlu0 %2906
  %2909 = vset.pattern.permute.xlu0 4
  %2910 = vperm.xlu0 %2909, %v2431
  %v2911 = vpop.permute.xlu0 %2910
  %2913 = vset.pattern.permute.xlu0 4
  %2914 = vperm.xlu0 %2913, %v2432
  %v2915 = vpop.permute.xlu0 %2914
  %v2917 = vadd.f32 %v2401, %v2855
  %v2918 = vadd.f32 %v2402, %v2859
  %v2919 = vadd.f32 %v2403, %v2863
  %v2920 = vadd.f32 %v2404, %v2867
  %v2921 = vadd.f32 %v2405, %v2871
  %v2922 = vadd.f32 %v2406, %v2875
  %v2923 = vadd.f32 %v2407, %v2879
  %v2924 = vadd.f32 %v2408, %v2883
  %v2925 = vadd.f32 %v2409, %v2887
  %v2926 = vadd.f32 %v2410, %v2891
  %v2927 = vadd.f32 %v2411, %v2895
  %v2928 = vadd.f32 %v2412, %v2899
  %v2929 = vadd.f32 %v2413, %v2903
  %v2930 = vadd.f32 %v2414, %v2907
  %v2931 = vadd.f32 %v2415, %v2911
  %v2932 = vadd.f32 %v2416, %v2915
  %v2933 = vmax.f32 %v2917, %v2921
  %v2934 = vmax.f32 %v2918, %v2922
  %v2935 = vmax.f32 %v2919, %v2923
  %v2936 = vmax.f32 %v2920, %v2924
  %v2937 = vmax.f32 %v2933, %v2925
  %v2938 = vmax.f32 %v2934, %v2926
  %v2939 = vmax.f32 %v2935, %v2927
  %v2940 = vmax.f32 %v2936, %v2928
  %v2941 = vmax.f32 %v2937, %v2929
  %v2942 = vmax.f32 %v2938, %v2930
  %v2943 = vmax.f32 %v2939, %v2931
  %v2944 = vmax.f32 %v2940, %v2932
  %v2945 = vmax.f32 %v2941, %v2942
  %v2946 = vmax.f32 %v2943, %v2944
  %v2947 = vmax.f32 %v2945, %v2946
  %v2948 = vrot.slane %v2947, 4
  %v2949 = vmax.f32 %v2947, %v2948
  %v2950 = vrot.slane %v2949, 2
  %v2951 = vmax.f32 %v2949, %v2950
  %v2952 = vrot.slane %v2951, 1
  %v2953 = vmax.f32 %v2951, %v2952
  %2954 = vset.pattern.permute.xlu0 5
  %2955 = vperm.xlu0 %2954, %v2417
  %v2956 = vpop.permute.xlu0 %2955
  %2958 = vset.pattern.permute.xlu0 5
  %2959 = vperm.xlu0 %2958, %v2418
  %v2960 = vpop.permute.xlu0 %2959
  %2962 = vset.pattern.permute.xlu0 5
  %2963 = vperm.xlu0 %2962, %v2419
  %v2964 = vpop.permute.xlu0 %2963
  %2966 = vset.pattern.permute.xlu0 5
  %2967 = vperm.xlu0 %2966, %v2420
  %v2968 = vpop.permute.xlu0 %2967
  %2970 = vset.pattern.permute.xlu0 5
  %2971 = vperm.xlu0 %2970, %v2421
  %v2972 = vpop.permute.xlu0 %2971
  %2974 = vset.pattern.permute.xlu0 5
  %2975 = vperm.xlu0 %2974, %v2422
  %v2976 = vpop.permute.xlu0 %2975
  %2978 = vset.pattern.permute.xlu0 5
  %2979 = vperm.xlu0 %2978, %v2423
  %v2980 = vpop.permute.xlu0 %2979
  %2982 = vset.pattern.permute.xlu0 5
  %2983 = vperm.xlu0 %2982, %v2424
  %v2984 = vpop.permute.xlu0 %2983
  %2986 = vset.pattern.permute.xlu0 5
  %2987 = vperm.xlu0 %2986, %v2425
  %v2988 = vpop.permute.xlu0 %2987
  %2990 = vset.pattern.permute.xlu0 5
  %2991 = vperm.xlu0 %2990, %v2426
  %v2992 = vpop.permute.xlu0 %2991
  %2994 = vset.pattern.permute.xlu0 5
  %2995 = vperm.xlu0 %2994, %v2427
  %v2996 = vpop.permute.xlu0 %2995
  %2998 = vset.pattern.permute.xlu0 5
  %2999 = vperm.xlu0 %2998, %v2428
  %v3000 = vpop.permute.xlu0 %2999
  %3002 = vset.pattern.permute.xlu0 5
  %3003 = vperm.xlu0 %3002, %v2429
  %v3004 = vpop.permute.xlu0 %3003
  %3006 = vset.pattern.permute.xlu0 5
  %3007 = vperm.xlu0 %3006, %v2430
  %v3008 = vpop.permute.xlu0 %3007
  %3010 = vset.pattern.permute.xlu0 5
  %3011 = vperm.xlu0 %3010, %v2431
  %v3012 = vpop.permute.xlu0 %3011
  %3014 = vset.pattern.permute.xlu0 5
  %3015 = vperm.xlu0 %3014, %v2432
  %v3016 = vpop.permute.xlu0 %3015
  %v3018 = vadd.f32 %v2401, %v2956
  %v3019 = vadd.f32 %v2402, %v2960
  %v3020 = vadd.f32 %v2403, %v2964
  %v3021 = vadd.f32 %v2404, %v2968
  %v3022 = vadd.f32 %v2405, %v2972
  %v3023 = vadd.f32 %v2406, %v2976
  %v3024 = vadd.f32 %v2407, %v2980
  %v3025 = vadd.f32 %v2408, %v2984
  %v3026 = vadd.f32 %v2409, %v2988
  %v3027 = vadd.f32 %v2410, %v2992
  %v3028 = vadd.f32 %v2411, %v2996
  %v3029 = vadd.f32 %v2412, %v3000
  %v3030 = vadd.f32 %v2413, %v3004
  %v3031 = vadd.f32 %v2414, %v3008
  %v3032 = vadd.f32 %v2415, %v3012
  %v3033 = vadd.f32 %v2416, %v3016
  %v3034 = vmax.f32 %v3018, %v3022
  %v3035 = vmax.f32 %v3019, %v3023
  %v3036 = vmax.f32 %v3020, %v3024
  %v3037 = vmax.f32 %v3021, %v3025
  %v3038 = vmax.f32 %v3034, %v3026
  %v3039 = vmax.f32 %v3035, %v3027
  %v3040 = vmax.f32 %v3036, %v3028
  %v3041 = vmax.f32 %v3037, %v3029
  %v3042 = vmax.f32 %v3038, %v3030
  %v3043 = vmax.f32 %v3039, %v3031
  %v3044 = vmax.f32 %v3040, %v3032
  %v3045 = vmax.f32 %v3041, %v3033
  %v3046 = vmax.f32 %v3042, %v3043
  %v3047 = vmax.f32 %v3044, %v3045
  %v3048 = vmax.f32 %v3046, %v3047
  %v3049 = vrot.slane %v3048, 4
  %v3050 = vmax.f32 %v3048, %v3049
  %v3051 = vrot.slane %v3050, 2
  %v3052 = vmax.f32 %v3050, %v3051
  %v3053 = vrot.slane %v3052, 1
  %v3054 = vmax.f32 %v3052, %v3053
  %3055 = vset.pattern.permute.xlu0 6
  %3056 = vperm.xlu0 %3055, %v2417
  %v3057 = vpop.permute.xlu0 %3056
  %3059 = vset.pattern.permute.xlu0 6
  %3060 = vperm.xlu0 %3059, %v2418
  %v3061 = vpop.permute.xlu0 %3060
  %3063 = vset.pattern.permute.xlu0 6
  %3064 = vperm.xlu0 %3063, %v2419
  %v3065 = vpop.permute.xlu0 %3064
  %3067 = vset.pattern.permute.xlu0 6
  %3068 = vperm.xlu0 %3067, %v2420
  %v3069 = vpop.permute.xlu0 %3068
  %3071 = vset.pattern.permute.xlu0 6
  %3072 = vperm.xlu0 %3071, %v2421
  %v3073 = vpop.permute.xlu0 %3072
  %3075 = vset.pattern.permute.xlu0 6
  %3076 = vperm.xlu0 %3075, %v2422
  %v3077 = vpop.permute.xlu0 %3076
  %3079 = vset.pattern.permute.xlu0 6
  %3080 = vperm.xlu0 %3079, %v2423
  %v3081 = vpop.permute.xlu0 %3080
  %3083 = vset.pattern.permute.xlu0 6
  %3084 = vperm.xlu0 %3083, %v2424
  %v3085 = vpop.permute.xlu0 %3084
  %3087 = vset.pattern.permute.xlu0 6
  %3088 = vperm.xlu0 %3087, %v2425
  %v3089 = vpop.permute.xlu0 %3088
  %3091 = vset.pattern.permute.xlu0 6
  %3092 = vperm.xlu0 %3091, %v2426
  %v3093 = vpop.permute.xlu0 %3092
  %3095 = vset.pattern.permute.xlu0 6
  %3096 = vperm.xlu0 %3095, %v2427
  %v3097 = vpop.permute.xlu0 %3096
  %3099 = vset.pattern.permute.xlu0 6
  %3100 = vperm.xlu0 %3099, %v2428
  %v3101 = vpop.permute.xlu0 %3100
  %3103 = vset.pattern.permute.xlu0 6
  %3104 = vperm.xlu0 %3103, %v2429
  %v3105 = vpop.permute.xlu0 %3104
  %3107 = vset.pattern.permute.xlu0 6
  %3108 = vperm.xlu0 %3107, %v2430
  %v3109 = vpop.permute.xlu0 %3108
  %3111 = vset.pattern.permute.xlu0 6
  %3112 = vperm.xlu0 %3111, %v2431
  %v3113 = vpop.permute.xlu0 %3112
  %3115 = vset.pattern.permute.xlu0 6
  %3116 = vperm.xlu0 %3115, %v2432
  %v3117 = vpop.permute.xlu0 %3116
  %v3119 = vadd.f32 %v2401, %v3057
  %v3120 = vadd.f32 %v2402, %v3061
  %v3121 = vadd.f32 %v2403, %v3065
  %v3122 = vadd.f32 %v2404, %v3069
  %v3123 = vadd.f32 %v2405, %v3073
  %v3124 = vadd.f32 %v2406, %v3077
  %v3125 = vadd.f32 %v2407, %v3081
  %v3126 = vadd.f32 %v2408, %v3085
  %v3127 = vadd.f32 %v2409, %v3089
  %v3128 = vadd.f32 %v2410, %v3093
  %v3129 = vadd.f32 %v2411, %v3097
  %v3130 = vadd.f32 %v2412, %v3101
  %v3131 = vadd.f32 %v2413, %v3105
  %v3132 = vadd.f32 %v2414, %v3109
  %v3133 = vadd.f32 %v2415, %v3113
  %v3134 = vadd.f32 %v2416, %v3117
  %v3135 = vmax.f32 %v3119, %v3123
  %v3136 = vmax.f32 %v3120, %v3124
  %v3137 = vmax.f32 %v3121, %v3125
  %v3138 = vmax.f32 %v3122, %v3126
  %v3139 = vmax.f32 %v3135, %v3127
  %v3140 = vmax.f32 %v3136, %v3128
  %v3141 = vmax.f32 %v3137, %v3129
  %v3142 = vmax.f32 %v3138, %v3130
  %v3143 = vmax.f32 %v3139, %v3131
  %v3144 = vmax.f32 %v3140, %v3132
  %v3145 = vmax.f32 %v3141, %v3133
  %v3146 = vmax.f32 %v3142, %v3134
  %v3147 = vmax.f32 %v3143, %v3144
  %v3148 = vmax.f32 %v3145, %v3146
  %v3149 = vmax.f32 %v3147, %v3148
  %v3150 = vrot.slane %v3149, 4
  %v3151 = vmax.f32 %v3149, %v3150
  %v3152 = vrot.slane %v3151, 2
  %v3153 = vmax.f32 %v3151, %v3152
  %v3154 = vrot.slane %v3153, 1
  %v3155 = vmax.f32 %v3153, %v3154
  %3156 = vset.pattern.permute.xlu0 7
  %3157 = vperm.xlu0 %3156, %v2417
  %v3158 = vpop.permute.xlu0 %3157
  %3160 = vset.pattern.permute.xlu0 7
  %3161 = vperm.xlu0 %3160, %v2418
  %v3162 = vpop.permute.xlu0 %3161
  %3164 = vset.pattern.permute.xlu0 7
  %3165 = vperm.xlu0 %3164, %v2419
  %v3166 = vpop.permute.xlu0 %3165
  %3168 = vset.pattern.permute.xlu0 7
  %3169 = vperm.xlu0 %3168, %v2420
  %v3170 = vpop.permute.xlu0 %3169
  %3172 = vset.pattern.permute.xlu0 7
  %3173 = vperm.xlu0 %3172, %v2421
  %v3174 = vpop.permute.xlu0 %3173
  %3176 = vset.pattern.permute.xlu0 7
  %3177 = vperm.xlu0 %3176, %v2422
  %v3178 = vpop.permute.xlu0 %3177
  %3180 = vset.pattern.permute.xlu0 7
  %3181 = vperm.xlu0 %3180, %v2423
  %v3182 = vpop.permute.xlu0 %3181
  %3184 = vset.pattern.permute.xlu0 7
  %3185 = vperm.xlu0 %3184, %v2424
  %v3186 = vpop.permute.xlu0 %3185
  %3188 = vset.pattern.permute.xlu0 7
  %3189 = vperm.xlu0 %3188, %v2425
  %v3190 = vpop.permute.xlu0 %3189
  %3192 = vset.pattern.permute.xlu0 7
  %3193 = vperm.xlu0 %3192, %v2426
  %v3194 = vpop.permute.xlu0 %3193
  %3196 = vset.pattern.permute.xlu0 7
  %3197 = vperm.xlu0 %3196, %v2427
  %v3198 = vpop.permute.xlu0 %3197
  %3200 = vset.pattern.permute.xlu0 7
  %3201 = vperm.xlu0 %3200, %v2428
  %v3202 = vpop.permute.xlu0 %3201
  %3204 = vset.pattern.permute.xlu0 7
  %3205 = vperm.xlu0 %3204, %v2429
  %v3206 = vpop.permute.xlu0 %3205
  %3208 = vset.pattern.permute.xlu0 7
  %3209 = vperm.xlu0 %3208, %v2430
  %v3210 = vpop.permute.xlu0 %3209
  %3212 = vset.pattern.permute.xlu0 7
  %3213 = vperm.xlu0 %3212, %v2431
  %v3214 = vpop.permute.xlu0 %3213
  %3216 = vset.pattern.permute.xlu0 7
  %3217 = vperm.xlu0 %3216, %v2432
  %v3218 = vpop.permute.xlu0 %3217
  %v3220 = vadd.f32 %v2401, %v3158
  %v3221 = vadd.f32 %v2402, %v3162
  %v3222 = vadd.f32 %v2403, %v3166
  %v3223 = vadd.f32 %v2404, %v3170
  %v3224 = vadd.f32 %v2405, %v3174
  %v3225 = vadd.f32 %v2406, %v3178
  %v3226 = vadd.f32 %v2407, %v3182
  %v3227 = vadd.f32 %v2408, %v3186
  %v3228 = vadd.f32 %v2409, %v3190
  %v3229 = vadd.f32 %v2410, %v3194
  %v3230 = vadd.f32 %v2411, %v3198
  %v3231 = vadd.f32 %v2412, %v3202
  %v3232 = vadd.f32 %v2413, %v3206
  %v3233 = vadd.f32 %v2414, %v3210
  %v3234 = vadd.f32 %v2415, %v3214
  %v3235 = vadd.f32 %v2416, %v3218
  %v3236 = vmax.f32 %v3220, %v3224
  %v3237 = vmax.f32 %v3221, %v3225
  %v3238 = vmax.f32 %v3222, %v3226
  %v3239 = vmax.f32 %v3223, %v3227
  %v3240 = vmax.f32 %v3236, %v3228
  %v3241 = vmax.f32 %v3237, %v3229
  %v3242 = vmax.f32 %v3238, %v3230
  %v3243 = vmax.f32 %v3239, %v3231
  %v3244 = vmax.f32 %v3240, %v3232
  %v3245 = vmax.f32 %v3241, %v3233
  %v3246 = vmax.f32 %v3242, %v3234
  %v3247 = vmax.f32 %v3243, %v3235
  %v3248 = vmax.f32 %v3244, %v3245
  %v3249 = vmax.f32 %v3246, %v3247
  %v3250 = vmax.f32 %v3248, %v3249
  %v3251 = vrot.slane %v3250, 4
  %v3252 = vmax.f32 %v3250, %v3251
  %v3253 = vrot.slane %v3252, 2
  %v3254 = vmax.f32 %v3252, %v3253
  %v3255 = vrot.slane %v3254, 1
  %v3256 = vmax.f32 %v3254, %v3255
  %vm3257 = vcmask 1040384
  %v3258 = vsel %vm3257, %v2549, %v2650
  %vm3259 = vcmask 1041408
  %v3260 = vsel %vm3259, %v3258, %v2751
  %vm3261 = vcmask 1042432
  %v3262 = vsel %vm3261, %v3260, %v2852
  %v3263 = vsel %vm390, %v3262, %v2953
  %vm3264 = vcmask 1044480
  %v3265 = vsel %vm3264, %v3263, %v3054
  %vm3266 = vcmask 1045504
  %v3267 = vsel %vm3266, %v3265, %v3155
  %vm3268 = vcmask 1046528
  %v3269 = vsel %vm3268, %v3267, %v3256
  %v3270 = vld [vmem:[%s18] sm:$0xff]
  %v3271 = vld [vmem:[%s18 + $0x8] sm:$0xff]
  %v3272 = vld [vmem:[%s18 + $0x10] sm:$0xff]
  %v3273 = vld [vmem:[%s18 + $0x18] sm:$0xff]
  %v3274 = vld [vmem:[%s18 + $0x20] sm:$0xff]
  %v3275 = vld [vmem:[%s18 + $0x28] sm:$0xff]
  %v3276 = vld [vmem:[%s18 + $0x30] sm:$0xff]
  %v3277 = vld [vmem:[%s18 + $0x38] sm:$0xff]
  %v3278 = vld [vmem:[%s18 + $0x40] sm:$0xff]
  %v3279 = vld [vmem:[%s18 + $0x48] sm:$0xff]
  %v3280 = vld [vmem:[%s18 + $0x50] sm:$0xff]
  %v3281 = vld [vmem:[%s18 + $0x58] sm:$0xff]
  %v3282 = vld [vmem:[%s18 + $0x60] sm:$0xff]
  %v3283 = vld [vmem:[%s18 + $0x68] sm:$0xff]
  %v3284 = vld [vmem:[%s18 + $0x70] sm:$0xff]
  %v3285 = vld [vmem:[%s18 + $0x78] sm:$0xff]
  %v3286 = vld [vmem:[%s19] sm:$0x1]
  %v3288 = vlaneseq
  %v3289 = vshrl.u32 %v3288, 7
  %v3290 = vsub.s32 0, %v3289
  %v3291 = vrot.slane %v3286, %v3290
  %3293 = vmatprep.subr.mxu0 0.0
  %3294 = vmatpush1.msra.mxu0 %v3285
  %3295 = vmatprep.subr.mxu0 0.0
  %3296 = vmatpush1.msra.mxu0 %v3284
  %3297 = vmatprep.subr.mxu0 0.0
  %3298 = vmatpush1.msra.mxu0 %v3283
  %3299 = vmatprep.subr.mxu0 0.0
  %3300 = vmatpush1.msra.mxu0 %v3282
  %3301 = vmatprep.subr.mxu0 0.0
  %3302 = vmatpush1.msra.mxu0 %v3281
  %3303 = vmatprep.subr.mxu0 0.0
  %3304 = vmatpush1.msra.mxu0 %v3280
  %3305 = vmatprep.subr.mxu0 0.0
  %3306 = vmatpush1.msra.mxu0 %v3279
  %3307 = vmatprep.subr.mxu0 0.0
  %3308 = vmatpush1.msra.mxu0 %v3278
  %3309 = vmatprep.subr.mxu0 0.0
  %3310 = vmatpush1.msra.mxu0 %v3277
  %3311 = vmatprep.subr.mxu0 0.0
  %3312 = vmatpush1.msra.mxu0 %v3276
  %3313 = vmatprep.subr.mxu0 0.0
  %3314 = vmatpush1.msra.mxu0 %v3275
  %3315 = vmatprep.subr.mxu0 0.0
  %3316 = vmatpush1.msra.mxu0 %v3274
  %3317 = vmatprep.subr.mxu0 0.0
  %3318 = vmatpush1.msra.mxu0 %v3273
  %3319 = vmatprep.subr.mxu0 0.0
  %3320 = vmatpush1.msra.mxu0 %v3272
  %3321 = vmatprep.subr.mxu0 0.0
  %3322 = vmatpush1.msra.mxu0 %v3271
  %3323 = vmatprep.subr.mxu0 0.0
  %3324 = vmatpush1.msra.mxu0 %v3270
  %3325 = vmatprep.subr.mxu0 0.0
  %3326 = vmatpush2.msra.mxu0 0.0
  %3327 = vmatprep.subr.mxu0 0.0
  %3328 = vmatpush2.msra.mxu0 0.0
  %3329 = vmatprep.subr.mxu0 0.0
  %3330 = vmatpush2.msra.mxu0 0.0
  %3331 = vmatprep.subr.mxu0 0.0
  %3332 = vmatpush2.msra.mxu0 0.0
  %3333 = vmatprep.subr.mxu0 0.0
  %3334 = vmatpush2.msra.mxu0 0.0
  %3335 = vmatprep.subr.mxu0 0.0
  %3336 = vmatpush2.msra.mxu0 0.0
  %3337 = vmatprep.subr.mxu0 0.0
  %3338 = vmatpush2.msra.mxu0 0.0
  %3339 = vmatprep.subr.mxu0 0.0
  %3340 = vmatpush2.msra.mxu0 0.0
  %3341 = vmatprep.subr.mxu0 0.0
  %3342 = vmatpush2.msra.mxu0 0.0
  %3343 = vmatprep.subr.mxu0 0.0
  %3344 = vmatpush2.msra.mxu0 0.0
  %3345 = vmatprep.subr.mxu0 0.0
  %3346 = vmatpush2.msra.mxu0 0.0
  %3347 = vmatprep.subr.mxu0 0.0
  %3348 = vmatpush2.msra.mxu0 0.0
  %3349 = vmatprep.subr.mxu0 0.0
  %3350 = vmatpush2.msra.mxu0 0.0
  %3351 = vmatprep.subr.mxu0 0.0
  %3352 = vmatpush2.msra.mxu0 0.0
  %3353 = vmatprep.subr.mxu0 0.0
  %3354 = vmatpush2.msra.mxu0 0.0
  %3355 = vmatprep.subr.mxu0 0.0
  %3356 = vmatpush2.msra.mxu0 0.0
  %3357 = vmatprep.mubr.f32.mxu0 0.0
  %3358 = vmatmul.mubr.f32.gmra.mxu0 %v3269
  %v3359 = vpop.f32.mrf.mxu0
  %v3360 = vadd.f32 %v3291, %v3359
  %v3361 = vpop.f32.mrf.mxu0
  %3362 = vdwg.mxu0
  %v3363 = vld [vmem:[%s20] sm:$0xff]
  %v3364 = vld [vmem:[%s20 + $0x8] sm:$0xff]
  %v3365 = vld [vmem:[%s20 + $0x10] sm:$0xff]
  %v3366 = vld [vmem:[%s20 + $0x18] sm:$0xff]
  %v3367 = vld [vmem:[%s20 + $0x20] sm:$0xff]
  %v3368 = vld [vmem:[%s20 + $0x28] sm:$0xff]
  %v3369 = vld [vmem:[%s20 + $0x30] sm:$0xff]
  %v3370 = vld [vmem:[%s20 + $0x38] sm:$0xff]
  %v3371 = vld [vmem:[%s20 + $0x40] sm:$0xff]
  %v3372 = vld [vmem:[%s20 + $0x48] sm:$0xff]
  %v3373 = vld [vmem:[%s20 + $0x50] sm:$0xff]
  %v3374 = vld [vmem:[%s20 + $0x58] sm:$0xff]
  %v3375 = vld [vmem:[%s20 + $0x60] sm:$0xff]
  %v3376 = vld [vmem:[%s20 + $0x68] sm:$0xff]
  %v3377 = vld [vmem:[%s20 + $0x70] sm:$0xff]
  %v3378 = vld [vmem:[%s20 + $0x78] sm:$0xff]
  %v3379 = vld [vmem:[%s21] sm:$0x1]
  %v3381 = vlaneseq
  %v3382 = vshrl.u32 %v3381, 7
  %v3383 = vsub.s32 0, %v3382
  %v3384 = vrot.slane %v3379, %v3383
  %3386 = vmatprep.subr.mxu0 0.0
  %3387 = vmatpush1.msra.mxu0 %v3378
  %3388 = vmatprep.subr.mxu0 0.0
  %3389 = vmatpush1.msra.mxu0 %v3377
  %3390 = vmatprep.subr.mxu0 0.0
  %3391 = vmatpush1.msra.mxu0 %v3376
  %3392 = vmatprep.subr.mxu0 0.0
  %3393 = vmatpush1.msra.mxu0 %v3375
  %3394 = vmatprep.subr.mxu0 0.0
  %3395 = vmatpush1.msra.mxu0 %v3374
  %3396 = vmatprep.subr.mxu0 0.0
  %3397 = vmatpush1.msra.mxu0 %v3373
  %3398 = vmatprep.subr.mxu0 0.0
  %3399 = vmatpush1.msra.mxu0 %v3372
  %3400 = vmatprep.subr.mxu0 0.0
  %3401 = vmatpush1.msra.mxu0 %v3371
  %3402 = vmatprep.subr.mxu0 0.0
  %3403 = vmatpush1.msra.mxu0 %v3370
  %3404 = vmatprep.subr.mxu0 0.0
  %3405 = vmatpush1.msra.mxu0 %v3369
  %3406 = vmatprep.subr.mxu0 0.0
  %3407 = vmatpush1.msra.mxu0 %v3368
  %3408 = vmatprep.subr.mxu0 0.0
  %3409 = vmatpush1.msra.mxu0 %v3367
  %3410 = vmatprep.subr.mxu0 0.0
  %3411 = vmatpush1.msra.mxu0 %v3366
  %3412 = vmatprep.subr.mxu0 0.0
  %3413 = vmatpush1.msra.mxu0 %v3365
  %3414 = vmatprep.subr.mxu0 0.0
  %3415 = vmatpush1.msra.mxu0 %v3364
  %3416 = vmatprep.subr.mxu0 0.0
  %3417 = vmatpush1.msra.mxu0 %v3363
  %3418 = vmatprep.subr.mxu0 0.0
  %3419 = vmatpush2.msra.mxu0 0.0
  %3420 = vmatprep.subr.mxu0 0.0
  %3421 = vmatpush2.msra.mxu0 0.0
  %3422 = vmatprep.subr.mxu0 0.0
  %3423 = vmatpush2.msra.mxu0 0.0
  %3424 = vmatprep.subr.mxu0 0.0
  %3425 = vmatpush2.msra.mxu0 0.0
  %3426 = vmatprep.subr.mxu0 0.0
  %3427 = vmatpush2.msra.mxu0 0.0
  %3428 = vmatprep.subr.mxu0 0.0
  %3429 = vmatpush2.msra.mxu0 0.0
  %3430 = vmatprep.subr.mxu0 0.0
  %3431 = vmatpush2.msra.mxu0 0.0
  %3432 = vmatprep.subr.mxu0 0.0
  %3433 = vmatpush2.msra.mxu0 0.0
  %3434 = vmatprep.subr.mxu0 0.0
  %3435 = vmatpush2.msra.mxu0 0.0
  %3436 = vmatprep.subr.mxu0 0.0
  %3437 = vmatpush2.msra.mxu0 0.0
  %3438 = vmatprep.subr.mxu0 0.0
  %3439 = vmatpush2.msra.mxu0 0.0
  %3440 = vmatprep.subr.mxu0 0.0
  %3441 = vmatpush2.msra.mxu0 0.0
  %3442 = vmatprep.subr.mxu0 0.0
  %3443 = vmatpush2.msra.mxu0 0.0
  %3444 = vmatprep.subr.mxu0 0.0
  %3445 = vmatpush2.msra.mxu0 0.0
  %3446 = vmatprep.subr.mxu0 0.0
  %3447 = vmatpush2.msra.mxu0 0.0
  %3448 = vmatprep.subr.mxu0 0.0
  %3449 = vmatpush2.msra.mxu0 0.0
  %3450 = vmatprep.mubr.f32.mxu0 0.0
  %3451 = vmatmul.mubr.f32.gmra.mxu0 %v3360
  %v3452 = vpop.f32.mrf.mxu0
  %v3453 = vadd.f32 %v3384, %v3452
  %v3454 = vpop.f32.mrf.mxu0
  %3455 = vdwg.mxu0
  %3456 = vst [vmem:[%s22] sm:$0xff] %v3453
  // Predicated region
  $region120: #{gcn_forward.1} parent=0 // pred_check
    _
  $region121: #{gcn_forward.1} parent=0 // pred_check_branch
    %3458 = sbr.rel (0) target = $region123
  $region122: #{gcn_forward.1} parent=0 // pred_region
    _
  $region123: #{gcn_forward.1} parent=0 // pred_fallthru
    _
  // Predicated region
  $region124: #{gcn_forward.1} parent=0 // pred_check
    _
  $region125: #{gcn_forward.1} parent=0 // pred_check_branch
    %3460 = sbr.rel (0) target = $region127
  $region126: #{gcn_forward.1} parent=0 // pred_region
    _
  $region127: #{gcn_forward.1} parent=0 // pred_fallthru
    _
  %3461 = vsyncmov [#allocation4]
  %s3462 = vpop.sfrf %3461
  %p3463 = scmp.eq.s32.totalorder %s3462, 0
  %p3464 = pneg %p3463
  %3466 = shalt.err (%p3464)
  %s3467 = scalar_lea.sflag [#allocation4], 1
  %3468 = vsyncmov %s3467
  %s3469 = vpop.sfrf %3468
  %p3470 = scmp.eq.s32.totalorder %s3469, 0
  %p3471 = pneg %p3470
  %3473 = shalt.err (%p3471)

</llo_original>
